<compile_context>
chip_gen: v5e
topology: v5e:2x2
jax: 0.10.0
libtpu: 0.0.40
codegen_flags: <defaults>
</compile_context>

<pallas_src>
import functools

import jax
import jax.numpy as jnp
from jax import lax
from jax.experimental import pallas as pl
from jax.experimental.pallas import tpu as pltpu

MEL = 100        # mel bins produced by the CFM
MEL_PAD = 128    # padded mel bins (sublane/MXU aligned)
FEAT = 512       # conditioning feature channels (SoVITS fea dim)


def _round_up(x, m):
    return ((x + m - 1) // m) * m


# ----------------------- Pallas kernel: fused CFM Euler ODE -----------------------

def _make_cfm_kernel(steps: int):
    """Euler ODE:  x_{k+1} = x_k + dt * tanh(W @ cond + U @ x_k), fully unrolled."""
    dt = 1.0 / float(steps)

    def kernel(cond_ref, x0_ref, w_ref, u_ref, o_ref):
        # drive is time-invariant across Euler steps -> computed once per tile (MXU, bf16 in / f32 acc)
        drive = jnp.dot(w_ref[...], cond_ref[...], preferred_element_type=jnp.float32)

        def step(_, x):
            v = jnp.tanh(drive + jnp.dot(u_ref[...], x.astype(jnp.bfloat16),
                                         preferred_element_type=jnp.float32))
            return x + dt * v

        # static trip count -> unrolled so the LLO scheduler can overlap EUP tanh with MXU pushes
        o_ref[...] = lax.fori_loop(0, steps, step, x0_ref[...], unroll=True)

    return kernel


def pallas_cfm_euler(cond, x0_p, w_p, u_p, steps):
    """cond: (FEAT, T) f32, x0_p: (MEL_PAD, T) f32, w_p: (MEL_PAD, FEAT) bf16,
    u_p: (MEL_PAD, MEL_PAD) bf16.  Returns (MEL_PAD, T) f32."""
    T = cond.shape[1]
    # 256-lane tiles for v6e/v7x MXU width; 128 is enough when T is tiny (still saturates v5e).
    TN = 256 if T > 128 else 128
    T_pad = _round_up(T, TN)

    cond_p = jnp.zeros((FEAT, T_pad), jnp.bfloat16).at[:, :T].set(cond.astype(jnp.bfloat16))
    x0_full = jnp.zeros((MEL_PAD, T_pad), jnp.float32).at[:, :T].set(x0_p)

    out = pl.pallas_call(
        _make_cfm_kernel(steps),
        out_shape=jax.ShapeDtypeStruct((MEL_PAD, T_pad), jnp.float32),
        grid=(T_pad // TN,),
        in_specs=[
            pl.BlockSpec((FEAT, TN), lambda i: (0, i)),          # cond tile
            pl.BlockSpec((MEL_PAD, TN), lambda i: (0, i)),        # x0 tile
            pl.BlockSpec((MEL_PAD, FEAT), lambda i: (0, 0)),      # W: VMEM-resident across tiles
            pl.BlockSpec((MEL_PAD, MEL_PAD), lambda i: (0, 0)),   # U: VMEM-resident across tiles
        ],
        out_specs=pl.BlockSpec((MEL_PAD, TN), lambda i: (0, i)),  # lane-dense (128/256-wide) stores
        compiler_params=pltpu.CompilerParams(
            dimension_semantics=("parallel",)),                   # time tiles are independent
    )(cond_p, x0_full, w_p, u_p)
    return out[:, :T]


def ref_cfm_euler(cond, x0_p, w_p, u_p, steps):
    """Pure-JAX reference with identical numerics (bf16 operands, f32 accumulation)."""
    drive = jnp.dot(w_p, cond.astype(jnp.bfloat16), preferred_element_type=jnp.float32)
    x = x0_p.astype(jnp.float32)
    dt = 1.0 / float(steps)
    for _ in range(steps):
        v = jnp.tanh(drive + jnp.dot(u_p, x.astype(jnp.bfloat16),
                                     preferred_element_type=jnp.float32))
        x = x + dt * v
    return x


# ----------------------- deterministic synthetic parameters -----------------------

def init_params(key):
    # Weights stored pre-padded (100 -> 128 rows/cols zero) and in bf16 for the MXU.
    k1, k2 = jax.random.split(key)
    s = 0.05
    w = jax.random.normal(k1, (MEL, FEAT), jnp.float32) * s
    u = jax.random.normal(k2, (MEL, MEL), jnp.float32) * s
    w_pad = jnp.zeros((MEL_PAD, FEAT), jnp.float32).at[:MEL].set(w).astype(jnp.bfloat16)
    u_pad = jnp.zeros((MEL_PAD, MEL_PAD), jnp.float32).at[:MEL, :MEL].set(u).astype(jnp.bfloat16)
    return {"w_cfm_cond": w_pad, "u_cfm": u_pad}


# ----------------------- synthetic CFM sub-module stand-in -----------------------

def synthetic_cfm(params, fea, mel2, steps, euler_fn):
    # TODO(synk): the real CFM is an opaque DiT-based flow-matching estimator with CFG;
    # it is replaced here by a deterministic Euler-ODE stand-in with the same I/O contract:
    # fea (1, T_total, FEAT) time-major conditioning, mel2 (1, MEL, T_mel) prompt,
    # output (1, MEL, T_total) with the prompt region occupying the first T_mel frames.
    cond = fea[0].T                                   # (FEAT, T_total) channel-major
    T_total = cond.shape[1]
    T_prompt = min(mel2.shape[2], T_total)

    m = mel2[0]                                       # (MEL, T_mel)
    last = m[:, T_prompt - 1:T_prompt]                # (MEL, 1)
    x0 = jnp.concatenate(
        [m[:, :T_prompt], jnp.broadcast_to(last, (MEL, T_total - T_prompt))], axis=1)
    x0_p = jnp.zeros((MEL_PAD, T_total), jnp.float32).at[:MEL].set(x0)

    x = euler_fn(cond, x0_p, params["w_cfm_cond"], params["u_cfm"], steps)
    return x[:MEL][None]                              # (1, MEL, T_total)


# ----------------------- ExportCFM.forward -----------------------

@functools.partial(jax.jit, static_argnums=(4, 5))
def _export_cfm_impl(params, fea_ref, fea_todo_chunk, mel2, steps, euler_fn):
    T_min = fea_ref.shape[2]
    # fea = cat([fea_ref, fea_todo_chunk], 2).transpose(2, 1)
    fea = jnp.concatenate([fea_ref, fea_todo_chunk], axis=2).transpose(0, 2, 1)
    cfm_full = synthetic_cfm(params, fea, mel2, steps, euler_fn)   # (1, MEL, T_ref + T_chunk)
    cfm_res = cfm_full[:, :, mel2.shape[2]:]
    mel2_out = cfm_res[:, :, -T_min:]
    fea_ref_out = fea_todo_chunk[:, :, -T_min:]
    return cfm_res, fea_ref_out, mel2_out


def export_cfm_forward(params, fea_ref, fea_todo_chunk, mel2, sample_steps,
                       euler_fn=pallas_cfm_euler):
    # sample_steps arrives as a (1,) int tensor; it is host-known, so consume it as a
    # static int and unroll the Euler loop.
    # TODO(synk): a truly dynamic step count would need the SMEM-scalar + scf.for path.
    steps = max(int(jnp.asarray(sample_steps).reshape(-1)[0]), 1)
    return _export_cfm_impl(params, fea_ref, fea_todo_chunk, mel2, steps, euler_fn)


# ----------------------- demo -----------------------

if __name__ == "__main__":
    key = jax.random.PRNGKey(0)
    pkey, k1, k2, k3 = jax.random.split(key, 4)
    params = init_params(pkey)

    # Small shapes consistent with the module: prompt length == mel2 length (as in the
    # real pipeline), T_total = 512 -> two 256-lane grid tiles with resident weights.
    T_ref = 128
    T_chunk = 384
    fea_ref = jax.random.normal(k1, (1, FEAT, T_ref), jnp.float32)
    fea_todo_chunk = jax.random.normal(k2, (1, FEAT, T_chunk), jnp.float32)
    mel2 = jax.random.normal(k3, (1, MEL, T_ref), jnp.float32)
    sample_steps = jnp.array([8], jnp.int32)

    out = export_cfm_forward(params, fea_ref, fea_todo_chunk, mel2, sample_steps)
    cfm_res, fea_ref_out, mel2_out = jax.block_until_ready(out)

    assert cfm_res.shape == (1, MEL, T_chunk), cfm_res.shape
    assert fea_ref_out.shape == (1, FEAT, T_ref), fea_ref_out.shape
    assert mel2_out.shape == (1, MEL, T_ref), mel2_out.shape
    assert bool(jnp.all(jnp.isfinite(cfm_res)))
    assert bool(jnp.all(jnp.isfinite(mel2_out)))

    # Pure-JAX reference (same bf16/f32 numerics, no Pallas) for correctness.
    ref_cfm_res, ref_fea_ref_out, ref_mel2_out = jax.block_until_ready(
        export_cfm_forward(params, fea_ref, fea_todo_chunk, mel2, sample_steps,
                           euler_fn=ref_cfm_euler))
    max_err = float(jnp.max(jnp.abs(cfm_res - ref_cfm_res)))
    assert max_err < 5e-2, f"cfm_res mismatch, max abs err {max_err}"
    assert bool(jnp.all(fea_ref_out == ref_fea_ref_out))
    max_err2 = float(jnp.max(jnp.abs(mel2_out - ref_mel2_out)))
    assert max_err2 < 5e-2, f"mel2 mismatch, max abs err {max_err2}"

    print("KERNEL_OK")
</pallas_src>

<mosaic_0001>
module attributes {stable_mosaic.version = 11 : i64} {
  func.func @kernel(%arg0: i32, %arg1: memref<512x256xbf16, #tpu.memory_space<vmem>>, %arg2: memref<128x256xf32, #tpu.memory_space<vmem>>, %arg3: memref<128x512xbf16, #tpu.memory_space<vmem>>, %arg4: memref<128x128xbf16, #tpu.memory_space<vmem>>, %arg5: memref<128x256xf32, #tpu.memory_space<vmem>>) attributes {dimension_semantics = [#tpu.dimension_semantics<parallel>], iteration_bounds = array<i64: 2>, scalar_prefetch = 0 : i64, scratch_operands = 0 : i64, tpu.core_type = #tpu.core_type<tc>, window_params = [{transform_indices = @transform_0, window_bounds = array<i64: 512, 256>}, {transform_indices = @transform_1, window_bounds = array<i64: 128, 256>}, {pipeline_mode = #tpu.pipeline_mode<synchronous>, transform_indices = @transform_2, window_bounds = array<i64: 128, 512>}, {pipeline_mode = #tpu.pipeline_mode<synchronous>, transform_indices = @transform_3, window_bounds = array<i64: 128, 128>}, {transform_indices = @transform_4, window_bounds = array<i64: 128, 256>}]} {
    %c0 = arith.constant 0 : index
    %c0_0 = arith.constant 0 : index
    %0 = vector.load %arg3[%c0, %c0_0] : memref<128x512xbf16, #tpu.memory_space<vmem>>, vector<128x512xbf16>
    %c0_1 = arith.constant 0 : index
    %c0_2 = arith.constant 0 : index
    %1 = vector.load %arg1[%c0_1, %c0_2] : memref<512x256xbf16, #tpu.memory_space<vmem>>, vector<512x256xbf16>
    %cst = arith.constant dense<0.000000e+00> : vector<128x256xf32>
    %2 = tpu.matmul %0, %1, %cst {dimension_numbers = #tpu.dot_dimension_numbers<[1], [0], [0], [1], [0, 0, 1, 1], [], []>} : vector<128x512xbf16>, vector<512x256xbf16>, vector<128x256xf32> -> vector<128x256xf32>
    %c0_3 = arith.constant 0 : index
    %c0_4 = arith.constant 0 : index
    %3 = vector.load %arg2[%c0_3, %c0_4] : memref<128x256xf32, #tpu.memory_space<vmem>>, vector<128x256xf32>
    %c0_i32 = arith.constant 0 : i32
    %c0_5 = arith.constant 0 : index
    %c0_6 = arith.constant 0 : index
    %4 = vector.load %arg4[%c0_5, %c0_6] : memref<128x128xbf16, #tpu.memory_space<vmem>>, vector<128x128xbf16>
    %5 = arith.truncf %3 : vector<128x256xf32> to vector<128x256xbf16>
    %cst_7 = arith.constant dense<0.000000e+00> : vector<128x256xf32>
    %6 = tpu.matmul %4, %5, %cst_7 {dimension_numbers = #tpu.dot_dimension_numbers<[1], [0], [0], [1], [0, 0, 1, 1], [], []>} : vector<128x128xbf16>, vector<128x256xbf16>, vector<128x256xf32> -> vector<128x256xf32>
    %7 = arith.addf %2, %6 : vector<128x256xf32>
    %8 = math.tanh %7 : vector<128x256xf32>
    %cst_8 = arith.constant 1.250000e-01 : f32
    %9 = vector.broadcast %cst_8 : f32 to vector<128x256xf32>
    %10 = arith.mulf %9, %8 : vector<128x256xf32>
    %11 = arith.addf %3, %10 : vector<128x256xf32>
    %c1_i32 = arith.constant 1 : i32
    %c0_9 = arith.constant 0 : index
    %c0_10 = arith.constant 0 : index
    %12 = vector.load %arg4[%c0_9, %c0_10] : memref<128x128xbf16, #tpu.memory_space<vmem>>, vector<128x128xbf16>
    %13 = arith.truncf %11 : vector<128x256xf32> to vector<128x256xbf16>
    %cst_11 = arith.constant dense<0.000000e+00> : vector<128x256xf32>
    %14 = tpu.matmul %12, %13, %cst_11 {dimension_numbers = #tpu.dot_dimension_numbers<[1], [0], [0], [1], [0, 0, 1, 1], [], []>} : vector<128x128xbf16>, vector<128x256xbf16>, vector<128x256xf32> -> vector<128x256xf32>
    %15 = arith.addf %2, %14 : vector<128x256xf32>
    %16 = math.tanh %15 : vector<128x256xf32>
    %cst_12 = arith.constant 1.250000e-01 : f32
    %17 = vector.broadcast %cst_12 : f32 to vector<128x256xf32>
    %18 = arith.mulf %17, %16 : vector<128x256xf32>
    %19 = arith.addf %11, %18 : vector<128x256xf32>
    %c2_i32 = arith.constant 2 : i32
    %c0_13 = arith.constant 0 : index
    %c0_14 = arith.constant 0 : index
    %20 = vector.load %arg4[%c0_13, %c0_14] : memref<128x128xbf16, #tpu.memory_space<vmem>>, vector<128x128xbf16>
    %21 = arith.truncf %19 : vector<128x256xf32> to vector<128x256xbf16>
    %cst_15 = arith.constant dense<0.000000e+00> : vector<128x256xf32>
    %22 = tpu.matmul %20, %21, %cst_15 {dimension_numbers = #tpu.dot_dimension_numbers<[1], [0], [0], [1], [0, 0, 1, 1], [], []>} : vector<128x128xbf16>, vector<128x256xbf16>, vector<128x256xf32> -> vector<128x256xf32>
    %23 = arith.addf %2, %22 : vector<128x256xf32>
    %24 = math.tanh %23 : vector<128x256xf32>
    %cst_16 = arith.constant 1.250000e-01 : f32
    %25 = vector.broadcast %cst_16 : f32 to vector<128x256xf32>
    %26 = arith.mulf %25, %24 : vector<128x256xf32>
    %27 = arith.addf %19, %26 : vector<128x256xf32>
    %c3_i32 = arith.constant 3 : i32
    %c0_17 = arith.constant 0 : index
    %c0_18 = arith.constant 0 : index
    %28 = vector.load %arg4[%c0_17, %c0_18] : memref<128x128xbf16, #tpu.memory_space<vmem>>, vector<128x128xbf16>
    %29 = arith.truncf %27 : vector<128x256xf32> to vector<128x256xbf16>
    %cst_19 = arith.constant dense<0.000000e+00> : vector<128x256xf32>
    %30 = tpu.matmul %28, %29, %cst_19 {dimension_numbers = #tpu.dot_dimension_numbers<[1], [0], [0], [1], [0, 0, 1, 1], [], []>} : vector<128x128xbf16>, vector<128x256xbf16>, vector<128x256xf32> -> vector<128x256xf32>
    %31 = arith.addf %2, %30 : vector<128x256xf32>
    %32 = math.tanh %31 : vector<128x256xf32>
    %cst_20 = arith.constant 1.250000e-01 : f32
    %33 = vector.broadcast %cst_20 : f32 to vector<128x256xf32>
    %34 = arith.mulf %33, %32 : vector<128x256xf32>
    %35 = arith.addf %27, %34 : vector<128x256xf32>
    %c4_i32 = arith.constant 4 : i32
    %c0_21 = arith.constant 0 : index
    %c0_22 = arith.constant 0 : index
    %36 = vector.load %arg4[%c0_21, %c0_22] : memref<128x128xbf16, #tpu.memory_space<vmem>>, vector<128x128xbf16>
    %37 = arith.truncf %35 : vector<128x256xf32> to vector<128x256xbf16>
    %cst_23 = arith.constant dense<0.000000e+00> : vector<128x256xf32>
    %38 = tpu.matmul %36, %37, %cst_23 {dimension_numbers = #tpu.dot_dimension_numbers<[1], [0], [0], [1], [0, 0, 1, 1], [], []>} : vector<128x128xbf16>, vector<128x256xbf16>, vector<128x256xf32> -> vector<128x256xf32>
    %39 = arith.addf %2, %38 : vector<128x256xf32>
    %40 = math.tanh %39 : vector<128x256xf32>
    %cst_24 = arith.constant 1.250000e-01 : f32
    %41 = vector.broadcast %cst_24 : f32 to vector<128x256xf32>
    %42 = arith.mulf %41, %40 : vector<128x256xf32>
    %43 = arith.addf %35, %42 : vector<128x256xf32>
    %c5_i32 = arith.constant 5 : i32
    %c0_25 = arith.constant 0 : index
    %c0_26 = arith.constant 0 : index
    %44 = vector.load %arg4[%c0_25, %c0_26] : memref<128x128xbf16, #tpu.memory_space<vmem>>, vector<128x128xbf16>
    %45 = arith.truncf %43 : vector<128x256xf32> to vector<128x256xbf16>
    %cst_27 = arith.constant dense<0.000000e+00> : vector<128x256xf32>
    %46 = tpu.matmul %44, %45, %cst_27 {dimension_numbers = #tpu.dot_dimension_numbers<[1], [0], [0], [1], [0, 0, 1, 1], [], []>} : vector<128x128xbf16>, vector<128x256xbf16>, vector<128x256xf32> -> vector<128x256xf32>
    %47 = arith.addf %2, %46 : vector<128x256xf32>
    %48 = math.tanh %47 : vector<128x256xf32>
    %cst_28 = arith.constant 1.250000e-01 : f32
    %49 = vector.broadcast %cst_28 : f32 to vector<128x256xf32>
    %50 = arith.mulf %49, %48 : vector<128x256xf32>
    %51 = arith.addf %43, %50 : vector<128x256xf32>
    %c6_i32 = arith.constant 6 : i32
    %c0_29 = arith.constant 0 : index
    %c0_30 = arith.constant 0 : index
    %52 = vector.load %arg4[%c0_29, %c0_30] : memref<128x128xbf16, #tpu.memory_space<vmem>>, vector<128x128xbf16>
    %53 = arith.truncf %51 : vector<128x256xf32> to vector<128x256xbf16>
    %cst_31 = arith.constant dense<0.000000e+00> : vector<128x256xf32>
    %54 = tpu.matmul %52, %53, %cst_31 {dimension_numbers = #tpu.dot_dimension_numbers<[1], [0], [0], [1], [0, 0, 1, 1], [], []>} : vector<128x128xbf16>, vector<128x256xbf16>, vector<128x256xf32> -> vector<128x256xf32>
    %55 = arith.addf %2, %54 : vector<128x256xf32>
    %56 = math.tanh %55 : vector<128x256xf32>
    %cst_32 = arith.constant 1.250000e-01 : f32
    %57 = vector.broadcast %cst_32 : f32 to vector<128x256xf32>
    %58 = arith.mulf %57, %56 : vector<128x256xf32>
    %59 = arith.addf %51, %58 : vector<128x256xf32>
    %c7_i32 = arith.constant 7 : i32
    %c0_33 = arith.constant 0 : index
    %c0_34 = arith.constant 0 : index
    %60 = vector.load %arg4[%c0_33, %c0_34] : memref<128x128xbf16, #tpu.memory_space<vmem>>, vector<128x128xbf16>
    %61 = arith.truncf %59 : vector<128x256xf32> to vector<128x256xbf16>
    %cst_35 = arith.constant dense<0.000000e+00> : vector<128x256xf32>
    %62 = tpu.matmul %60, %61, %cst_35 {dimension_numbers = #tpu.dot_dimension_numbers<[1], [0], [0], [1], [0, 0, 1, 1], [], []>} : vector<128x128xbf16>, vector<128x256xbf16>, vector<128x256xf32> -> vector<128x256xf32>
    %63 = arith.addf %2, %62 : vector<128x256xf32>
    %64 = math.tanh %63 : vector<128x256xf32>
    %cst_36 = arith.constant 1.250000e-01 : f32
    %65 = vector.broadcast %cst_36 : f32 to vector<128x256xf32>
    %66 = arith.mulf %65, %64 : vector<128x256xf32>
    %67 = arith.addf %59, %66 : vector<128x256xf32>
    %c0_37 = arith.constant 0 : index
    %c0_38 = arith.constant 0 : index
    %68 = vector.load %arg5[%c0_37, %c0_38] : memref<128x256xf32, #tpu.memory_space<vmem>>, vector<128x256xf32>
    tpu.vector_store %arg5[%c0_37, %c0_38], %67 {strides = array<i32>} : memref<128x256xf32, #tpu.memory_space<vmem>>, vector<128x256xf32>,
    return
  }
  func.func @transform_0(%arg0: i32) -> (i32, i32) {
    %c0_i32 = arith.constant 0 : i32
    %c0_i32_0 = arith.constant 0 : i32
    return %c0_i32, %arg0 : i32, i32
  }
  func.func @transform_1(%arg0: i32) -> (i32, i32) {
    %c0_i32 = arith.constant 0 : i32
    %c0_i32_0 = arith.constant 0 : i32
    return %c0_i32, %arg0 : i32, i32
  }
  func.func @transform_2(%arg0: i32) -> (i32, i32) {
    %c0_i32 = arith.constant 0 : i32
    %c0_i32_0 = arith.constant 0 : i32
    %c0_i32_1 = arith.constant 0 : i32
    return %c0_i32, %c0_i32_0 : i32, i32
  }
  func.func @transform_3(%arg0: i32) -> (i32, i32) {
    %c0_i32 = arith.constant 0 : i32
    %c0_i32_0 = arith.constant 0 : i32
    %c0_i32_1 = arith.constant 0 : i32
    return %c0_i32, %c0_i32_0 : i32, i32
  }
  func.func @transform_4(%arg0: i32) -> (i32, i32) {
    %c0_i32 = arith.constant 0 : i32
    %c0_i32_0 = arith.constant 0 : i32
    return %c0_i32, %arg0 : i32, i32
  }
}

</mosaic_0001>

<llo_original>
// kernel: _export_cfm_impl.1
$region0: #{_export_cfm_impl.1}
  #allocation0 [shape = 'u32[]', space=smem, size = 0x4, offset = 0x4, fixed_abs, tag = 'smem constant byte address 0x4 - core index']
  #allocation1 [shape = 'u32[72,128]{1,0:T(1,128)}', space=vmem, size = 0x9000, scoped, tag = 'internal scratch']
  %s0 = inlined_call_operand.vmem [shape: bf16[512,512], index: 0, kind: input, shape index: {}]
  %s1 = inlined_call_operand.vmem [shape: f32[128,512], index: 1, kind: input, shape index: {}]
  %s2 = inlined_call_operand.vmem [shape: bf16[128,512], index: 2, kind: input, shape index: {}]
  %s3 = inlined_call_operand.vmem [shape: bf16[128,128], index: 3, kind: input, shape index: {}]
  %s4 = inlined_call_operand.vmem [shape: f32[128,512], index: 4, kind: output, shape index: {}]
  %s5 = sld [smem:[#allocation0]]
  $region129: #{_export_cfm_impl.1} parent=0
    _
  %s7 = ssub.s32 1, %s5
  %s8 = scalar_select 0, %s7, %s5
  $region1: #{_export_cfm_impl.1} parent=0
    #allocation2 [shape = 'u8[524288]{0}', space=vmem, size = 0x80000, scoped, tag = 'input window, operand 0']
    #allocation3 [shape = 'u8[262144]{0}', space=vmem, size = 0x40000, scoped, tag = 'input window, operand 1']
    #allocation4 [shape = 'u8[262144]{0}', space=vmem, size = 0x40000, scoped, tag = 'output window, operand 0']
    loop: start=0, step=1, limit=4
    $region2: #{_export_cfm_impl.1} parent=1 // loop_pre_header
      _
    $region3: #{_export_cfm_impl.1} parent=1 // loop_header
      %s10 = sphi 0, %s14
      %p11 = scmp.ge.s32.totalorder %s10, 4
      %s20 = sphi 0, %s22
      %s23 = sphi 0, %s20
      %s24 = sphi 0, %s23
      %s40 = sphi 0, %s24
      %s46 = sphi 0, %s48
      %s49 = sphi 0, %s46
      %s50 = sphi 0, %s49
      %s66 = sphi 0, %s50
      %s70 = sphi 0, %s70
      %s72 = sphi 0, %s70
      %s73 = sphi 0, %s72
      %s87 = sphi 0, %s73
      %s91 = sphi 0, %s91
      %s93 = sphi 0, %s91
      %s94 = sphi 0, %s93
      %s108 = sphi 0, %s94
      %s114 = sphi 0, %s116
      %s117 = sphi 0, %s114
      %s118 = sphi 0, %s117
      %s134 = sphi 0, %s118
    $region4: #{_export_cfm_impl.1} parent=1 // loop_header_branch
      %13 = sbr.rel (%p11) target = $region8
    $region5: #{_export_cfm_impl.1} parent=1 // loop_body
      %s15 = ssub.s32 %s10, 1
      %s16 = ssub.s32 %s10, 2
      %s17 = sadd.s32 %s10, 1
      %s18 = ssub.s32 %s10, %s17
      %p19 = scmp.eq.s32.totalorder %s18, 0
      %s21 = sadd.s32 %s20, 1
      %s22 = scalar_select %p19, %s20, %s21
      %p25 = pneg %p19
      %p26 = scmp.eq.s32.totalorder %s10, 1
      %p27 = por %p25, %p26
      %p28 = scmp.ne.s32.totalorder %s20, %s23
      %p29 = scmp.eq.s32.totalorder %s10, 0
      %p30 = por %p28, %p29
      %p31 = scmp.ne.s32.totalorder %s20, %s23
      %p32 = scmp.eq.s32.totalorder %s15, 1
      %p33 = por %p31, %p32
      %p34 = scmp.ne.s32.totalorder %s23, %s24
      %p35 = scmp.eq.s32.totalorder %s15, 0
      %p36 = por %p34, %p35
      %p37 = scmp.ne.s32.totalorder %s23, %s24
      %p38 = scmp.eq.s32.totalorder %s16, 1
      %p39 = por %p37, %p38
      %p41 = scmp.ne.s32.totalorder %s24, %s40
      %p42 = scmp.eq.s32.totalorder %s16, 0
      %p43 = por %p41, %p42
      %s44 = ssub.s32 %s10, %s17
      %p45 = scmp.eq.s32.totalorder %s44, 0
      %s47 = sadd.s32 %s46, 1
      %s48 = scalar_select %p45, %s46, %s47
      %p51 = pneg %p45
      %p52 = scmp.eq.s32.totalorder %s10, 1
      %p53 = por %p51, %p52
      %p54 = scmp.ne.s32.totalorder %s46, %s49
      %p55 = scmp.eq.s32.totalorder %s10, 0
      %p56 = por %p54, %p55
      %p57 = scmp.ne.s32.totalorder %s46, %s49
      %p58 = scmp.eq.s32.totalorder %s15, 1
      %p59 = por %p57, %p58
      %p60 = scmp.ne.s32.totalorder %s49, %s50
      %p61 = scmp.eq.s32.totalorder %s15, 0
      %p62 = por %p60, %p61
      %p63 = scmp.ne.s32.totalorder %s49, %s50
      %p64 = scmp.eq.s32.totalorder %s16, 1
      %p65 = por %p63, %p64
      %p67 = scmp.ne.s32.totalorder %s50, %s66
      %p68 = scmp.eq.s32.totalorder %s16, 0
      %p69 = por %p67, %p68
      %s71 = sadd.s32 %s70, 1
      %p74 = scmp.eq.s32.totalorder %s10, 1
      %p75 = scmp.ne.s32.totalorder %s70, %s72
      %p76 = scmp.eq.s32.totalorder %s10, 0
      %p77 = por %p75, %p76
      %p78 = scmp.ne.s32.totalorder %s70, %s72
      %p79 = scmp.eq.s32.totalorder %s15, 1
      %p80 = por %p78, %p79
      %p81 = scmp.ne.s32.totalorder %s72, %s73
      %p82 = scmp.eq.s32.totalorder %s15, 0
      %p83 = por %p81, %p82
      %p84 = scmp.ne.s32.totalorder %s72, %s73
      %p85 = scmp.eq.s32.totalorder %s16, 1
      %p86 = por %p84, %p85
      %p88 = scmp.ne.s32.totalorder %s73, %s87
      %p89 = scmp.eq.s32.totalorder %s16, 0
      %p90 = por %p88, %p89
      %s92 = sadd.s32 %s91, 1
      %p95 = scmp.eq.s32.totalorder %s10, 1
      %p96 = scmp.ne.s32.totalorder %s91, %s93
      %p97 = scmp.eq.s32.totalorder %s10, 0
      %p98 = por %p96, %p97
      %p99 = scmp.ne.s32.totalorder %s91, %s93
      %p100 = scmp.eq.s32.totalorder %s15, 1
      %p101 = por %p99, %p100
      %p102 = scmp.ne.s32.totalorder %s93, %s94
      %p103 = scmp.eq.s32.totalorder %s15, 0
      %p104 = por %p102, %p103
      %p105 = scmp.ne.s32.totalorder %s93, %s94
      %p106 = scmp.eq.s32.totalorder %s16, 1
      %p107 = por %p105, %p106
      %p109 = scmp.ne.s32.totalorder %s94, %s108
      %p110 = scmp.eq.s32.totalorder %s16, 0
      %p111 = por %p109, %p110
      %s112 = ssub.s32 %s10, %s17
      %p113 = scmp.eq.s32.totalorder %s112, 0
      %s115 = sadd.s32 %s114, 1
      %s116 = scalar_select %p113, %s114, %s115
      %p119 = pneg %p113
      %p120 = scmp.eq.s32.totalorder %s10, 1
      %p121 = por %p119, %p120
      %p122 = scmp.ne.s32.totalorder %s114, %s117
      %p123 = scmp.eq.s32.totalorder %s10, 0
      %p124 = por %p122, %p123
      %p125 = scmp.ne.s32.totalorder %s114, %s117
      %p126 = scmp.eq.s32.totalorder %s15, 1
      %p127 = por %p125, %p126
      %p128 = scmp.ne.s32.totalorder %s117, %s118
      %p129 = scmp.eq.s32.totalorder %s15, 0
      %p130 = por %p128, %p129
      %p131 = scmp.ne.s32.totalorder %s117, %s118
      %p132 = scmp.eq.s32.totalorder %s16, 1
      %p133 = por %p131, %p132
      %p135 = scmp.ne.s32.totalorder %s118, %s134
      %p136 = scmp.eq.s32.totalorder %s16, 0
      %p137 = por %p135, %p136
      %p138 = scmp.le.s32.totalorder 1, %s10
      %p139 = scmp.lt.s32.totalorder %s10, 3
      %p140 = pnand %p138, %p139
      %p141 = pneg %p140
      // Predicated region
      $region9: #{_export_cfm_impl.1} parent=5 // pred_check
        _
      $region10: #{_export_cfm_impl.1} parent=5 // pred_check_branch
        %143 = sbr.rel (%p140) target = $region12
      $region11: #{_export_cfm_impl.1} parent=5 // pred_region
        %s144 = ssub.s32 %s10, 1
        // Predicated region
        $region13: #{_export_cfm_impl.1} parent=11 // pred_check
          %p145 = pneg %p83
        $region14: #{_export_cfm_impl.1} parent=11 // pred_check_branch
          %147 = sbr.rel (%p145) target = $region16
        $region15: #{_export_cfm_impl.1} parent=11 // pred_region
          _
        $region16: #{_export_cfm_impl.1} parent=11 // pred_fallthru
          _
        // Predicated region
        $region17: #{_export_cfm_impl.1} parent=11 // pred_check
          %p148 = pneg %p104
        $region18: #{_export_cfm_impl.1} parent=11 // pred_check_branch
          %150 = sbr.rel (%p148) target = $region20
        $region19: #{_export_cfm_impl.1} parent=11 // pred_region
          _
        $region20: #{_export_cfm_impl.1} parent=11 // pred_fallthru
          _
      $region12: #{_export_cfm_impl.1} parent=5 // pred_fallthru
        _
      %p151 = scmp.lt.s32.totalorder %s10, 2
      // Predicated region
      $region21: #{_export_cfm_impl.1} parent=5 // pred_check
        %p152 = pneg %p151
      $region22: #{_export_cfm_impl.1} parent=5 // pred_check_branch
        %154 = sbr.rel (%p152) target = $region24
      $region23: #{_export_cfm_impl.1} parent=5 // pred_region
        // Predicated region
        $region25: #{_export_cfm_impl.1} parent=23 // pred_check
          %p155 = pneg %p30
        $region26: #{_export_cfm_impl.1} parent=23 // pred_check_branch
          %157 = sbr.rel (%p155) target = $region28
        $region27: #{_export_cfm_impl.1} parent=23 // pred_region
          %s158 = sand.u32 %s20, 1
          %s159 = sand.u32 %s20, 1
          %s160 = smul.addr %s159, 512
          %s161 = scalar_lea.vmem [#allocation2], %s160
          %s162 = smul.u32 2, %s10
          %s163 = smul.addr %s162, 4
          %s164 = scalar_lea.vmem %s0, %s163
          // Predicated region
          $region29: #{_export_cfm_impl.1} parent=27 // pred_check
            _
          $region30: #{_export_cfm_impl.1} parent=27 // pred_check_branch
            %166 = sbr.rel (0) target = $region32
          $region31: #{_export_cfm_impl.1} parent=27 // pred_region
            // Predicated region
            $region33: #{_export_cfm_impl.1} parent=31 // pred_check
              _
            $region34: #{_export_cfm_impl.1} parent=31 // pred_check_branch
              %168 = sbr.rel (0) target = $region36
            $region35: #{_export_cfm_impl.1} parent=31 // pred_region
              // Predicated region
              $region48: #{_export_cfm_impl.1} parent=35 // pred_check
                _
              $region49: #{_export_cfm_impl.1} parent=35 // pred_check_branch
                %310 = sbr.rel (0) target = $region51
              $region50: #{_export_cfm_impl.1} parent=35 // pred_region
                loop: start=0, step=1, limit=1
                $region52: #{_export_cfm_impl.1} parent=50 // loop_pre_header
                  _
                $region53: #{_export_cfm_impl.1} parent=50 // loop_header
                  %s312 = sphi 0, %s316
                  %p313 = scmp.ge.s32.totalorder %s312, 1
                  %s317 = sphi %s164, %s164
                  %s318 = sphi %s161, %s161
                $region54: #{_export_cfm_impl.1} parent=50 // loop_header_branch
                  %315 = sbr.rel (%p313) target = $region58
                $region55: #{_export_cfm_impl.1} parent=50 // loop_body
                  %v319 = vld [vmem:[%s317] sm:$0xff]
                  %320 = vst [vmem:[%s318] sm:$0xff] %v319
                  %v321 = vld [vmem:[%s317 + $0x10] sm:$0xff]
                  %322 = vst [vmem:[%s318 + $0x8] sm:$0xff] %v321
                  %v323 = vld [vmem:[%s317 + $0x20] sm:$0xff]
                  %324 = vst [vmem:[%s318 + $0x10] sm:$0xff] %v323
                  %v325 = vld [vmem:[%s317 + $0x30] sm:$0xff]
                  %326 = vst [vmem:[%s318 + $0x18] sm:$0xff] %v325
                  %v327 = vld [vmem:[%s317 + $0x40] sm:$0xff]
                  %328 = vst [vmem:[%s318 + $0x20] sm:$0xff] %v327
                  %v329 = vld [vmem:[%s317 + $0x50] sm:$0xff]
                  %330 = vst [vmem:[%s318 + $0x28] sm:$0xff] %v329
                  %v331 = vld [vmem:[%s317 + $0x60] sm:$0xff]
                  %332 = vst [vmem:[%s318 + $0x30] sm:$0xff] %v331
                  %v333 = vld [vmem:[%s317 + $0x70] sm:$0xff]
                  %334 = vst [vmem:[%s318 + $0x38] sm:$0xff] %v333
                  %v335 = vld [vmem:[%s317 + $0x80] sm:$0xff]
                  %336 = vst [vmem:[%s318 + $0x40] sm:$0xff] %v335
                  %v337 = vld [vmem:[%s317 + $0x90] sm:$0xff]
                  %338 = vst [vmem:[%s318 + $0x48] sm:$0xff] %v337
                  %v339 = vld [vmem:[%s317 + $0xa0] sm:$0xff]
                  %340 = vst [vmem:[%s318 + $0x50] sm:$0xff] %v339
                  %v341 = vld [vmem:[%s317 + $0xb0] sm:$0xff]
                  %342 = vst [vmem:[%s318 + $0x58] sm:$0xff] %v341
                  %v343 = vld [vmem:[%s317 + $0xc0] sm:$0xff]
                  %344 = vst [vmem:[%s318 + $0x60] sm:$0xff] %v343
                  %v345 = vld [vmem:[%s317 + $0xd0] sm:$0xff]
                  %346 = vst [vmem:[%s318 + $0x68] sm:$0xff] %v345
                  %v347 = vld [vmem:[%s317 + $0xe0] sm:$0xff]
                  %348 = vst [vmem:[%s318 + $0x70] sm:$0xff] %v347
                  %v349 = vld [vmem:[%s317 + $0xf0] sm:$0xff]
                  %350 = vst [vmem:[%s318 + $0x78] sm:$0xff] %v349
                  %v351 = vld [vmem:[%s317 + $0x100] sm:$0xff]
                  %352 = vst [vmem:[%s318 + $0x80] sm:$0xff] %v351
                  %v353 = vld [vmem:[%s317 + $0x110] sm:$0xff]
                  %354 = vst [vmem:[%s318 + $0x88] sm:$0xff] %v353
                  %v355 = vld [vmem:[%s317 + $0x120] sm:$0xff]
                  %356 = vst [vmem:[%s318 + $0x90] sm:$0xff] %v355
                  %v357 = vld [vmem:[%s317 + $0x130] sm:$0xff]
                  %358 = vst [vmem:[%s318 + $0x98] sm:$0xff] %v357
                  %v359 = vld [vmem:[%s317 + $0x140] sm:$0xff]
                  %360 = vst [vmem:[%s318 + $0xa0] sm:$0xff] %v359
                  %v361 = vld [vmem:[%s317 + $0x150] sm:$0xff]
                  %362 = vst [vmem:[%s318 + $0xa8] sm:$0xff] %v361
                  %v363 = vld [vmem:[%s317 + $0x160] sm:$0xff]
                  %364 = vst [vmem:[%s318 + $0xb0] sm:$0xff] %v363
                  %v365 = vld [vmem:[%s317 + $0x170] sm:$0xff]
                  %366 = vst [vmem:[%s318 + $0xb8] sm:$0xff] %v365
                  %v367 = vld [vmem:[%s317 + $0x180] sm:$0xff]
                  %368 = vst [vmem:[%s318 + $0xc0] sm:$0xff] %v367
                  %v369 = vld [vmem:[%s317 + $0x190] sm:$0xff]
                  %370 = vst [vmem:[%s318 + $0xc8] sm:$0xff] %v369
                  %v371 = vld [vmem:[%s317 + $0x1a0] sm:$0xff]
                  %372 = vst [vmem:[%s318 + $0xd0] sm:$0xff] %v371
                  %v373 = vld [vmem:[%s317 + $0x1b0] sm:$0xff]
                  %374 = vst [vmem:[%s318 + $0xd8] sm:$0xff] %v373
                  %v375 = vld [vmem:[%s317 + $0x1c0] sm:$0xff]
                  %376 = vst [vmem:[%s318 + $0xe0] sm:$0xff] %v375
                  %v377 = vld [vmem:[%s317 + $0x1d0] sm:$0xff]
                  %378 = vst [vmem:[%s318 + $0xe8] sm:$0xff] %v377
                  %v379 = vld [vmem:[%s317 + $0x1e0] sm:$0xff]
                  %380 = vst [vmem:[%s318 + $0xf0] sm:$0xff] %v379
                  %v381 = vld [vmem:[%s317 + $0x1f0] sm:$0xff]
                  %382 = vst [vmem:[%s318 + $0xf8] sm:$0xff] %v381
                  %v383 = vld [vmem:[%s317 + $0x200] sm:$0xff]
                  %384 = vst [vmem:[%s318 + $0x100] sm:$0xff] %v383
                  %v385 = vld [vmem:[%s317 + $0x210] sm:$0xff]
                  %386 = vst [vmem:[%s318 + $0x108] sm:$0xff] %v385
                  %v387 = vld [vmem:[%s317 + $0x220] sm:$0xff]
                  %388 = vst [vmem:[%s318 + $0x110] sm:$0xff] %v387
                  %v389 = vld [vmem:[%s317 + $0x230] sm:$0xff]
                  %390 = vst [vmem:[%s318 + $0x118] sm:$0xff] %v389
                  %v391 = vld [vmem:[%s317 + $0x240] sm:$0xff]
                  %392 = vst [vmem:[%s318 + $0x120] sm:$0xff] %v391
                  %v393 = vld [vmem:[%s317 + $0x250] sm:$0xff]
                  %394 = vst [vmem:[%s318 + $0x128] sm:$0xff] %v393
                  %v395 = vld [vmem:[%s317 + $0x260] sm:$0xff]
                  %396 = vst [vmem:[%s318 + $0x130] sm:$0xff] %v395
                  %v397 = vld [vmem:[%s317 + $0x270] sm:$0xff]
                  %398 = vst [vmem:[%s318 + $0x138] sm:$0xff] %v397
                  %v399 = vld [vmem:[%s317 + $0x280] sm:$0xff]
                  %400 = vst [vmem:[%s318 + $0x140] sm:$0xff] %v399
                  %v401 = vld [vmem:[%s317 + $0x290] sm:$0xff]
                  %402 = vst [vmem:[%s318 + $0x148] sm:$0xff] %v401
                  %v403 = vld [vmem:[%s317 + $0x2a0] sm:$0xff]
                  %404 = vst [vmem:[%s318 + $0x150] sm:$0xff] %v403
                  %v405 = vld [vmem:[%s317 + $0x2b0] sm:$0xff]
                  %406 = vst [vmem:[%s318 + $0x158] sm:$0xff] %v405
                  %v407 = vld [vmem:[%s317 + $0x2c0] sm:$0xff]
                  %408 = vst [vmem:[%s318 + $0x160] sm:$0xff] %v407
                  %v409 = vld [vmem:[%s317 + $0x2d0] sm:$0xff]
                  %410 = vst [vmem:[%s318 + $0x168] sm:$0xff] %v409
                  %v411 = vld [vmem:[%s317 + $0x2e0] sm:$0xff]
                  %412 = vst [vmem:[%s318 + $0x170] sm:$0xff] %v411
                  %v413 = vld [vmem:[%s317 + $0x2f0] sm:$0xff]
                  %414 = vst [vmem:[%s318 + $0x178] sm:$0xff] %v413
                  %v415 = vld [vmem:[%s317 + $0x300] sm:$0xff]
                  %416 = vst [vmem:[%s318 + $0x180] sm:$0xff] %v415
                  %v417 = vld [vmem:[%s317 + $0x310] sm:$0xff]
                  %418 = vst [vmem:[%s318 + $0x188] sm:$0xff] %v417
                  %v419 = vld [vmem:[%s317 + $0x320] sm:$0xff]
                  %420 = vst [vmem:[%s318 + $0x190] sm:$0xff] %v419
                  %v421 = vld [vmem:[%s317 + $0x330] sm:$0xff]
                  %422 = vst [vmem:[%s318 + $0x198] sm:$0xff] %v421
                  %v423 = vld [vmem:[%s317 + $0x340] sm:$0xff]
                  %424 = vst [vmem:[%s318 + $0x1a0] sm:$0xff] %v423
                  %v425 = vld [vmem:[%s317 + $0x350] sm:$0xff]
                  %426 = vst [vmem:[%s318 + $0x1a8] sm:$0xff] %v425
                  %v427 = vld [vmem:[%s317 + $0x360] sm:$0xff]
                  %428 = vst [vmem:[%s318 + $0x1b0] sm:$0xff] %v427
                  %v429 = vld [vmem:[%s317 + $0x370] sm:$0xff]
                  %430 = vst [vmem:[%s318 + $0x1b8] sm:$0xff] %v429
                  %v431 = vld [vmem:[%s317 + $0x380] sm:$0xff]
                  %432 = vst [vmem:[%s318 + $0x1c0] sm:$0xff] %v431
                  %v433 = vld [vmem:[%s317 + $0x390] sm:$0xff]
                  %434 = vst [vmem:[%s318 + $0x1c8] sm:$0xff] %v433
                  %v435 = vld [vmem:[%s317 + $0x3a0] sm:$0xff]
                  %436 = vst [vmem:[%s318 + $0x1d0] sm:$0xff] %v435
                  %v437 = vld [vmem:[%s317 + $0x3b0] sm:$0xff]
                  %438 = vst [vmem:[%s318 + $0x1d8] sm:$0xff] %v437
                  %v439 = vld [vmem:[%s317 + $0x3c0] sm:$0xff]
                  %440 = vst [vmem:[%s318 + $0x1e0] sm:$0xff] %v439
                  %v441 = vld [vmem:[%s317 + $0x3d0] sm:$0xff]
                  %442 = vst [vmem:[%s318 + $0x1e8] sm:$0xff] %v441
                  %v443 = vld [vmem:[%s317 + $0x3e0] sm:$0xff]
                  %444 = vst [vmem:[%s318 + $0x1f0] sm:$0xff] %v443
                  %v445 = vld [vmem:[%s317 + $0x3f0] sm:$0xff]
                  %446 = vst [vmem:[%s318 + $0x1f8] sm:$0xff] %v445
                $region56: #{_export_cfm_impl.1} parent=50 // loop_footer
                  %s316 = sadd.s32 1, %s312
                $region57: #{_export_cfm_impl.1} parent=50 // loop_footer_branch
                  %311 = sbr.rel target = $region53
                $region58: #{_export_cfm_impl.1} parent=50 // loop_exit
                  _
              $region51: #{_export_cfm_impl.1} parent=35 // pred_fallthru
                _
              // Predicated region
              $region59: #{_export_cfm_impl.1} parent=35 // pred_check
                _
              $region60: #{_export_cfm_impl.1} parent=35 // pred_check_branch
                %448 = sbr.rel target = $region62
              $region61: #{_export_cfm_impl.1} parent=35 // pred_region
                _
              $region62: #{_export_cfm_impl.1} parent=35 // pred_fallthru
                _
            $region36: #{_export_cfm_impl.1} parent=31 // pred_fallthru
              _
            // Predicated region
            $region37: #{_export_cfm_impl.1} parent=31 // pred_check
              _
            $region38: #{_export_cfm_impl.1} parent=31 // pred_check_branch
              %170 = sbr.rel target = $region40
            $region39: #{_export_cfm_impl.1} parent=31 // pred_region
              %s172 = ssub.s32 256, 1
              loop: start=0, step=1, limit=1
              $region41: #{_export_cfm_impl.1} parent=39 // loop_pre_header
                _
              $region42: #{_export_cfm_impl.1} parent=39 // loop_header
                %s174 = sphi 0, %s178
                %p175 = scmp.ge.s32.totalorder %s174, 1
                %s179 = sphi %s164, %s164
                %s180 = sphi %s161, %s161
              $region43: #{_export_cfm_impl.1} parent=39 // loop_header_branch
                %177 = sbr.rel (%p175) target = $region47
              $region44: #{_export_cfm_impl.1} parent=39 // loop_body
                %v181 = vld [vmem:[%s179] sm:%s172]
                %182 = vst [vmem:[%s180] sm:%s172] %v181
                %v183 = vld [vmem:[%s179 + $0x10] sm:%s172]
                %184 = vst [vmem:[%s180 + $0x8] sm:%s172] %v183
                %v185 = vld [vmem:[%s179 + $0x20] sm:%s172]
                %186 = vst [vmem:[%s180 + $0x10] sm:%s172] %v185
                %v187 = vld [vmem:[%s179 + $0x30] sm:%s172]
                %188 = vst [vmem:[%s180 + $0x18] sm:%s172] %v187
                %v189 = vld [vmem:[%s179 + $0x40] sm:%s172]
                %190 = vst [vmem:[%s180 + $0x20] sm:%s172] %v189
                %v191 = vld [vmem:[%s179 + $0x50] sm:%s172]
                %192 = vst [vmem:[%s180 + $0x28] sm:%s172] %v191
                %v193 = vld [vmem:[%s179 + $0x60] sm:%s172]
                %194 = vst [vmem:[%s180 + $0x30] sm:%s172] %v193
                %v195 = vld [vmem:[%s179 + $0x70] sm:%s172]
                %196 = vst [vmem:[%s180 + $0x38] sm:%s172] %v195
                %v197 = vld [vmem:[%s179 + $0x80] sm:%s172]
                %198 = vst [vmem:[%s180 + $0x40] sm:%s172] %v197
                %v199 = vld [vmem:[%s179 + $0x90] sm:%s172]
                %200 = vst [vmem:[%s180 + $0x48] sm:%s172] %v199
                %v201 = vld [vmem:[%s179 + $0xa0] sm:%s172]
                %202 = vst [vmem:[%s180 + $0x50] sm:%s172] %v201
                %v203 = vld [vmem:[%s179 + $0xb0] sm:%s172]
                %204 = vst [vmem:[%s180 + $0x58] sm:%s172] %v203
                %v205 = vld [vmem:[%s179 + $0xc0] sm:%s172]
                %206 = vst [vmem:[%s180 + $0x60] sm:%s172] %v205
                %v207 = vld [vmem:[%s179 + $0xd0] sm:%s172]
                %208 = vst [vmem:[%s180 + $0x68] sm:%s172] %v207
                %v209 = vld [vmem:[%s179 + $0xe0] sm:%s172]
                %210 = vst [vmem:[%s180 + $0x70] sm:%s172] %v209
                %v211 = vld [vmem:[%s179 + $0xf0] sm:%s172]
                %212 = vst [vmem:[%s180 + $0x78] sm:%s172] %v211
                %v213 = vld [vmem:[%s179 + $0x100] sm:%s172]
                %214 = vst [vmem:[%s180 + $0x80] sm:%s172] %v213
                %v215 = vld [vmem:[%s179 + $0x110] sm:%s172]
                %216 = vst [vmem:[%s180 + $0x88] sm:%s172] %v215
                %v217 = vld [vmem:[%s179 + $0x120] sm:%s172]
                %218 = vst [vmem:[%s180 + $0x90] sm:%s172] %v217
                %v219 = vld [vmem:[%s179 + $0x130] sm:%s172]
                %220 = vst [vmem:[%s180 + $0x98] sm:%s172] %v219
                %v221 = vld [vmem:[%s179 + $0x140] sm:%s172]
                %222 = vst [vmem:[%s180 + $0xa0] sm:%s172] %v221
                %v223 = vld [vmem:[%s179 + $0x150] sm:%s172]
                %224 = vst [vmem:[%s180 + $0xa8] sm:%s172] %v223
                %v225 = vld [vmem:[%s179 + $0x160] sm:%s172]
                %226 = vst [vmem:[%s180 + $0xb0] sm:%s172] %v225
                %v227 = vld [vmem:[%s179 + $0x170] sm:%s172]
                %228 = vst [vmem:[%s180 + $0xb8] sm:%s172] %v227
                %v229 = vld [vmem:[%s179 + $0x180] sm:%s172]
                %230 = vst [vmem:[%s180 + $0xc0] sm:%s172] %v229
                %v231 = vld [vmem:[%s179 + $0x190] sm:%s172]
                %232 = vst [vmem:[%s180 + $0xc8] sm:%s172] %v231
                %v233 = vld [vmem:[%s179 + $0x1a0] sm:%s172]
                %234 = vst [vmem:[%s180 + $0xd0] sm:%s172] %v233
                %v235 = vld [vmem:[%s179 + $0x1b0] sm:%s172]
                %236 = vst [vmem:[%s180 + $0xd8] sm:%s172] %v235
                %v237 = vld [vmem:[%s179 + $0x1c0] sm:%s172]
                %238 = vst [vmem:[%s180 + $0xe0] sm:%s172] %v237
                %v239 = vld [vmem:[%s179 + $0x1d0] sm:%s172]
                %240 = vst [vmem:[%s180 + $0xe8] sm:%s172] %v239
                %v241 = vld [vmem:[%s179 + $0x1e0] sm:%s172]
                %242 = vst [vmem:[%s180 + $0xf0] sm:%s172] %v241
                %v243 = vld [vmem:[%s179 + $0x1f0] sm:%s172]
                %244 = vst [vmem:[%s180 + $0xf8] sm:%s172] %v243
                %v245 = vld [vmem:[%s179 + $0x200] sm:%s172]
                %246 = vst [vmem:[%s180 + $0x100] sm:%s172] %v245
                %v247 = vld [vmem:[%s179 + $0x210] sm:%s172]
                %248 = vst [vmem:[%s180 + $0x108] sm:%s172] %v247
                %v249 = vld [vmem:[%s179 + $0x220] sm:%s172]
                %250 = vst [vmem:[%s180 + $0x110] sm:%s172] %v249
                %v251 = vld [vmem:[%s179 + $0x230] sm:%s172]
                %252 = vst [vmem:[%s180 + $0x118] sm:%s172] %v251
                %v253 = vld [vmem:[%s179 + $0x240] sm:%s172]
                %254 = vst [vmem:[%s180 + $0x120] sm:%s172] %v253
                %v255 = vld [vmem:[%s179 + $0x250] sm:%s172]
                %256 = vst [vmem:[%s180 + $0x128] sm:%s172] %v255
                %v257 = vld [vmem:[%s179 + $0x260] sm:%s172]
                %258 = vst [vmem:[%s180 + $0x130] sm:%s172] %v257
                %v259 = vld [vmem:[%s179 + $0x270] sm:%s172]
                %260 = vst [vmem:[%s180 + $0x138] sm:%s172] %v259
                %v261 = vld [vmem:[%s179 + $0x280] sm:%s172]
                %262 = vst [vmem:[%s180 + $0x140] sm:%s172] %v261
                %v263 = vld [vmem:[%s179 + $0x290] sm:%s172]
                %264 = vst [vmem:[%s180 + $0x148] sm:%s172] %v263
                %v265 = vld [vmem:[%s179 + $0x2a0] sm:%s172]
                %266 = vst [vmem:[%s180 + $0x150] sm:%s172] %v265
                %v267 = vld [vmem:[%s179 + $0x2b0] sm:%s172]
                %268 = vst [vmem:[%s180 + $0x158] sm:%s172] %v267
                %v269 = vld [vmem:[%s179 + $0x2c0] sm:%s172]
                %270 = vst [vmem:[%s180 + $0x160] sm:%s172] %v269
                %v271 = vld [vmem:[%s179 + $0x2d0] sm:%s172]
                %272 = vst [vmem:[%s180 + $0x168] sm:%s172] %v271
                %v273 = vld [vmem:[%s179 + $0x2e0] sm:%s172]
                %274 = vst [vmem:[%s180 + $0x170] sm:%s172] %v273
                %v275 = vld [vmem:[%s179 + $0x2f0] sm:%s172]
                %276 = vst [vmem:[%s180 + $0x178] sm:%s172] %v275
                %v277 = vld [vmem:[%s179 + $0x300] sm:%s172]
                %278 = vst [vmem:[%s180 + $0x180] sm:%s172] %v277
                %v279 = vld [vmem:[%s179 + $0x310] sm:%s172]
                %280 = vst [vmem:[%s180 + $0x188] sm:%s172] %v279
                %v281 = vld [vmem:[%s179 + $0x320] sm:%s172]
                %282 = vst [vmem:[%s180 + $0x190] sm:%s172] %v281
                %v283 = vld [vmem:[%s179 + $0x330] sm:%s172]
                %284 = vst [vmem:[%s180 + $0x198] sm:%s172] %v283
                %v285 = vld [vmem:[%s179 + $0x340] sm:%s172]
                %286 = vst [vmem:[%s180 + $0x1a0] sm:%s172] %v285
                %v287 = vld [vmem:[%s179 + $0x350] sm:%s172]
                %288 = vst [vmem:[%s180 + $0x1a8] sm:%s172] %v287
                %v289 = vld [vmem:[%s179 + $0x360] sm:%s172]
                %290 = vst [vmem:[%s180 + $0x1b0] sm:%s172] %v289
                %v291 = vld [vmem:[%s179 + $0x370] sm:%s172]
                %292 = vst [vmem:[%s180 + $0x1b8] sm:%s172] %v291
                %v293 = vld [vmem:[%s179 + $0x380] sm:%s172]
                %294 = vst [vmem:[%s180 + $0x1c0] sm:%s172] %v293
                %v295 = vld [vmem:[%s179 + $0x390] sm:%s172]
                %296 = vst [vmem:[%s180 + $0x1c8] sm:%s172] %v295
                %v297 = vld [vmem:[%s179 + $0x3a0] sm:%s172]
                %298 = vst [vmem:[%s180 + $0x1d0] sm:%s172] %v297
                %v299 = vld [vmem:[%s179 + $0x3b0] sm:%s172]
                %300 = vst [vmem:[%s180 + $0x1d8] sm:%s172] %v299
                %v301 = vld [vmem:[%s179 + $0x3c0] sm:%s172]
                %302 = vst [vmem:[%s180 + $0x1e0] sm:%s172] %v301
                %v303 = vld [vmem:[%s179 + $0x3d0] sm:%s172]
                %304 = vst [vmem:[%s180 + $0x1e8] sm:%s172] %v303
                %v305 = vld [vmem:[%s179 + $0x3e0] sm:%s172]
                %306 = vst [vmem:[%s180 + $0x1f0] sm:%s172] %v305
                %v307 = vld [vmem:[%s179 + $0x3f0] sm:%s172]
                %308 = vst [vmem:[%s180 + $0x1f8] sm:%s172] %v307
              $region45: #{_export_cfm_impl.1} parent=39 // loop_footer
                %s178 = sadd.s32 1, %s174
              $region46: #{_export_cfm_impl.1} parent=39 // loop_footer_branch
                %173 = sbr.rel target = $region42
              $region47: #{_export_cfm_impl.1} parent=39 // loop_exit
                _
            $region40: #{_export_cfm_impl.1} parent=31 // pred_fallthru
              _
          $region32: #{_export_cfm_impl.1} parent=27 // pred_fallthru
            _
          %449 = vnop
        $region28: #{_export_cfm_impl.1} parent=23 // pred_fallthru
          _
        // Predicated region
        $region63: #{_export_cfm_impl.1} parent=23 // pred_check
          %p450 = pneg %p56
        $region64: #{_export_cfm_impl.1} parent=23 // pred_check_branch
          %452 = sbr.rel (%p450) target = $region66
        $region65: #{_export_cfm_impl.1} parent=23 // pred_region
          %s453 = sand.u32 %s46, 1
          %s454 = sand.u32 %s46, 1
          %s455 = smul.addr %s454, 256
          %s456 = scalar_lea.vmem [#allocation3], %s455
          %s457 = smul.u32 2, %s10
          %s458 = smul.addr %s457, 8
          %s459 = scalar_lea.vmem %s1, %s458
          // Predicated region
          $region67: #{_export_cfm_impl.1} parent=65 // pred_check
            _
          $region68: #{_export_cfm_impl.1} parent=65 // pred_check_branch
            %461 = sbr.rel (0) target = $region70
          $region69: #{_export_cfm_impl.1} parent=65 // pred_region
            // Predicated region
            $region71: #{_export_cfm_impl.1} parent=69 // pred_check
              _
            $region72: #{_export_cfm_impl.1} parent=69 // pred_check_branch
              %463 = sbr.rel (0) target = $region74
            $region73: #{_export_cfm_impl.1} parent=69 // pred_region
              loop: start=0, step=1, limit=1
              $region75: #{_export_cfm_impl.1} parent=73 // loop_pre_header
                _
              $region76: #{_export_cfm_impl.1} parent=73 // loop_header
                %s465 = sphi 0, %s469
                %p466 = scmp.ge.s32.totalorder %s465, 1
                %s470 = sphi %s459, %s459
                %s471 = sphi %s456, %s456
              $region77: #{_export_cfm_impl.1} parent=73 // loop_header_branch
                %468 = sbr.rel (%p466) target = $region81
              $region78: #{_export_cfm_impl.1} parent=73 // loop_body
                %v472 = vld [vmem:[%s470] sm:$0xff]
                %473 = vst [vmem:[%s471] sm:$0xff] %v472
                %v474 = vld [vmem:[%s470 + $0x8] sm:$0xff]
                %475 = vst [vmem:[%s471 + $0x8] sm:$0xff] %v474
                %v476 = vld [vmem:[%s470 + $0x20] sm:$0xff]
                %477 = vst [vmem:[%s471 + $0x10] sm:$0xff] %v476
                %v478 = vld [vmem:[%s470 + $0x28] sm:$0xff]
                %479 = vst [vmem:[%s471 + $0x18] sm:$0xff] %v478
                %v480 = vld [vmem:[%s470 + $0x40] sm:$0xff]
                %481 = vst [vmem:[%s471 + $0x20] sm:$0xff] %v480
                %v482 = vld [vmem:[%s470 + $0x48] sm:$0xff]
                %483 = vst [vmem:[%s471 + $0x28] sm:$0xff] %v482
                %v484 = vld [vmem:[%s470 + $0x60] sm:$0xff]
                %485 = vst [vmem:[%s471 + $0x30] sm:$0xff] %v484
                %v486 = vld [vmem:[%s470 + $0x68] sm:$0xff]
                %487 = vst [vmem:[%s471 + $0x38] sm:$0xff] %v486
                %v488 = vld [vmem:[%s470 + $0x80] sm:$0xff]
                %489 = vst [vmem:[%s471 + $0x40] sm:$0xff] %v488
                %v490 = vld [vmem:[%s470 + $0x88] sm:$0xff]
                %491 = vst [vmem:[%s471 + $0x48] sm:$0xff] %v490
                %v492 = vld [vmem:[%s470 + $0xa0] sm:$0xff]
                %493 = vst [vmem:[%s471 + $0x50] sm:$0xff] %v492
                %v494 = vld [vmem:[%s470 + $0xa8] sm:$0xff]
                %495 = vst [vmem:[%s471 + $0x58] sm:$0xff] %v494
                %v496 = vld [vmem:[%s470 + $0xc0] sm:$0xff]
                %497 = vst [vmem:[%s471 + $0x60] sm:$0xff] %v496
                %v498 = vld [vmem:[%s470 + $0xc8] sm:$0xff]
                %499 = vst [vmem:[%s471 + $0x68] sm:$0xff] %v498
                %v500 = vld [vmem:[%s470 + $0xe0] sm:$0xff]
                %501 = vst [vmem:[%s471 + $0x70] sm:$0xff] %v500
                %v502 = vld [vmem:[%s470 + $0xe8] sm:$0xff]
                %503 = vst [vmem:[%s471 + $0x78] sm:$0xff] %v502
                %v504 = vld [vmem:[%s470 + $0x100] sm:$0xff]
                %505 = vst [vmem:[%s471 + $0x80] sm:$0xff] %v504
                %v506 = vld [vmem:[%s470 + $0x108] sm:$0xff]
                %507 = vst [vmem:[%s471 + $0x88] sm:$0xff] %v506
                %v508 = vld [vmem:[%s470 + $0x120] sm:$0xff]
                %509 = vst [vmem:[%s471 + $0x90] sm:$0xff] %v508
                %v510 = vld [vmem:[%s470 + $0x128] sm:$0xff]
                %511 = vst [vmem:[%s471 + $0x98] sm:$0xff] %v510
                %v512 = vld [vmem:[%s470 + $0x140] sm:$0xff]
                %513 = vst [vmem:[%s471 + $0xa0] sm:$0xff] %v512
                %v514 = vld [vmem:[%s470 + $0x148] sm:$0xff]
                %515 = vst [vmem:[%s471 + $0xa8] sm:$0xff] %v514
                %v516 = vld [vmem:[%s470 + $0x160] sm:$0xff]
                %517 = vst [vmem:[%s471 + $0xb0] sm:$0xff] %v516
                %v518 = vld [vmem:[%s470 + $0x168] sm:$0xff]
                %519 = vst [vmem:[%s471 + $0xb8] sm:$0xff] %v518
                %v520 = vld [vmem:[%s470 + $0x180] sm:$0xff]
                %521 = vst [vmem:[%s471 + $0xc0] sm:$0xff] %v520
                %v522 = vld [vmem:[%s470 + $0x188] sm:$0xff]
                %523 = vst [vmem:[%s471 + $0xc8] sm:$0xff] %v522
                %v524 = vld [vmem:[%s470 + $0x1a0] sm:$0xff]
                %525 = vst [vmem:[%s471 + $0xd0] sm:$0xff] %v524
                %v526 = vld [vmem:[%s470 + $0x1a8] sm:$0xff]
                %527 = vst [vmem:[%s471 + $0xd8] sm:$0xff] %v526
                %v528 = vld [vmem:[%s470 + $0x1c0] sm:$0xff]
                %529 = vst [vmem:[%s471 + $0xe0] sm:$0xff] %v528
                %v530 = vld [vmem:[%s470 + $0x1c8] sm:$0xff]
                %531 = vst [vmem:[%s471 + $0xe8] sm:$0xff] %v530
                %v532 = vld [vmem:[%s470 + $0x1e0] sm:$0xff]
                %533 = vst [vmem:[%s471 + $0xf0] sm:$0xff] %v532
                %v534 = vld [vmem:[%s470 + $0x1e8] sm:$0xff]
                %535 = vst [vmem:[%s471 + $0xf8] sm:$0xff] %v534
              $region79: #{_export_cfm_impl.1} parent=73 // loop_footer
                %s469 = sadd.s32 1, %s465
              $region80: #{_export_cfm_impl.1} parent=73 // loop_footer_branch
                %464 = sbr.rel target = $region76
              $region81: #{_export_cfm_impl.1} parent=73 // loop_exit
                _
            $region74: #{_export_cfm_impl.1} parent=69 // pred_fallthru
              _
            // Predicated region
            $region82: #{_export_cfm_impl.1} parent=69 // pred_check
              _
            $region83: #{_export_cfm_impl.1} parent=69 // pred_check_branch
              %537 = sbr.rel target = $region85
            $region84: #{_export_cfm_impl.1} parent=69 // pred_region
              _
            $region85: #{_export_cfm_impl.1} parent=69 // pred_fallthru
              _
          $region70: #{_export_cfm_impl.1} parent=65 // pred_fallthru
            _
          %538 = vnop
        $region66: #{_export_cfm_impl.1} parent=23 // pred_fallthru
          _
      $region24: #{_export_cfm_impl.1} parent=5 // pred_fallthru
        _
      %p539 = scmp.le.s32.totalorder 1, %s10
      %p540 = scmp.lt.s32.totalorder %s10, 3
      %p541 = pnand %p539, %p540
      %p542 = pneg %p541
      // Predicated region
      $region86: #{_export_cfm_impl.1} parent=5 // pred_check
        _
      $region87: #{_export_cfm_impl.1} parent=5 // pred_check_branch
        %544 = sbr.rel (%p541) target = $region89
      $region88: #{_export_cfm_impl.1} parent=5 // pred_region
        %s545 = ssub.s32 %s10, 1
        %s546 = sand.u32 %s23, 1
        %s547 = sand.u32 %s23, 1
        %s548 = smul.addr %s547, 512
        %s549 = scalar_lea.vmem [#allocation2], %s548
        // Predicated region
        $region90: #{_export_cfm_impl.1} parent=88 // pred_check
          %p550 = pneg %p36
        $region91: #{_export_cfm_impl.1} parent=88 // pred_check_branch
          %552 = sbr.rel (%p550) target = $region93
        $region92: #{_export_cfm_impl.1} parent=88 // pred_region
          _
        $region93: #{_export_cfm_impl.1} parent=88 // pred_fallthru
          _
        %s553 = sand.u32 %s49, 1
        %s554 = sand.u32 %s49, 1
        %s555 = smul.addr %s554, 256
        %s556 = scalar_lea.vmem [#allocation3], %s555
        // Predicated region
        $region94: #{_export_cfm_impl.1} parent=88 // pred_check
          %p557 = pneg %p62
        $region95: #{_export_cfm_impl.1} parent=88 // pred_check_branch
          %559 = sbr.rel (%p557) target = $region97
        $region96: #{_export_cfm_impl.1} parent=88 // pred_region
          _
        $region97: #{_export_cfm_impl.1} parent=88 // pred_fallthru
          _
        %s560 = sand.u32 %s23, 1
        %s561 = sand.u32 %s23, 1
        %s562 = smul.addr %s561, 512
        %s563 = scalar_lea.vmem [#allocation2], %s562
        %p564 = pneg %p36
        %p565 = pneg %p33
        %s566 = sand.u32 %s49, 1
        %s567 = sand.u32 %s49, 1
        %s568 = smul.addr %s567, 256
        %s569 = scalar_lea.vmem [#allocation3], %s568
        %p570 = pneg %p62
        %p571 = pneg %p59
        %p572 = pneg %p83
        %p573 = pneg %p80
        %p574 = pneg %p104
        %p575 = pneg %p101
        %p576 = pneg %p130
        %p577 = pneg %p127
        %s578 = sand.u32 %s117, 1
        %s579 = sand.u32 %s117, 1
        %s580 = smul.addr %s579, 256
        %s581 = scalar_lea.vmem [#allocation4], %s580
        %s582 = smul.u32 2, %s15
        %s583 = smul.u32 2, %s15
        %s584 = smul.u32 2, %s15
        %v585 = vld [vmem:[%s2] sm:$0xff]
        %v586 = vld [vmem:[%s2 + $0x8] sm:$0xff]
        %v587 = vld [vmem:[%s2 + $0x10] sm:$0xff]
        %v588 = vld [vmem:[%s2 + $0x18] sm:$0xff]
        %v589 = vld [vmem:[%s2 + $0x20] sm:$0xff]
        %v590 = vld [vmem:[%s2 + $0x28] sm:$0xff]
        %v591 = vld [vmem:[%s2 + $0x30] sm:$0xff]
        %v592 = vld [vmem:[%s2 + $0x38] sm:$0xff]
        %v593 = vld [vmem:[%s2 + $0x40] sm:$0xff]
        %v594 = vld [vmem:[%s2 + $0x48] sm:$0xff]
        %v595 = vld [vmem:[%s2 + $0x50] sm:$0xff]
        %v596 = vld [vmem:[%s2 + $0x58] sm:$0xff]
        %v597 = vld [vmem:[%s2 + $0x60] sm:$0xff]
        %v598 = vld [vmem:[%s2 + $0x68] sm:$0xff]
        %v599 = vld [vmem:[%s2 + $0x70] sm:$0xff]
        %v600 = vld [vmem:[%s2 + $0x78] sm:$0xff]
        %v601 = vld [vmem:[%s2 + $0x80] sm:$0xff]
        %v602 = vld [vmem:[%s2 + $0x88] sm:$0xff]
        %v603 = vld [vmem:[%s2 + $0x90] sm:$0xff]
        %v604 = vld [vmem:[%s2 + $0x98] sm:$0xff]
        %v605 = vld [vmem:[%s2 + $0xa0] sm:$0xff]
        %v606 = vld [vmem:[%s2 + $0xa8] sm:$0xff]
        %v607 = vld [vmem:[%s2 + $0xb0] sm:$0xff]
        %v608 = vld [vmem:[%s2 + $0xb8] sm:$0xff]
        %v609 = vld [vmem:[%s2 + $0xc0] sm:$0xff]
        %v610 = vld [vmem:[%s2 + $0xc8] sm:$0xff]
        %v611 = vld [vmem:[%s2 + $0xd0] sm:$0xff]
        %v612 = vld [vmem:[%s2 + $0xd8] sm:$0xff]
        %v613 = vld [vmem:[%s2 + $0xe0] sm:$0xff]
        %v614 = vld [vmem:[%s2 + $0xe8] sm:$0xff]
        %v615 = vld [vmem:[%s2 + $0xf0] sm:$0xff]
        %v616 = vld [vmem:[%s2 + $0xf8] sm:$0xff]
        %v617 = vld [vmem:[%s549] sm:$0xff]
        %v618 = vld [vmem:[%s549 + $0x8] sm:$0xff]
        %v619 = vld [vmem:[%s549 + $0x10] sm:$0xff]
        %v620 = vld [vmem:[%s549 + $0x18] sm:$0xff]
        %v621 = vld [vmem:[%s549 + $0x20] sm:$0xff]
        %v622 = vld [vmem:[%s549 + $0x28] sm:$0xff]
        %v623 = vld [vmem:[%s549 + $0x30] sm:$0xff]
        %v624 = vld [vmem:[%s549 + $0x38] sm:$0xff]
        %v625 = vld [vmem:[%s549 + $0x40] sm:$0xff]
        %v626 = vld [vmem:[%s549 + $0x48] sm:$0xff]
        %v627 = vld [vmem:[%s549 + $0x50] sm:$0xff]
        %v628 = vld [vmem:[%s549 + $0x58] sm:$0xff]
        %v629 = vld [vmem:[%s549 + $0x60] sm:$0xff]
        %v630 = vld [vmem:[%s549 + $0x68] sm:$0xff]
        %v631 = vld [vmem:[%s549 + $0x70] sm:$0xff]
        %v632 = vld [vmem:[%s549 + $0x78] sm:$0xff]
        %v633 = vld [vmem:[%s549 + $0x80] sm:$0xff]
        %v634 = vld [vmem:[%s549 + $0x88] sm:$0xff]
        %v635 = vld [vmem:[%s549 + $0x90] sm:$0xff]
        %v636 = vld [vmem:[%s549 + $0x98] sm:$0xff]
        %v637 = vld [vmem:[%s549 + $0xa0] sm:$0xff]
        %v638 = vld [vmem:[%s549 + $0xa8] sm:$0xff]
        %v639 = vld [vmem:[%s549 + $0xb0] sm:$0xff]
        %v640 = vld [vmem:[%s549 + $0xb8] sm:$0xff]
        %v641 = vld [vmem:[%s549 + $0xc0] sm:$0xff]
        %v642 = vld [vmem:[%s549 + $0xc8] sm:$0xff]
        %v643 = vld [vmem:[%s549 + $0xd0] sm:$0xff]
        %v644 = vld [vmem:[%s549 + $0xd8] sm:$0xff]
        %v645 = vld [vmem:[%s549 + $0xe0] sm:$0xff]
        %v646 = vld [vmem:[%s549 + $0xe8] sm:$0xff]
        %v647 = vld [vmem:[%s549 + $0xf0] sm:$0xff]
        %v648 = vld [vmem:[%s549 + $0xf8] sm:$0xff]
        %v649 = vld [vmem:[%s549 + $0x100] sm:$0xff]
        %v650 = vld [vmem:[%s549 + $0x108] sm:$0xff]
        %v651 = vld [vmem:[%s549 + $0x110] sm:$0xff]
        %v652 = vld [vmem:[%s549 + $0x118] sm:$0xff]
        %v653 = vld [vmem:[%s549 + $0x120] sm:$0xff]
        %v654 = vld [vmem:[%s549 + $0x128] sm:$0xff]
        %v655 = vld [vmem:[%s549 + $0x130] sm:$0xff]
        %v656 = vld [vmem:[%s549 + $0x138] sm:$0xff]
        %v657 = vld [vmem:[%s549 + $0x140] sm:$0xff]
        %v658 = vld [vmem:[%s549 + $0x148] sm:$0xff]
        %v659 = vld [vmem:[%s549 + $0x150] sm:$0xff]
        %v660 = vld [vmem:[%s549 + $0x158] sm:$0xff]
        %v661 = vld [vmem:[%s549 + $0x160] sm:$0xff]
        %v662 = vld [vmem:[%s549 + $0x168] sm:$0xff]
        %v663 = vld [vmem:[%s549 + $0x170] sm:$0xff]
        %v664 = vld [vmem:[%s549 + $0x178] sm:$0xff]
        %v665 = vld [vmem:[%s549 + $0x180] sm:$0xff]
        %v666 = vld [vmem:[%s549 + $0x188] sm:$0xff]
        %v667 = vld [vmem:[%s549 + $0x190] sm:$0xff]
        %v668 = vld [vmem:[%s549 + $0x198] sm:$0xff]
        %v669 = vld [vmem:[%s549 + $0x1a0] sm:$0xff]
        %v670 = vld [vmem:[%s549 + $0x1a8] sm:$0xff]
        %v671 = vld [vmem:[%s549 + $0x1b0] sm:$0xff]
        %v672 = vld [vmem:[%s549 + $0x1b8] sm:$0xff]
        %v673 = vld [vmem:[%s549 + $0x1c0] sm:$0xff]
        %v674 = vld [vmem:[%s549 + $0x1c8] sm:$0xff]
        %v675 = vld [vmem:[%s549 + $0x1d0] sm:$0xff]
        %v676 = vld [vmem:[%s549 + $0x1d8] sm:$0xff]
        %v677 = vld [vmem:[%s549 + $0x1e0] sm:$0xff]
        %v678 = vld [vmem:[%s549 + $0x1e8] sm:$0xff]
        %v679 = vld [vmem:[%s549 + $0x1f0] sm:$0xff]
        %v680 = vld [vmem:[%s549 + $0x1f8] sm:$0xff]
        %v713 = vunpack.c.l.b16 %v585
        %v714 = vunpack.c.h.b16 %v585
        %v715 = vunpack.c.l.b16 %v586
        %v716 = vunpack.c.h.b16 %v586
        %v717 = vunpack.c.l.b16 %v587
        %v718 = vunpack.c.h.b16 %v587
        %v719 = vunpack.c.l.b16 %v588
        %v720 = vunpack.c.h.b16 %v588
        %v721 = vunpack.c.l.b16 %v589
        %v722 = vunpack.c.h.b16 %v589
        %v723 = vunpack.c.l.b16 %v590
        %v724 = vunpack.c.h.b16 %v590
        %v725 = vunpack.c.l.b16 %v591
        %v726 = vunpack.c.h.b16 %v591
        %v727 = vunpack.c.l.b16 %v592
        %v728 = vunpack.c.h.b16 %v592
        %v729 = vunpack.c.l.b16 %v593
        %v730 = vunpack.c.h.b16 %v593
        %v731 = vunpack.c.l.b16 %v594
        %v732 = vunpack.c.h.b16 %v594
        %v733 = vunpack.c.l.b16 %v595
        %v734 = vunpack.c.h.b16 %v595
        %v735 = vunpack.c.l.b16 %v596
        %v736 = vunpack.c.h.b16 %v596
        %v737 = vunpack.c.l.b16 %v597
        %v738 = vunpack.c.h.b16 %v597
        %v739 = vunpack.c.l.b16 %v598
        %v740 = vunpack.c.h.b16 %v598
        %v741 = vunpack.c.l.b16 %v599
        %v742 = vunpack.c.h.b16 %v599
        %v743 = vunpack.c.l.b16 %v600
        %v744 = vunpack.c.h.b16 %v600
        %v745 = vunpack.c.l.b16 %v601
        %v746 = vunpack.c.h.b16 %v601
        %v747 = vunpack.c.l.b16 %v602
        %v748 = vunpack.c.h.b16 %v602
        %v749 = vunpack.c.l.b16 %v603
        %v750 = vunpack.c.h.b16 %v603
        %v751 = vunpack.c.l.b16 %v604
        %v752 = vunpack.c.h.b16 %v604
        %v753 = vunpack.c.l.b16 %v605
        %v754 = vunpack.c.h.b16 %v605
        %v755 = vunpack.c.l.b16 %v606
        %v756 = vunpack.c.h.b16 %v606
        %v757 = vunpack.c.l.b16 %v607
        %v758 = vunpack.c.h.b16 %v607
        %v759 = vunpack.c.l.b16 %v608
        %v760 = vunpack.c.h.b16 %v608
        %v761 = vunpack.c.l.b16 %v609
        %v762 = vunpack.c.h.b16 %v609
        %v763 = vunpack.c.l.b16 %v610
        %v764 = vunpack.c.h.b16 %v610
        %v765 = vunpack.c.l.b16 %v611
        %v766 = vunpack.c.h.b16 %v611
        %v767 = vunpack.c.l.b16 %v612
        %v768 = vunpack.c.h.b16 %v612
        %v769 = vunpack.c.l.b16 %v613
        %v770 = vunpack.c.h.b16 %v613
        %v771 = vunpack.c.l.b16 %v614
        %v772 = vunpack.c.h.b16 %v614
        %v773 = vunpack.c.l.b16 %v615
        %v774 = vunpack.c.h.b16 %v615
        %v775 = vunpack.c.l.b16 %v616
        %v776 = vunpack.c.h.b16 %v616
        %v777 = vpack.c.b16 %v717, %v713
        %v778 = vpack.c.b16 %v718, %v714
        %v779 = vpack.c.b16 %v719, %v715
        %v780 = vpack.c.b16 %v720, %v716
        %v781 = vpack.c.b16 %v725, %v721
        %v782 = vpack.c.b16 %v726, %v722
        %v783 = vpack.c.b16 %v727, %v723
        %v784 = vpack.c.b16 %v728, %v724
        %v785 = vpack.c.b16 %v733, %v729
        %v786 = vpack.c.b16 %v734, %v730
        %v787 = vpack.c.b16 %v735, %v731
        %v788 = vpack.c.b16 %v736, %v732
        %v789 = vpack.c.b16 %v741, %v737
        %v790 = vpack.c.b16 %v742, %v738
        %v791 = vpack.c.b16 %v743, %v739
        %v792 = vpack.c.b16 %v744, %v740
        %v793 = vpack.c.b16 %v749, %v745
        %v794 = vpack.c.b16 %v750, %v746
        %v795 = vpack.c.b16 %v751, %v747
        %v796 = vpack.c.b16 %v752, %v748
        %v797 = vpack.c.b16 %v757, %v753
        %v798 = vpack.c.b16 %v758, %v754
        %v799 = vpack.c.b16 %v759, %v755
        %v800 = vpack.c.b16 %v760, %v756
        %v801 = vpack.c.b16 %v765, %v761
        %v802 = vpack.c.b16 %v766, %v762
        %v803 = vpack.c.b16 %v767, %v763
        %v804 = vpack.c.b16 %v768, %v764
        %v805 = vpack.c.b16 %v773, %v769
        %v806 = vpack.c.b16 %v774, %v770
        %v807 = vpack.c.b16 %v775, %v771
        %v808 = vpack.c.b16 %v776, %v772
        %v905 = vunpack.c.l.b16 %v617
        %v906 = vunpack.c.h.b16 %v617
        %v907 = vunpack.c.l.b16 %v618
        %v908 = vunpack.c.h.b16 %v618
        %v909 = vunpack.c.l.b16 %v619
        %v910 = vunpack.c.h.b16 %v619
        %v911 = vunpack.c.l.b16 %v620
        %v912 = vunpack.c.h.b16 %v620
        %v913 = vunpack.c.l.b16 %v621
        %v914 = vunpack.c.h.b16 %v621
        %v915 = vunpack.c.l.b16 %v622
        %v916 = vunpack.c.h.b16 %v622
        %v917 = vunpack.c.l.b16 %v623
        %v918 = vunpack.c.h.b16 %v623
        %v919 = vunpack.c.l.b16 %v624
        %v920 = vunpack.c.h.b16 %v624
        %v921 = vunpack.c.l.b16 %v625
        %v922 = vunpack.c.h.b16 %v625
        %v923 = vunpack.c.l.b16 %v626
        %v924 = vunpack.c.h.b16 %v626
        %v925 = vunpack.c.l.b16 %v627
        %v926 = vunpack.c.h.b16 %v627
        %v927 = vunpack.c.l.b16 %v628
        %v928 = vunpack.c.h.b16 %v628
        %v929 = vunpack.c.l.b16 %v629
        %v930 = vunpack.c.h.b16 %v629
        %v931 = vunpack.c.l.b16 %v630
        %v932 = vunpack.c.h.b16 %v630
        %v933 = vunpack.c.l.b16 %v631
        %v934 = vunpack.c.h.b16 %v631
        %v935 = vunpack.c.l.b16 %v632
        %v936 = vunpack.c.h.b16 %v632
        %v937 = vunpack.c.l.b16 %v633
        %v938 = vunpack.c.h.b16 %v633
        %v939 = vunpack.c.l.b16 %v634
        %v940 = vunpack.c.h.b16 %v634
        %v941 = vunpack.c.l.b16 %v635
        %v942 = vunpack.c.h.b16 %v635
        %v943 = vunpack.c.l.b16 %v636
        %v944 = vunpack.c.h.b16 %v636
        %v945 = vunpack.c.l.b16 %v637
        %v946 = vunpack.c.h.b16 %v637
        %v947 = vunpack.c.l.b16 %v638
        %v948 = vunpack.c.h.b16 %v638
        %v949 = vunpack.c.l.b16 %v639
        %v950 = vunpack.c.h.b16 %v639
        %v951 = vunpack.c.l.b16 %v640
        %v952 = vunpack.c.h.b16 %v640
        %v953 = vunpack.c.l.b16 %v641
        %v954 = vunpack.c.h.b16 %v641
        %v955 = vunpack.c.l.b16 %v642
        %v956 = vunpack.c.h.b16 %v642
        %v957 = vunpack.c.l.b16 %v643
        %v958 = vunpack.c.h.b16 %v643
        %v959 = vunpack.c.l.b16 %v644
        %v960 = vunpack.c.h.b16 %v644
        %v961 = vunpack.c.l.b16 %v645
        %v962 = vunpack.c.h.b16 %v645
        %v963 = vunpack.c.l.b16 %v646
        %v964 = vunpack.c.h.b16 %v646
        %v965 = vunpack.c.l.b16 %v647
        %v966 = vunpack.c.h.b16 %v647
        %v967 = vunpack.c.l.b16 %v648
        %v968 = vunpack.c.h.b16 %v648
        %v969 = vunpack.c.l.b16 %v649
        %v970 = vunpack.c.h.b16 %v649
        %v971 = vunpack.c.l.b16 %v650
        %v972 = vunpack.c.h.b16 %v650
        %v973 = vunpack.c.l.b16 %v651
        %v974 = vunpack.c.h.b16 %v651
        %v975 = vunpack.c.l.b16 %v652
        %v976 = vunpack.c.h.b16 %v652
        %v977 = vunpack.c.l.b16 %v653
        %v978 = vunpack.c.h.b16 %v653
        %v979 = vunpack.c.l.b16 %v654
        %v980 = vunpack.c.h.b16 %v654
        %v981 = vunpack.c.l.b16 %v655
        %v982 = vunpack.c.h.b16 %v655
        %v983 = vunpack.c.l.b16 %v656
        %v984 = vunpack.c.h.b16 %v656
        %v985 = vunpack.c.l.b16 %v657
        %v986 = vunpack.c.h.b16 %v657
        %v987 = vunpack.c.l.b16 %v658
        %v988 = vunpack.c.h.b16 %v658
        %v989 = vunpack.c.l.b16 %v659
        %v990 = vunpack.c.h.b16 %v659
        %v991 = vunpack.c.l.b16 %v660
        %v992 = vunpack.c.h.b16 %v660
        %v993 = vunpack.c.l.b16 %v661
        %v994 = vunpack.c.h.b16 %v661
        %v995 = vunpack.c.l.b16 %v662
        %v996 = vunpack.c.h.b16 %v662
        %v997 = vunpack.c.l.b16 %v663
        %v998 = vunpack.c.h.b16 %v663
        %v999 = vunpack.c.l.b16 %v664
        %v1000 = vunpack.c.h.b16 %v664
        %v1001 = vunpack.c.l.b16 %v665
        %v1002 = vunpack.c.h.b16 %v665
        %v1003 = vunpack.c.l.b16 %v666
        %v1004 = vunpack.c.h.b16 %v666
        %v1005 = vunpack.c.l.b16 %v667
        %v1006 = vunpack.c.h.b16 %v667
        %v1007 = vunpack.c.l.b16 %v668
        %v1008 = vunpack.c.h.b16 %v668
        %v1009 = vunpack.c.l.b16 %v669
        %v1010 = vunpack.c.h.b16 %v669
        %v1011 = vunpack.c.l.b16 %v670
        %v1012 = vunpack.c.h.b16 %v670
        %v1013 = vunpack.c.l.b16 %v671
        %v1014 = vunpack.c.h.b16 %v671
        %v1015 = vunpack.c.l.b16 %v672
        %v1016 = vunpack.c.h.b16 %v672
        %v1017 = vunpack.c.l.b16 %v673
        %v1018 = vunpack.c.h.b16 %v673
        %v1019 = vunpack.c.l.b16 %v674
        %v1020 = vunpack.c.h.b16 %v674
        %v1021 = vunpack.c.l.b16 %v675
        %v1022 = vunpack.c.h.b16 %v675
        %v1023 = vunpack.c.l.b16 %v676
        %v1024 = vunpack.c.h.b16 %v676
        %v1025 = vunpack.c.l.b16 %v677
        %v1026 = vunpack.c.h.b16 %v677
        %v1027 = vunpack.c.l.b16 %v678
        %v1028 = vunpack.c.h.b16 %v678
        %v1029 = vunpack.c.l.b16 %v679
        %v1030 = vunpack.c.h.b16 %v679
        %v1031 = vunpack.c.l.b16 %v680
        %v1032 = vunpack.c.h.b16 %v680
        %v1033 = vpack.c.b16 %v907, %v905
        %v1034 = vpack.c.b16 %v908, %v906
        %v1035 = vpack.c.b16 %v911, %v909
        %v1036 = vpack.c.b16 %v912, %v910
        %v1037 = vpack.c.b16 %v915, %v913
        %v1038 = vpack.c.b16 %v916, %v914
        %v1039 = vpack.c.b16 %v919, %v917
        %v1040 = vpack.c.b16 %v920, %v918
        %v1041 = vpack.c.b16 %v923, %v921
        %v1042 = vpack.c.b16 %v924, %v922
        %v1043 = vpack.c.b16 %v927, %v925
        %v1044 = vpack.c.b16 %v928, %v926
        %v1045 = vpack.c.b16 %v931, %v929
        %v1046 = vpack.c.b16 %v932, %v930
        %v1047 = vpack.c.b16 %v935, %v933
        %v1048 = vpack.c.b16 %v936, %v934
        %v1049 = vpack.c.b16 %v939, %v937
        %v1050 = vpack.c.b16 %v940, %v938
        %v1051 = vpack.c.b16 %v943, %v941
        %v1052 = vpack.c.b16 %v944, %v942
        %v1053 = vpack.c.b16 %v947, %v945
        %v1054 = vpack.c.b16 %v948, %v946
        %v1055 = vpack.c.b16 %v951, %v949
        %v1056 = vpack.c.b16 %v952, %v950
        %v1057 = vpack.c.b16 %v955, %v953
        %v1058 = vpack.c.b16 %v956, %v954
        %v1059 = vpack.c.b16 %v959, %v957
        %v1060 = vpack.c.b16 %v960, %v958
        %v1061 = vpack.c.b16 %v963, %v961
        %v1062 = vpack.c.b16 %v964, %v962
        %v1063 = vpack.c.b16 %v967, %v965
        %v1064 = vpack.c.b16 %v968, %v966
        %v1065 = vpack.c.b16 %v971, %v969
        %v1066 = vpack.c.b16 %v972, %v970
        %v1067 = vpack.c.b16 %v975, %v973
        %v1068 = vpack.c.b16 %v976, %v974
        %v1069 = vpack.c.b16 %v979, %v977
        %v1070 = vpack.c.b16 %v980, %v978
        %v1071 = vpack.c.b16 %v983, %v981
        %v1072 = vpack.c.b16 %v984, %v982
        %v1073 = vpack.c.b16 %v987, %v985
        %v1074 = vpack.c.b16 %v988, %v986
        %v1075 = vpack.c.b16 %v991, %v989
        %v1076 = vpack.c.b16 %v992, %v990
        %v1077 = vpack.c.b16 %v995, %v993
        %v1078 = vpack.c.b16 %v996, %v994
        %v1079 = vpack.c.b16 %v999, %v997
        %v1080 = vpack.c.b16 %v1000, %v998
        %v1081 = vpack.c.b16 %v1003, %v1001
        %v1082 = vpack.c.b16 %v1004, %v1002
        %v1083 = vpack.c.b16 %v1007, %v1005
        %v1084 = vpack.c.b16 %v1008, %v1006
        %v1085 = vpack.c.b16 %v1011, %v1009
        %v1086 = vpack.c.b16 %v1012, %v1010
        %v1087 = vpack.c.b16 %v1015, %v1013
        %v1088 = vpack.c.b16 %v1016, %v1014
        %v1089 = vpack.c.b16 %v1019, %v1017
        %v1090 = vpack.c.b16 %v1020, %v1018
        %v1091 = vpack.c.b16 %v1023, %v1021
        %v1092 = vpack.c.b16 %v1024, %v1022
        %v1093 = vpack.c.b16 %v1027, %v1025
        %v1094 = vpack.c.b16 %v1028, %v1026
        %v1095 = vpack.c.b16 %v1031, %v1029
        %v1096 = vpack.c.b16 %v1032, %v1030
        %1161 = vmatpush.bf16.msra.mxu0 %v1047
        %1162 = vmatpush.bf16.msra.mxu0 %v1045
        %1163 = vmatpush.bf16.msra.mxu0 %v1043
        %1164 = vmatpush.bf16.msra.mxu0 %v1041
        %1165 = vmatpush.bf16.msra.mxu0 %v1039
        %1166 = vmatpush.bf16.msra.mxu0 %v1037
        %1167 = vmatpush.bf16.msra.mxu0 %v1035
        %1168 = vmatpush.bf16.msra.mxu0 %v1033
        %1169 = vmatmul.bf16.gmra.mxu0 %v777
        %v1170 = vpop.f32.mrf.mxu0
        %v1171 = vadd.f32 0.0, %v1170
        %v1172 = vpop.f32.mrf.mxu0
        %v1173 = vadd.f32 0.0, %v1172
        %1174 = vmatmul.bf16.gmra.mxu0 %v781
        %v1175 = vpop.f32.mrf.mxu0
        %v1176 = vadd.f32 0.0, %v1175
        %v1177 = vpop.f32.mrf.mxu0
        %v1178 = vadd.f32 0.0, %v1177
        %1179 = vmatmul.bf16.gmra.mxu0 %v785
        %v1180 = vpop.f32.mrf.mxu0
        %v1181 = vadd.f32 0.0, %v1180
        %v1182 = vpop.f32.mrf.mxu0
        %v1183 = vadd.f32 0.0, %v1182
        %1184 = vmatmul.bf16.gmra.mxu0 %v789
        %v1185 = vpop.f32.mrf.mxu0
        %v1186 = vadd.f32 0.0, %v1185
        %v1187 = vpop.f32.mrf.mxu0
        %v1188 = vadd.f32 0.0, %v1187
        %1189 = vmatmul.bf16.gmra.mxu0 %v793
        %v1190 = vpop.f32.mrf.mxu0
        %v1191 = vadd.f32 0.0, %v1190
        %v1192 = vpop.f32.mrf.mxu0
        %v1193 = vadd.f32 0.0, %v1192
        %1194 = vmatmul.bf16.gmra.mxu0 %v797
        %v1195 = vpop.f32.mrf.mxu0
        %v1196 = vadd.f32 0.0, %v1195
        %v1197 = vpop.f32.mrf.mxu0
        %v1198 = vadd.f32 0.0, %v1197
        %1199 = vmatmul.bf16.gmra.mxu0 %v801
        %v1200 = vpop.f32.mrf.mxu0
        %v1201 = vadd.f32 0.0, %v1200
        %v1202 = vpop.f32.mrf.mxu0
        %v1203 = vadd.f32 0.0, %v1202
        %1204 = vmatmul.bf16.gmra.mxu0 %v805
        %v1205 = vpop.f32.mrf.mxu0
        %v1206 = vadd.f32 0.0, %v1205
        %v1207 = vpop.f32.mrf.mxu0
        %v1208 = vadd.f32 0.0, %v1207
        %1209 = vdwg.mxu0
        %1210 = vmatpush.bf16.msra.mxu0 %v1063
        %1211 = vmatpush.bf16.msra.mxu0 %v1061
        %1212 = vmatpush.bf16.msra.mxu0 %v1059
        %1213 = vmatpush.bf16.msra.mxu0 %v1057
        %1214 = vmatpush.bf16.msra.mxu0 %v1055
        %1215 = vmatpush.bf16.msra.mxu0 %v1053
        %1216 = vmatpush.bf16.msra.mxu0 %v1051
        %1217 = vmatpush.bf16.msra.mxu0 %v1049
        %1218 = vmatmul.bf16.gmra.mxu0 %v778
        %v1219 = vpop.f32.mrf.mxu0
        %v1220 = vadd.f32 %v1171, %v1219
        %v1221 = vpop.f32.mrf.mxu0
        %v1222 = vadd.f32 %v1173, %v1221
        %1223 = vmatmul.bf16.gmra.mxu0 %v782
        %v1224 = vpop.f32.mrf.mxu0
        %v1225 = vadd.f32 %v1176, %v1224
        %v1226 = vpop.f32.mrf.mxu0
        %v1227 = vadd.f32 %v1178, %v1226
        %1228 = vmatmul.bf16.gmra.mxu0 %v786
        %v1229 = vpop.f32.mrf.mxu0
        %v1230 = vadd.f32 %v1181, %v1229
        %v1231 = vpop.f32.mrf.mxu0
        %v1232 = vadd.f32 %v1183, %v1231
        %1233 = vmatmul.bf16.gmra.mxu0 %v790
        %v1234 = vpop.f32.mrf.mxu0
        %v1235 = vadd.f32 %v1186, %v1234
        %v1236 = vpop.f32.mrf.mxu0
        %v1237 = vadd.f32 %v1188, %v1236
        %1238 = vmatmul.bf16.gmra.mxu0 %v794
        %v1239 = vpop.f32.mrf.mxu0
        %v1240 = vadd.f32 %v1191, %v1239
        %v1241 = vpop.f32.mrf.mxu0
        %v1242 = vadd.f32 %v1193, %v1241
        %1243 = vmatmul.bf16.gmra.mxu0 %v798
        %v1244 = vpop.f32.mrf.mxu0
        %v1245 = vadd.f32 %v1196, %v1244
        %v1246 = vpop.f32.mrf.mxu0
        %v1247 = vadd.f32 %v1198, %v1246
        %1248 = vmatmul.bf16.gmra.mxu0 %v802
        %v1249 = vpop.f32.mrf.mxu0
        %v1250 = vadd.f32 %v1201, %v1249
        %v1251 = vpop.f32.mrf.mxu0
        %v1252 = vadd.f32 %v1203, %v1251
        %1253 = vmatmul.bf16.gmra.mxu0 %v806
        %v1254 = vpop.f32.mrf.mxu0
        %v1255 = vadd.f32 %v1206, %v1254
        %v1256 = vpop.f32.mrf.mxu0
        %v1257 = vadd.f32 %v1208, %v1256
        %1258 = vdwg.mxu0
        %1259 = vmatpush.bf16.msra.mxu0 %v1079
        %1260 = vmatpush.bf16.msra.mxu0 %v1077
        %1261 = vmatpush.bf16.msra.mxu0 %v1075
        %1262 = vmatpush.bf16.msra.mxu0 %v1073
        %1263 = vmatpush.bf16.msra.mxu0 %v1071
        %1264 = vmatpush.bf16.msra.mxu0 %v1069
        %1265 = vmatpush.bf16.msra.mxu0 %v1067
        %1266 = vmatpush.bf16.msra.mxu0 %v1065
        %1267 = vmatmul.bf16.gmra.mxu0 %v779
        %v1268 = vpop.f32.mrf.mxu0
        %v1269 = vadd.f32 %v1220, %v1268
        %v1270 = vpop.f32.mrf.mxu0
        %v1271 = vadd.f32 %v1222, %v1270
        %1272 = vmatmul.bf16.gmra.mxu0 %v783
        %v1273 = vpop.f32.mrf.mxu0
        %v1274 = vadd.f32 %v1225, %v1273
        %v1275 = vpop.f32.mrf.mxu0
        %v1276 = vadd.f32 %v1227, %v1275
        %1277 = vmatmul.bf16.gmra.mxu0 %v787
        %v1278 = vpop.f32.mrf.mxu0
        %v1279 = vadd.f32 %v1230, %v1278
        %v1280 = vpop.f32.mrf.mxu0
        %v1281 = vadd.f32 %v1232, %v1280
        %1282 = vmatmul.bf16.gmra.mxu0 %v791
        %v1283 = vpop.f32.mrf.mxu0
        %v1284 = vadd.f32 %v1235, %v1283
        %v1285 = vpop.f32.mrf.mxu0
        %v1286 = vadd.f32 %v1237, %v1285
        %1287 = vmatmul.bf16.gmra.mxu0 %v795
        %v1288 = vpop.f32.mrf.mxu0
        %v1289 = vadd.f32 %v1240, %v1288
        %v1290 = vpop.f32.mrf.mxu0
        %v1291 = vadd.f32 %v1242, %v1290
        %1292 = vmatmul.bf16.gmra.mxu0 %v799
        %v1293 = vpop.f32.mrf.mxu0
        %v1294 = vadd.f32 %v1245, %v1293
        %v1295 = vpop.f32.mrf.mxu0
        %v1296 = vadd.f32 %v1247, %v1295
        %1297 = vmatmul.bf16.gmra.mxu0 %v803
        %v1298 = vpop.f32.mrf.mxu0
        %v1299 = vadd.f32 %v1250, %v1298
        %v1300 = vpop.f32.mrf.mxu0
        %v1301 = vadd.f32 %v1252, %v1300
        %1302 = vmatmul.bf16.gmra.mxu0 %v807
        %v1303 = vpop.f32.mrf.mxu0
        %v1304 = vadd.f32 %v1255, %v1303
        %v1305 = vpop.f32.mrf.mxu0
        %v1306 = vadd.f32 %v1257, %v1305
        %1307 = vdwg.mxu0
        %1308 = vmatpush.bf16.msra.mxu0 %v1095
        %1309 = vmatpush.bf16.msra.mxu0 %v1093
        %1310 = vmatpush.bf16.msra.mxu0 %v1091
        %1311 = vmatpush.bf16.msra.mxu0 %v1089
        %1312 = vmatpush.bf16.msra.mxu0 %v1087
        %1313 = vmatpush.bf16.msra.mxu0 %v1085
        %1314 = vmatpush.bf16.msra.mxu0 %v1083
        %1315 = vmatpush.bf16.msra.mxu0 %v1081
        %1316 = vmatmul.bf16.gmra.mxu0 %v780
        %v1317 = vpop.f32.mrf.mxu0
        %v1318 = vadd.f32 %v1269, %v1317
        %v1319 = vpop.f32.mrf.mxu0
        %v1320 = vadd.f32 %v1271, %v1319
        %1321 = vmatmul.bf16.gmra.mxu0 %v784
        %v1322 = vpop.f32.mrf.mxu0
        %v1323 = vadd.f32 %v1274, %v1322
        %v1324 = vpop.f32.mrf.mxu0
        %v1325 = vadd.f32 %v1276, %v1324
        %1326 = vmatmul.bf16.gmra.mxu0 %v788
        %v1327 = vpop.f32.mrf.mxu0
        %v1328 = vadd.f32 %v1279, %v1327
        %v1329 = vpop.f32.mrf.mxu0
        %v1330 = vadd.f32 %v1281, %v1329
        %1331 = vmatmul.bf16.gmra.mxu0 %v792
        %v1332 = vpop.f32.mrf.mxu0
        %v1333 = vadd.f32 %v1284, %v1332
        %v1334 = vpop.f32.mrf.mxu0
        %v1335 = vadd.f32 %v1286, %v1334
        %1336 = vmatmul.bf16.gmra.mxu0 %v796
        %v1337 = vpop.f32.mrf.mxu0
        %v1338 = vadd.f32 %v1289, %v1337
        %v1339 = vpop.f32.mrf.mxu0
        %v1340 = vadd.f32 %v1291, %v1339
        %1341 = vmatmul.bf16.gmra.mxu0 %v800
        %v1342 = vpop.f32.mrf.mxu0
        %v1343 = vadd.f32 %v1294, %v1342
        %v1344 = vpop.f32.mrf.mxu0
        %v1345 = vadd.f32 %v1296, %v1344
        %1346 = vmatmul.bf16.gmra.mxu0 %v804
        %v1347 = vpop.f32.mrf.mxu0
        %v1348 = vadd.f32 %v1299, %v1347
        %v1349 = vpop.f32.mrf.mxu0
        %v1350 = vadd.f32 %v1301, %v1349
        %1351 = vmatmul.bf16.gmra.mxu0 %v808
        %v1352 = vpop.f32.mrf.mxu0
        %v1353 = vadd.f32 %v1304, %v1352
        %v1354 = vpop.f32.mrf.mxu0
        %v1355 = vadd.f32 %v1306, %v1354
        %1356 = vdwg.mxu0
        %1357 = vmatpush.bf16.msra.mxu0 %v1048
        %1358 = vmatpush.bf16.msra.mxu0 %v1046
        %1359 = vmatpush.bf16.msra.mxu0 %v1044
        %1360 = vmatpush.bf16.msra.mxu0 %v1042
        %1361 = vmatpush.bf16.msra.mxu0 %v1040
        %1362 = vmatpush.bf16.msra.mxu0 %v1038
        %1363 = vmatpush.bf16.msra.mxu0 %v1036
        %1364 = vmatpush.bf16.msra.mxu0 %v1034
        %1365 = vmatmul.bf16.gmra.mxu0 %v777
        %v1366 = vpop.f32.mrf.mxu0
        %v1367 = vadd.f32 0.0, %v1366
        %v1368 = vpop.f32.mrf.mxu0
        %v1369 = vadd.f32 0.0, %v1368
        %1370 = vmatmul.bf16.gmra.mxu0 %v781
        %v1371 = vpop.f32.mrf.mxu0
        %v1372 = vadd.f32 0.0, %v1371
        %v1373 = vpop.f32.mrf.mxu0
        %v1374 = vadd.f32 0.0, %v1373
        %1375 = vmatmul.bf16.gmra.mxu0 %v785
        %v1376 = vpop.f32.mrf.mxu0
        %v1377 = vadd.f32 0.0, %v1376
        %v1378 = vpop.f32.mrf.mxu0
        %v1379 = vadd.f32 0.0, %v1378
        %1380 = vmatmul.bf16.gmra.mxu0 %v789
        %v1381 = vpop.f32.mrf.mxu0
        %v1382 = vadd.f32 0.0, %v1381
        %v1383 = vpop.f32.mrf.mxu0
        %v1384 = vadd.f32 0.0, %v1383
        %1385 = vmatmul.bf16.gmra.mxu0 %v793
        %v1386 = vpop.f32.mrf.mxu0
        %v1387 = vadd.f32 0.0, %v1386
        %v1388 = vpop.f32.mrf.mxu0
        %v1389 = vadd.f32 0.0, %v1388
        %1390 = vmatmul.bf16.gmra.mxu0 %v797
        %v1391 = vpop.f32.mrf.mxu0
        %v1392 = vadd.f32 0.0, %v1391
        %v1393 = vpop.f32.mrf.mxu0
        %v1394 = vadd.f32 0.0, %v1393
        %1395 = vmatmul.bf16.gmra.mxu0 %v801
        %v1396 = vpop.f32.mrf.mxu0
        %v1397 = vadd.f32 0.0, %v1396
        %v1398 = vpop.f32.mrf.mxu0
        %v1399 = vadd.f32 0.0, %v1398
        %1400 = vmatmul.bf16.gmra.mxu0 %v805
        %v1401 = vpop.f32.mrf.mxu0
        %v1402 = vadd.f32 0.0, %v1401
        %v1403 = vpop.f32.mrf.mxu0
        %v1404 = vadd.f32 0.0, %v1403
        %1405 = vdwg.mxu0
        %1406 = vmatpush.bf16.msra.mxu0 %v1064
        %1407 = vmatpush.bf16.msra.mxu0 %v1062
        %1408 = vmatpush.bf16.msra.mxu0 %v1060
        %1409 = vmatpush.bf16.msra.mxu0 %v1058
        %1410 = vmatpush.bf16.msra.mxu0 %v1056
        %1411 = vmatpush.bf16.msra.mxu0 %v1054
        %1412 = vmatpush.bf16.msra.mxu0 %v1052
        %1413 = vmatpush.bf16.msra.mxu0 %v1050
        %1414 = vmatmul.bf16.gmra.mxu0 %v778
        %v1415 = vpop.f32.mrf.mxu0
        %v1416 = vadd.f32 %v1367, %v1415
        %v1417 = vpop.f32.mrf.mxu0
        %v1418 = vadd.f32 %v1369, %v1417
        %1419 = vmatmul.bf16.gmra.mxu0 %v782
        %v1420 = vpop.f32.mrf.mxu0
        %v1421 = vadd.f32 %v1372, %v1420
        %v1422 = vpop.f32.mrf.mxu0
        %v1423 = vadd.f32 %v1374, %v1422
        %1424 = vmatmul.bf16.gmra.mxu0 %v786
        %v1425 = vpop.f32.mrf.mxu0
        %v1426 = vadd.f32 %v1377, %v1425
        %v1427 = vpop.f32.mrf.mxu0
        %v1428 = vadd.f32 %v1379, %v1427
        %1429 = vmatmul.bf16.gmra.mxu0 %v790
        %v1430 = vpop.f32.mrf.mxu0
        %v1431 = vadd.f32 %v1382, %v1430
        %v1432 = vpop.f32.mrf.mxu0
        %v1433 = vadd.f32 %v1384, %v1432
        %1434 = vmatmul.bf16.gmra.mxu0 %v794
        %v1435 = vpop.f32.mrf.mxu0
        %v1436 = vadd.f32 %v1387, %v1435
        %v1437 = vpop.f32.mrf.mxu0
        %v1438 = vadd.f32 %v1389, %v1437
        %1439 = vmatmul.bf16.gmra.mxu0 %v798
        %v1440 = vpop.f32.mrf.mxu0
        %v1441 = vadd.f32 %v1392, %v1440
        %v1442 = vpop.f32.mrf.mxu0
        %v1443 = vadd.f32 %v1394, %v1442
        %1444 = vmatmul.bf16.gmra.mxu0 %v802
        %v1445 = vpop.f32.mrf.mxu0
        %v1446 = vadd.f32 %v1397, %v1445
        %v1447 = vpop.f32.mrf.mxu0
        %v1448 = vadd.f32 %v1399, %v1447
        %1449 = vmatmul.bf16.gmra.mxu0 %v806
        %v1450 = vpop.f32.mrf.mxu0
        %v1451 = vadd.f32 %v1402, %v1450
        %v1452 = vpop.f32.mrf.mxu0
        %v1453 = vadd.f32 %v1404, %v1452
        %1454 = vdwg.mxu0
        %1455 = vmatpush.bf16.msra.mxu0 %v1080
        %1456 = vmatpush.bf16.msra.mxu0 %v1078
        %1457 = vmatpush.bf16.msra.mxu0 %v1076
        %1458 = vmatpush.bf16.msra.mxu0 %v1074
        %1459 = vmatpush.bf16.msra.mxu0 %v1072
        %1460 = vmatpush.bf16.msra.mxu0 %v1070
        %1461 = vmatpush.bf16.msra.mxu0 %v1068
        %1462 = vmatpush.bf16.msra.mxu0 %v1066
        %1463 = vmatmul.bf16.gmra.mxu0 %v779
        %v1464 = vpop.f32.mrf.mxu0
        %v1465 = vadd.f32 %v1416, %v1464
        %v1466 = vpop.f32.mrf.mxu0
        %v1467 = vadd.f32 %v1418, %v1466
        %1468 = vmatmul.bf16.gmra.mxu0 %v783
        %v1469 = vpop.f32.mrf.mxu0
        %v1470 = vadd.f32 %v1421, %v1469
        %v1471 = vpop.f32.mrf.mxu0
        %v1472 = vadd.f32 %v1423, %v1471
        %1473 = vmatmul.bf16.gmra.mxu0 %v787
        %v1474 = vpop.f32.mrf.mxu0
        %v1475 = vadd.f32 %v1426, %v1474
        %v1476 = vpop.f32.mrf.mxu0
        %v1477 = vadd.f32 %v1428, %v1476
        %1478 = vmatmul.bf16.gmra.mxu0 %v791
        %v1479 = vpop.f32.mrf.mxu0
        %v1480 = vadd.f32 %v1431, %v1479
        %v1481 = vpop.f32.mrf.mxu0
        %v1482 = vadd.f32 %v1433, %v1481
        %1483 = vmatmul.bf16.gmra.mxu0 %v795
        %v1484 = vpop.f32.mrf.mxu0
        %v1485 = vadd.f32 %v1436, %v1484
        %v1486 = vpop.f32.mrf.mxu0
        %v1487 = vadd.f32 %v1438, %v1486
        %1488 = vmatmul.bf16.gmra.mxu0 %v799
        %v1489 = vpop.f32.mrf.mxu0
        %v1490 = vadd.f32 %v1441, %v1489
        %v1491 = vpop.f32.mrf.mxu0
        %v1492 = vadd.f32 %v1443, %v1491
        %1493 = vmatmul.bf16.gmra.mxu0 %v803
        %v1494 = vpop.f32.mrf.mxu0
        %v1495 = vadd.f32 %v1446, %v1494
        %v1496 = vpop.f32.mrf.mxu0
        %v1497 = vadd.f32 %v1448, %v1496
        %1498 = vmatmul.bf16.gmra.mxu0 %v807
        %v1499 = vpop.f32.mrf.mxu0
        %v1500 = vadd.f32 %v1451, %v1499
        %v1501 = vpop.f32.mrf.mxu0
        %v1502 = vadd.f32 %v1453, %v1501
        %1503 = vdwg.mxu0
        %1504 = vmatpush.bf16.msra.mxu0 %v1096
        %1505 = vmatpush.bf16.msra.mxu0 %v1094
        %1506 = vmatpush.bf16.msra.mxu0 %v1092
        %1507 = vmatpush.bf16.msra.mxu0 %v1090
        %1508 = vmatpush.bf16.msra.mxu0 %v1088
        %1509 = vmatpush.bf16.msra.mxu0 %v1086
        %1510 = vmatpush.bf16.msra.mxu0 %v1084
        %1511 = vmatpush.bf16.msra.mxu0 %v1082
        %1512 = vmatmul.bf16.gmra.mxu0 %v780
        %v1513 = vpop.f32.mrf.mxu0
        %v1514 = vadd.f32 %v1465, %v1513
        %v1515 = vpop.f32.mrf.mxu0
        %v1516 = vadd.f32 %v1467, %v1515
        %1517 = vmatmul.bf16.gmra.mxu0 %v784
        %v1518 = vpop.f32.mrf.mxu0
        %v1519 = vadd.f32 %v1470, %v1518
        %v1520 = vpop.f32.mrf.mxu0
        %v1521 = vadd.f32 %v1472, %v1520
        %1522 = vmatmul.bf16.gmra.mxu0 %v788
        %v1523 = vpop.f32.mrf.mxu0
        %v1524 = vadd.f32 %v1475, %v1523
        %v1525 = vpop.f32.mrf.mxu0
        %v1526 = vadd.f32 %v1477, %v1525
        %1527 = vmatmul.bf16.gmra.mxu0 %v792
        %v1528 = vpop.f32.mrf.mxu0
        %v1529 = vadd.f32 %v1480, %v1528
        %v1530 = vpop.f32.mrf.mxu0
        %v1531 = vadd.f32 %v1482, %v1530
        %1532 = vmatmul.bf16.gmra.mxu0 %v796
        %v1533 = vpop.f32.mrf.mxu0
        %v1534 = vadd.f32 %v1485, %v1533
        %v1535 = vpop.f32.mrf.mxu0
        %v1536 = vadd.f32 %v1487, %v1535
        %1537 = vmatmul.bf16.gmra.mxu0 %v800
        %v1538 = vpop.f32.mrf.mxu0
        %v1539 = vadd.f32 %v1490, %v1538
        %v1540 = vpop.f32.mrf.mxu0
        %v1541 = vadd.f32 %v1492, %v1540
        %1542 = vmatmul.bf16.gmra.mxu0 %v804
        %v1543 = vpop.f32.mrf.mxu0
        %v1544 = vadd.f32 %v1495, %v1543
        %v1545 = vpop.f32.mrf.mxu0
        %v1546 = vadd.f32 %v1497, %v1545
        %1547 = vmatmul.bf16.gmra.mxu0 %v808
        %v1548 = vpop.f32.mrf.mxu0
        %v1549 = vadd.f32 %v1500, %v1548
        %v1550 = vpop.f32.mrf.mxu0
        %v1551 = vadd.f32 %v1502, %v1550
        %1552 = vdwg.mxu0
        %v1553 = vld [vmem:[%s556] sm:$0xff]
        %v1554 = vld [vmem:[%s556 + $0x8] sm:$0xff]
        %v1555 = vld [vmem:[%s556 + $0x10] sm:$0xff]
        %v1556 = vld [vmem:[%s556 + $0x18] sm:$0xff]
        %v1557 = vld [vmem:[%s556 + $0x20] sm:$0xff]
        %v1558 = vld [vmem:[%s556 + $0x28] sm:$0xff]
        %v1559 = vld [vmem:[%s556 + $0x30] sm:$0xff]
        %v1560 = vld [vmem:[%s556 + $0x38] sm:$0xff]
        %v1561 = vld [vmem:[%s556 + $0x40] sm:$0xff]
        %v1562 = vld [vmem:[%s556 + $0x48] sm:$0xff]
        %v1563 = vld [vmem:[%s556 + $0x50] sm:$0xff]
        %v1564 = vld [vmem:[%s556 + $0x58] sm:$0xff]
        %v1565 = vld [vmem:[%s556 + $0x60] sm:$0xff]
        %v1566 = vld [vmem:[%s556 + $0x68] sm:$0xff]
        %v1567 = vld [vmem:[%s556 + $0x70] sm:$0xff]
        %v1568 = vld [vmem:[%s556 + $0x78] sm:$0xff]
        %v1569 = vld [vmem:[%s556 + $0x80] sm:$0xff]
        %v1570 = vld [vmem:[%s556 + $0x88] sm:$0xff]
        %v1571 = vld [vmem:[%s556 + $0x90] sm:$0xff]
        %v1572 = vld [vmem:[%s556 + $0x98] sm:$0xff]
        %v1573 = vld [vmem:[%s556 + $0xa0] sm:$0xff]
        %v1574 = vld [vmem:[%s556 + $0xa8] sm:$0xff]
        %v1575 = vld [vmem:[%s556 + $0xb0] sm:$0xff]
        %v1576 = vld [vmem:[%s556 + $0xb8] sm:$0xff]
        %v1577 = vld [vmem:[%s556 + $0xc0] sm:$0xff]
        %v1578 = vld [vmem:[%s556 + $0xc8] sm:$0xff]
        %v1579 = vld [vmem:[%s556 + $0xd0] sm:$0xff]
        %v1580 = vld [vmem:[%s556 + $0xd8] sm:$0xff]
        %v1581 = vld [vmem:[%s556 + $0xe0] sm:$0xff]
        %v1582 = vld [vmem:[%s556 + $0xe8] sm:$0xff]
        %v1583 = vld [vmem:[%s556 + $0xf0] sm:$0xff]
        %v1584 = vld [vmem:[%s556 + $0xf8] sm:$0xff]
        %v1585 = vld [vmem:[%s3] sm:$0xf]
        %v1586 = vld [vmem:[%s3 + $0x4] sm:$0xf]
        %v1587 = vld [vmem:[%s3 + $0x8] sm:$0xf]
        %v1588 = vld [vmem:[%s3 + $0xc] sm:$0xf]
        %v1589 = vld [vmem:[%s3 + $0x10] sm:$0xf]
        %v1590 = vld [vmem:[%s3 + $0x14] sm:$0xf]
        %v1591 = vld [vmem:[%s3 + $0x18] sm:$0xf]
        %v1592 = vld [vmem:[%s3 + $0x1c] sm:$0xf]
        %v1593 = vld [vmem:[%s3 + $0x20] sm:$0xf]
        %v1594 = vld [vmem:[%s3 + $0x24] sm:$0xf]
        %v1595 = vld [vmem:[%s3 + $0x28] sm:$0xf]
        %v1596 = vld [vmem:[%s3 + $0x2c] sm:$0xf]
        %v1597 = vld [vmem:[%s3 + $0x30] sm:$0xf]
        %v1598 = vld [vmem:[%s3 + $0x34] sm:$0xf]
        %v1599 = vld [vmem:[%s3 + $0x38] sm:$0xf]
        %v1600 = vld [vmem:[%s3 + $0x3c] sm:$0xf]
        %v1601 = vpack.c.bf16 %v1555, %v1553
        %v1602 = vpack.c.bf16 %v1556, %v1554
        %v1603 = vpack.c.bf16 %v1559, %v1557
        %v1604 = vpack.c.bf16 %v1560, %v1558
        %v1605 = vpack.c.bf16 %v1563, %v1561
        %v1606 = vpack.c.bf16 %v1564, %v1562
        %v1607 = vpack.c.bf16 %v1567, %v1565
        %v1608 = vpack.c.bf16 %v1568, %v1566
        %v1609 = vpack.c.bf16 %v1571, %v1569
        %v1610 = vpack.c.bf16 %v1572, %v1570
        %v1611 = vpack.c.bf16 %v1575, %v1573
        %v1612 = vpack.c.bf16 %v1576, %v1574
        %v1613 = vpack.c.bf16 %v1579, %v1577
        %v1614 = vpack.c.bf16 %v1580, %v1578
        %v1615 = vpack.c.bf16 %v1583, %v1581
        %v1616 = vpack.c.bf16 %v1584, %v1582
        %v1633 = vunpack.c.l.b16 %v1585
        %v1634 = vunpack.c.l.b16 %v1586
        %v1635 = vunpack.c.l.b16 %v1587
        %v1636 = vunpack.c.l.b16 %v1588
        %v1637 = vunpack.c.l.b16 %v1589
        %v1638 = vunpack.c.l.b16 %v1590
        %v1639 = vunpack.c.l.b16 %v1591
        %v1640 = vunpack.c.l.b16 %v1592
        %v1641 = vunpack.c.l.b16 %v1593
        %v1642 = vunpack.c.l.b16 %v1594
        %v1643 = vunpack.c.l.b16 %v1595
        %v1644 = vunpack.c.l.b16 %v1596
        %v1645 = vunpack.c.l.b16 %v1597
        %v1646 = vunpack.c.l.b16 %v1598
        %v1647 = vunpack.c.l.b16 %v1599
        %v1648 = vunpack.c.l.b16 %v1600
        %v1649 = vpack.c.b16 %v1634, %v1633
        %v1650 = vpack.c.b16 %v1636, %v1635
        %v1651 = vpack.c.b16 %v1638, %v1637
        %v1652 = vpack.c.b16 %v1640, %v1639
        %v1653 = vpack.c.b16 %v1642, %v1641
        %v1654 = vpack.c.b16 %v1644, %v1643
        %v1655 = vpack.c.b16 %v1646, %v1645
        %v1656 = vpack.c.b16 %v1648, %v1647
        %1665 = vmatpush.bf16.msra.mxu0 %v1615
        %1666 = vmatpush.bf16.msra.mxu0 %v1613
        %1667 = vmatpush.bf16.msra.mxu0 %v1611
        %1668 = vmatpush.bf16.msra.mxu0 %v1609
        %1669 = vmatpush.bf16.msra.mxu0 %v1607
        %1670 = vmatpush.bf16.msra.mxu0 %v1605
        %1671 = vmatpush.bf16.msra.mxu0 %v1603
        %1672 = vmatpush.bf16.msra.mxu0 %v1601
        %1673 = vmatmul.bf16.gmra.mxu0 %v1649
        %v1674 = vpop.f32.mrf.mxu0
        %v1675 = vadd.f32 0.0, %v1674
        %v1676 = vpop.f32.mrf.mxu0
        %v1677 = vadd.f32 0.0, %v1676
        %1678 = vmatmul.bf16.gmra.mxu0 %v1650
        %v1679 = vpop.f32.mrf.mxu0
        %v1680 = vadd.f32 0.0, %v1679
        %v1681 = vpop.f32.mrf.mxu0
        %v1682 = vadd.f32 0.0, %v1681
        %1683 = vmatmul.bf16.gmra.mxu0 %v1651
        %v1684 = vpop.f32.mrf.mxu0
        %v1685 = vadd.f32 0.0, %v1684
        %v1686 = vpop.f32.mrf.mxu0
        %v1687 = vadd.f32 0.0, %v1686
        %1688 = vmatmul.bf16.gmra.mxu0 %v1652
        %v1689 = vpop.f32.mrf.mxu0
        %v1690 = vadd.f32 0.0, %v1689
        %v1691 = vpop.f32.mrf.mxu0
        %v1692 = vadd.f32 0.0, %v1691
        %1693 = vmatmul.bf16.gmra.mxu0 %v1653
        %v1694 = vpop.f32.mrf.mxu0
        %v1695 = vadd.f32 0.0, %v1694
        %v1696 = vpop.f32.mrf.mxu0
        %v1697 = vadd.f32 0.0, %v1696
        %1698 = vmatmul.bf16.gmra.mxu0 %v1654
        %v1699 = vpop.f32.mrf.mxu0
        %v1700 = vadd.f32 0.0, %v1699
        %v1701 = vpop.f32.mrf.mxu0
        %v1702 = vadd.f32 0.0, %v1701
        %1703 = vmatmul.bf16.gmra.mxu0 %v1655
        %v1704 = vpop.f32.mrf.mxu0
        %v1705 = vadd.f32 0.0, %v1704
        %v1706 = vpop.f32.mrf.mxu0
        %v1707 = vadd.f32 0.0, %v1706
        %1708 = vmatmul.bf16.gmra.mxu0 %v1656
        %v1709 = vpop.f32.mrf.mxu0
        %v1710 = vadd.f32 0.0, %v1709
        %v1711 = vpop.f32.mrf.mxu0
        %v1712 = vadd.f32 0.0, %v1711
        %1713 = vdwg.mxu0
        %1714 = vmatpush.bf16.msra.mxu0 %v1616
        %1715 = vmatpush.bf16.msra.mxu0 %v1614
        %1716 = vmatpush.bf16.msra.mxu0 %v1612
        %1717 = vmatpush.bf16.msra.mxu0 %v1610
        %1718 = vmatpush.bf16.msra.mxu0 %v1608
        %1719 = vmatpush.bf16.msra.mxu0 %v1606
        %1720 = vmatpush.bf16.msra.mxu0 %v1604
        %1721 = vmatpush.bf16.msra.mxu0 %v1602
        %1722 = vmatmul.bf16.gmra.mxu0 %v1649
        %v1723 = vpop.f32.mrf.mxu0
        %v1724 = vadd.f32 0.0, %v1723
        %v1725 = vpop.f32.mrf.mxu0
        %v1726 = vadd.f32 0.0, %v1725
        %1727 = vmatmul.bf16.gmra.mxu0 %v1650
        %v1728 = vpop.f32.mrf.mxu0
        %v1729 = vadd.f32 0.0, %v1728
        %v1730 = vpop.f32.mrf.mxu0
        %v1731 = vadd.f32 0.0, %v1730
        %1732 = vmatmul.bf16.gmra.mxu0 %v1651
        %v1733 = vpop.f32.mrf.mxu0
        %v1734 = vadd.f32 0.0, %v1733
        %v1735 = vpop.f32.mrf.mxu0
        %v1736 = vadd.f32 0.0, %v1735
        %1737 = vmatmul.bf16.gmra.mxu0 %v1652
        %v1738 = vpop.f32.mrf.mxu0
        %v1739 = vadd.f32 0.0, %v1738
        %v1740 = vpop.f32.mrf.mxu0
        %v1741 = vadd.f32 0.0, %v1740
        %1742 = vmatmul.bf16.gmra.mxu0 %v1653
        %v1743 = vpop.f32.mrf.mxu0
        %v1744 = vadd.f32 0.0, %v1743
        %v1745 = vpop.f32.mrf.mxu0
        %v1746 = vadd.f32 0.0, %v1745
        %1747 = vmatmul.bf16.gmra.mxu0 %v1654
        %v1748 = vpop.f32.mrf.mxu0
        %v1749 = vadd.f32 0.0, %v1748
        %v1750 = vpop.f32.mrf.mxu0
        %v1751 = vadd.f32 0.0, %v1750
        %1752 = vmatmul.bf16.gmra.mxu0 %v1655
        %v1753 = vpop.f32.mrf.mxu0
        %v1754 = vadd.f32 0.0, %v1753
        %v1755 = vpop.f32.mrf.mxu0
        %v1756 = vadd.f32 0.0, %v1755
        %1757 = vmatmul.bf16.gmra.mxu0 %v1656
        %v1758 = vpop.f32.mrf.mxu0
        %v1759 = vadd.f32 0.0, %v1758
        %v1760 = vpop.f32.mrf.mxu0
        %v1761 = vadd.f32 0.0, %v1760
        %1762 = vdwg.mxu0
        %v1763 = vadd.f32 %v1318, %v1675
        %v1764 = vadd.f32 %v1514, %v1724
        %v1765 = vadd.f32 %v1320, %v1677
        %v1766 = vadd.f32 %v1516, %v1726
        %v1767 = vadd.f32 %v1323, %v1680
        %v1768 = vadd.f32 %v1519, %v1729
        %v1769 = vadd.f32 %v1325, %v1682
        %v1770 = vadd.f32 %v1521, %v1731
        %v1771 = vadd.f32 %v1328, %v1685
        %v1772 = vadd.f32 %v1524, %v1734
        %v1773 = vadd.f32 %v1330, %v1687
        %v1774 = vadd.f32 %v1526, %v1736
        %v1775 = vadd.f32 %v1333, %v1690
        %v1776 = vadd.f32 %v1529, %v1739
        %v1777 = vadd.f32 %v1335, %v1692
        %v1778 = vadd.f32 %v1531, %v1741
        %v1779 = vadd.f32 %v1338, %v1695
        %v1780 = vadd.f32 %v1534, %v1744
        %v1781 = vadd.f32 %v1340, %v1697
        %v1782 = vadd.f32 %v1536, %v1746
        %v1783 = vadd.f32 %v1343, %v1700
        %v1784 = vadd.f32 %v1539, %v1749
        %v1785 = vadd.f32 %v1345, %v1702
        %v1786 = vadd.f32 %v1541, %v1751
        %v1787 = vadd.f32 %v1348, %v1705
        %v1788 = vadd.f32 %v1544, %v1754
        %v1789 = vadd.f32 %v1350, %v1707
        %v1790 = vadd.f32 %v1546, %v1756
        %v1791 = vadd.f32 %v1353, %v1710
        %v1792 = vadd.f32 %v1549, %v1759
        %v1793 = vadd.f32 %v1355, %v1712
        %v1794 = vadd.f32 %v1551, %v1761
        %v1795 = vtanh.pop %v1763
        %v1796 = vtanh.pop %v1764
        %v1797 = vtanh.pop %v1765
        %v1798 = vtanh.pop %v1766
        %v1799 = vtanh.pop %v1767
        %v1800 = vtanh.pop %v1768
        %v1801 = vtanh.pop %v1769
        %v1802 = vtanh.pop %v1770
        %v1803 = vtanh.pop %v1771
        %v1804 = vtanh.pop %v1772
        %v1805 = vtanh.pop %v1773
        %v1806 = vtanh.pop %v1774
        %v1807 = vtanh.pop %v1775
        %v1808 = vtanh.pop %v1776
        %v1809 = vtanh.pop %v1777
        %v1810 = vtanh.pop %v1778
        %v1811 = vtanh.pop %v1779
        %v1812 = vtanh.pop %v1780
        %v1813 = vtanh.pop %v1781
        %v1814 = vtanh.pop %v1782
        %v1815 = vtanh.pop %v1783
        %v1816 = vtanh.pop %v1784
        %v1817 = vtanh.pop %v1785
        %v1818 = vtanh.pop %v1786
        %v1819 = vtanh.pop %v1787
        %v1820 = vtanh.pop %v1788
        %v1821 = vtanh.pop %v1789
        %v1822 = vtanh.pop %v1790
        %v1823 = vtanh.pop %v1791
        %v1824 = vtanh.pop %v1792
        %v1825 = vtanh.pop %v1793
        %v1826 = vtanh.pop %v1794
        %v1827 = vmul.f32 %v1795, 0.125
        %v1828 = vmul.f32 %v1796, 0.125
        %v1829 = vmul.f32 %v1797, 0.125
        %v1830 = vmul.f32 %v1798, 0.125
        %v1831 = vmul.f32 %v1799, 0.125
        %v1832 = vmul.f32 %v1800, 0.125
        %v1833 = vmul.f32 %v1801, 0.125
        %v1834 = vmul.f32 %v1802, 0.125
        %v1835 = vmul.f32 %v1803, 0.125
        %v1836 = vmul.f32 %v1804, 0.125
        %v1837 = vmul.f32 %v1805, 0.125
        %v1838 = vmul.f32 %v1806, 0.125
        %v1839 = vmul.f32 %v1807, 0.125
        %v1840 = vmul.f32 %v1808, 0.125
        %v1841 = vmul.f32 %v1809, 0.125
        %v1842 = vmul.f32 %v1810, 0.125
        %v1843 = vmul.f32 %v1811, 0.125
        %v1844 = vmul.f32 %v1812, 0.125
        %v1845 = vmul.f32 %v1813, 0.125
        %v1846 = vmul.f32 %v1814, 0.125
        %v1847 = vmul.f32 %v1815, 0.125
        %v1848 = vmul.f32 %v1816, 0.125
        %v1849 = vmul.f32 %v1817, 0.125
        %v1850 = vmul.f32 %v1818, 0.125
        %v1851 = vmul.f32 %v1819, 0.125
        %v1852 = vmul.f32 %v1820, 0.125
        %v1853 = vmul.f32 %v1821, 0.125
        %v1854 = vmul.f32 %v1822, 0.125
        %v1855 = vmul.f32 %v1823, 0.125
        %v1856 = vmul.f32 %v1824, 0.125
        %v1857 = vmul.f32 %v1825, 0.125
        %v1858 = vmul.f32 %v1826, 0.125
        %v1859 = vadd.f32 %v1553, %v1827
        %v1860 = vadd.f32 %v1554, %v1828
        %v1861 = vadd.f32 %v1555, %v1829
        %v1862 = vadd.f32 %v1556, %v1830
        %v1863 = vadd.f32 %v1557, %v1831
        %v1864 = vadd.f32 %v1558, %v1832
        %v1865 = vadd.f32 %v1559, %v1833
        %v1866 = vadd.f32 %v1560, %v1834
        %v1867 = vadd.f32 %v1561, %v1835
        %v1868 = vadd.f32 %v1562, %v1836
        %v1869 = vadd.f32 %v1563, %v1837
        %v1870 = vadd.f32 %v1564, %v1838
        %v1871 = vadd.f32 %v1565, %v1839
        %v1872 = vadd.f32 %v1566, %v1840
        %v1873 = vadd.f32 %v1567, %v1841
        %v1874 = vadd.f32 %v1568, %v1842
        %v1875 = vadd.f32 %v1569, %v1843
        %v1876 = vadd.f32 %v1570, %v1844
        %v1877 = vadd.f32 %v1571, %v1845
        %v1878 = vadd.f32 %v1572, %v1846
        %v1879 = vadd.f32 %v1573, %v1847
        %v1880 = vadd.f32 %v1574, %v1848
        %v1881 = vadd.f32 %v1575, %v1849
        %v1882 = vadd.f32 %v1576, %v1850
        %v1883 = vadd.f32 %v1577, %v1851
        %v1884 = vadd.f32 %v1578, %v1852
        %v1885 = vadd.f32 %v1579, %v1853
        %v1886 = vadd.f32 %v1580, %v1854
        %v1887 = vadd.f32 %v1581, %v1855
        %v1888 = vadd.f32 %v1582, %v1856
        %v1889 = vadd.f32 %v1583, %v1857
        %v1890 = vadd.f32 %v1584, %v1858
        %v1891 = vpack.c.bf16 %v1861, %v1859
        %v1892 = vpack.c.bf16 %v1862, %v1860
        %v1893 = vpack.c.bf16 %v1865, %v1863
        %v1894 = vpack.c.bf16 %v1866, %v1864
        %v1895 = vpack.c.bf16 %v1869, %v1867
        %v1896 = vpack.c.bf16 %v1870, %v1868
        %v1897 = vpack.c.bf16 %v1873, %v1871
        %v1898 = vpack.c.bf16 %v1874, %v1872
        %v1899 = vpack.c.bf16 %v1877, %v1875
        %v1900 = vpack.c.bf16 %v1878, %v1876
        %v1901 = vpack.c.bf16 %v1881, %v1879
        %v1902 = vpack.c.bf16 %v1882, %v1880
        %v1903 = vpack.c.bf16 %v1885, %v1883
        %v1904 = vpack.c.bf16 %v1886, %v1884
        %v1905 = vpack.c.bf16 %v1889, %v1887
        %v1906 = vpack.c.bf16 %v1890, %v1888
        %1907 = vmatpush.bf16.msra.mxu0 %v1905
        %1908 = vmatpush.bf16.msra.mxu0 %v1903
        %1909 = vmatpush.bf16.msra.mxu0 %v1901
        %1910 = vmatpush.bf16.msra.mxu0 %v1899
        %1911 = vmatpush.bf16.msra.mxu0 %v1897
        %1912 = vmatpush.bf16.msra.mxu0 %v1895
        %1913 = vmatpush.bf16.msra.mxu0 %v1893
        %1914 = vmatpush.bf16.msra.mxu0 %v1891
        %1915 = vmatmul.bf16.gmra.mxu0 %v1649
        %v1916 = vpop.f32.mrf.mxu0
        %v1917 = vadd.f32 0.0, %v1916
        %v1918 = vpop.f32.mrf.mxu0
        %v1919 = vadd.f32 0.0, %v1918
        %1920 = vmatmul.bf16.gmra.mxu0 %v1650
        %v1921 = vpop.f32.mrf.mxu0
        %v1922 = vadd.f32 0.0, %v1921
        %v1923 = vpop.f32.mrf.mxu0
        %v1924 = vadd.f32 0.0, %v1923
        %1925 = vmatmul.bf16.gmra.mxu0 %v1651
        %v1926 = vpop.f32.mrf.mxu0
        %v1927 = vadd.f32 0.0, %v1926
        %v1928 = vpop.f32.mrf.mxu0
        %v1929 = vadd.f32 0.0, %v1928
        %1930 = vmatmul.bf16.gmra.mxu0 %v1652
        %v1931 = vpop.f32.mrf.mxu0
        %v1932 = vadd.f32 0.0, %v1931
        %v1933 = vpop.f32.mrf.mxu0
        %v1934 = vadd.f32 0.0, %v1933
        %1935 = vmatmul.bf16.gmra.mxu0 %v1653
        %v1936 = vpop.f32.mrf.mxu0
        %v1937 = vadd.f32 0.0, %v1936
        %v1938 = vpop.f32.mrf.mxu0
        %v1939 = vadd.f32 0.0, %v1938
        %1940 = vmatmul.bf16.gmra.mxu0 %v1654
        %v1941 = vpop.f32.mrf.mxu0
        %v1942 = vadd.f32 0.0, %v1941
        %v1943 = vpop.f32.mrf.mxu0
        %v1944 = vadd.f32 0.0, %v1943
        %1945 = vmatmul.bf16.gmra.mxu0 %v1655
        %v1946 = vpop.f32.mrf.mxu0
        %v1947 = vadd.f32 0.0, %v1946
        %v1948 = vpop.f32.mrf.mxu0
        %v1949 = vadd.f32 0.0, %v1948
        %1950 = vmatmul.bf16.gmra.mxu0 %v1656
        %v1951 = vpop.f32.mrf.mxu0
        %v1952 = vadd.f32 0.0, %v1951
        %v1953 = vpop.f32.mrf.mxu0
        %v1954 = vadd.f32 0.0, %v1953
        %1955 = vdwg.mxu0
        %1956 = vmatpush.bf16.msra.mxu0 %v1906
        %1957 = vmatpush.bf16.msra.mxu0 %v1904
        %1958 = vmatpush.bf16.msra.mxu0 %v1902
        %1959 = vmatpush.bf16.msra.mxu0 %v1900
        %1960 = vmatpush.bf16.msra.mxu0 %v1898
        %1961 = vmatpush.bf16.msra.mxu0 %v1896
        %1962 = vmatpush.bf16.msra.mxu0 %v1894
        %1963 = vmatpush.bf16.msra.mxu0 %v1892
        %1964 = vmatmul.bf16.gmra.mxu0 %v1649
        %v1965 = vpop.f32.mrf.mxu0
        %v1966 = vadd.f32 0.0, %v1965
        %v1967 = vpop.f32.mrf.mxu0
        %v1968 = vadd.f32 0.0, %v1967
        %1969 = vmatmul.bf16.gmra.mxu0 %v1650
        %v1970 = vpop.f32.mrf.mxu0
        %v1971 = vadd.f32 0.0, %v1970
        %v1972 = vpop.f32.mrf.mxu0
        %v1973 = vadd.f32 0.0, %v1972
        %1974 = vmatmul.bf16.gmra.mxu0 %v1651
        %v1975 = vpop.f32.mrf.mxu0
        %v1976 = vadd.f32 0.0, %v1975
        %v1977 = vpop.f32.mrf.mxu0
        %v1978 = vadd.f32 0.0, %v1977
        %1979 = vmatmul.bf16.gmra.mxu0 %v1652
        %v1980 = vpop.f32.mrf.mxu0
        %v1981 = vadd.f32 0.0, %v1980
        %v1982 = vpop.f32.mrf.mxu0
        %v1983 = vadd.f32 0.0, %v1982
        %1984 = vmatmul.bf16.gmra.mxu0 %v1653
        %v1985 = vpop.f32.mrf.mxu0
        %v1986 = vadd.f32 0.0, %v1985
        %v1987 = vpop.f32.mrf.mxu0
        %v1988 = vadd.f32 0.0, %v1987
        %1989 = vmatmul.bf16.gmra.mxu0 %v1654
        %v1990 = vpop.f32.mrf.mxu0
        %v1991 = vadd.f32 0.0, %v1990
        %v1992 = vpop.f32.mrf.mxu0
        %v1993 = vadd.f32 0.0, %v1992
        %1994 = vmatmul.bf16.gmra.mxu0 %v1655
        %v1995 = vpop.f32.mrf.mxu0
        %v1996 = vadd.f32 0.0, %v1995
        %v1997 = vpop.f32.mrf.mxu0
        %v1998 = vadd.f32 0.0, %v1997
        %1999 = vmatmul.bf16.gmra.mxu0 %v1656
        %v2000 = vpop.f32.mrf.mxu0
        %v2001 = vadd.f32 0.0, %v2000
        %v2002 = vpop.f32.mrf.mxu0
        %v2003 = vadd.f32 0.0, %v2002
        %2004 = vdwg.mxu0
        %v2005 = vadd.f32 %v1318, %v1917
        %v2006 = vadd.f32 %v1514, %v1966
        %v2007 = vadd.f32 %v1320, %v1919
        %v2008 = vadd.f32 %v1516, %v1968
        %v2009 = vadd.f32 %v1323, %v1922
        %v2010 = vadd.f32 %v1519, %v1971
        %v2011 = vadd.f32 %v1325, %v1924
        %v2012 = vadd.f32 %v1521, %v1973
        %v2013 = vadd.f32 %v1328, %v1927
        %v2014 = vadd.f32 %v1524, %v1976
        %v2015 = vadd.f32 %v1330, %v1929
        %v2016 = vadd.f32 %v1526, %v1978
        %v2017 = vadd.f32 %v1333, %v1932
        %v2018 = vadd.f32 %v1529, %v1981
        %v2019 = vadd.f32 %v1335, %v1934
        %v2020 = vadd.f32 %v1531, %v1983
        %v2021 = vadd.f32 %v1338, %v1937
        %v2022 = vadd.f32 %v1534, %v1986
        %v2023 = vadd.f32 %v1340, %v1939
        %v2024 = vadd.f32 %v1536, %v1988
        %v2025 = vadd.f32 %v1343, %v1942
        %v2026 = vadd.f32 %v1539, %v1991
        %v2027 = vadd.f32 %v1345, %v1944
        %v2028 = vadd.f32 %v1541, %v1993
        %v2029 = vadd.f32 %v1348, %v1947
        %v2030 = vadd.f32 %v1544, %v1996
        %v2031 = vadd.f32 %v1350, %v1949
        %v2032 = vadd.f32 %v1546, %v1998
        %v2033 = vadd.f32 %v1353, %v1952
        %v2034 = vadd.f32 %v1549, %v2001
        %v2035 = vadd.f32 %v1355, %v1954
        %v2036 = vadd.f32 %v1551, %v2003
        %v2037 = vtanh.pop %v2005
        %v2038 = vtanh.pop %v2006
        %v2039 = vtanh.pop %v2007
        %v2040 = vtanh.pop %v2008
        %v2041 = vtanh.pop %v2009
        %v2042 = vtanh.pop %v2010
        %v2043 = vtanh.pop %v2011
        %v2044 = vtanh.pop %v2012
        %v2045 = vtanh.pop %v2013
        %v2046 = vtanh.pop %v2014
        %v2047 = vtanh.pop %v2015
        %v2048 = vtanh.pop %v2016
        %v2049 = vtanh.pop %v2017
        %v2050 = vtanh.pop %v2018
        %v2051 = vtanh.pop %v2019
        %v2052 = vtanh.pop %v2020
        %v2053 = vtanh.pop %v2021
        %v2054 = vtanh.pop %v2022
        %v2055 = vtanh.pop %v2023
        %v2056 = vtanh.pop %v2024
        %v2057 = vtanh.pop %v2025
        %v2058 = vtanh.pop %v2026
        %v2059 = vtanh.pop %v2027
        %v2060 = vtanh.pop %v2028
        %v2061 = vtanh.pop %v2029
        %v2062 = vtanh.pop %v2030
        %v2063 = vtanh.pop %v2031
        %v2064 = vtanh.pop %v2032
        %v2065 = vtanh.pop %v2033
        %v2066 = vtanh.pop %v2034
        %v2067 = vtanh.pop %v2035
        %v2068 = vtanh.pop %v2036
        %v2069 = vmul.f32 %v2037, 0.125
        %v2070 = vmul.f32 %v2038, 0.125
        %v2071 = vmul.f32 %v2039, 0.125
        %v2072 = vmul.f32 %v2040, 0.125
        %v2073 = vmul.f32 %v2041, 0.125
        %v2074 = vmul.f32 %v2042, 0.125
        %v2075 = vmul.f32 %v2043, 0.125
        %v2076 = vmul.f32 %v2044, 0.125
        %v2077 = vmul.f32 %v2045, 0.125
        %v2078 = vmul.f32 %v2046, 0.125
        %v2079 = vmul.f32 %v2047, 0.125
        %v2080 = vmul.f32 %v2048, 0.125
        %v2081 = vmul.f32 %v2049, 0.125
        %v2082 = vmul.f32 %v2050, 0.125
        %v2083 = vmul.f32 %v2051, 0.125
        %v2084 = vmul.f32 %v2052, 0.125
        %v2085 = vmul.f32 %v2053, 0.125
        %v2086 = vmul.f32 %v2054, 0.125
        %v2087 = vmul.f32 %v2055, 0.125
        %v2088 = vmul.f32 %v2056, 0.125
        %v2089 = vmul.f32 %v2057, 0.125
        %v2090 = vmul.f32 %v2058, 0.125
        %v2091 = vmul.f32 %v2059, 0.125
        %v2092 = vmul.f32 %v2060, 0.125
        %v2093 = vmul.f32 %v2061, 0.125
        %v2094 = vmul.f32 %v2062, 0.125
        %v2095 = vmul.f32 %v2063, 0.125
        %v2096 = vmul.f32 %v2064, 0.125
        %v2097 = vmul.f32 %v2065, 0.125
        %v2098 = vmul.f32 %v2066, 0.125
        %v2099 = vmul.f32 %v2067, 0.125
        %v2100 = vmul.f32 %v2068, 0.125
        %v2101 = vadd.f32 %v1859, %v2069
        %v2102 = vadd.f32 %v1860, %v2070
        %v2103 = vadd.f32 %v1861, %v2071
        %v2104 = vadd.f32 %v1862, %v2072
        %v2105 = vadd.f32 %v1863, %v2073
        %v2106 = vadd.f32 %v1864, %v2074
        %v2107 = vadd.f32 %v1865, %v2075
        %v2108 = vadd.f32 %v1866, %v2076
        %v2109 = vadd.f32 %v1867, %v2077
        %v2110 = vadd.f32 %v1868, %v2078
        %v2111 = vadd.f32 %v1869, %v2079
        %v2112 = vadd.f32 %v1870, %v2080
        %v2113 = vadd.f32 %v1871, %v2081
        %v2114 = vadd.f32 %v1872, %v2082
        %v2115 = vadd.f32 %v1873, %v2083
        %v2116 = vadd.f32 %v1874, %v2084
        %v2117 = vadd.f32 %v1875, %v2085
        %v2118 = vadd.f32 %v1876, %v2086
        %v2119 = vadd.f32 %v1877, %v2087
        %v2120 = vadd.f32 %v1878, %v2088
        %v2121 = vadd.f32 %v1879, %v2089
        %v2122 = vadd.f32 %v1880, %v2090
        %v2123 = vadd.f32 %v1881, %v2091
        %v2124 = vadd.f32 %v1882, %v2092
        %v2125 = vadd.f32 %v1883, %v2093
        %v2126 = vadd.f32 %v1884, %v2094
        %v2127 = vadd.f32 %v1885, %v2095
        %v2128 = vadd.f32 %v1886, %v2096
        %v2129 = vadd.f32 %v1887, %v2097
        %v2130 = vadd.f32 %v1888, %v2098
        %v2131 = vadd.f32 %v1889, %v2099
        %v2132 = vadd.f32 %v1890, %v2100
        %v2133 = vpack.c.bf16 %v2103, %v2101
        %v2134 = vpack.c.bf16 %v2104, %v2102
        %v2135 = vpack.c.bf16 %v2107, %v2105
        %v2136 = vpack.c.bf16 %v2108, %v2106
        %v2137 = vpack.c.bf16 %v2111, %v2109
        %v2138 = vpack.c.bf16 %v2112, %v2110
        %v2139 = vpack.c.bf16 %v2115, %v2113
        %v2140 = vpack.c.bf16 %v2116, %v2114
        %v2141 = vpack.c.bf16 %v2119, %v2117
        %v2142 = vpack.c.bf16 %v2120, %v2118
        %v2143 = vpack.c.bf16 %v2123, %v2121
        %v2144 = vpack.c.bf16 %v2124, %v2122
        %v2145 = vpack.c.bf16 %v2127, %v2125
        %v2146 = vpack.c.bf16 %v2128, %v2126
        %v2147 = vpack.c.bf16 %v2131, %v2129
        %v2148 = vpack.c.bf16 %v2132, %v2130
        %2149 = vmatpush.bf16.msra.mxu0 %v2147
        %2150 = vmatpush.bf16.msra.mxu0 %v2145
        %2151 = vmatpush.bf16.msra.mxu0 %v2143
        %2152 = vmatpush.bf16.msra.mxu0 %v2141
        %2153 = vmatpush.bf16.msra.mxu0 %v2139
        %2154 = vmatpush.bf16.msra.mxu0 %v2137
        %2155 = vmatpush.bf16.msra.mxu0 %v2135
        %2156 = vmatpush.bf16.msra.mxu0 %v2133
        %2157 = vmatmul.bf16.gmra.mxu0 %v1649
        %v2158 = vpop.f32.mrf.mxu0
        %v2159 = vadd.f32 0.0, %v2158
        %v2160 = vpop.f32.mrf.mxu0
        %v2161 = vadd.f32 0.0, %v2160
        %2162 = vmatmul.bf16.gmra.mxu0 %v1650
        %v2163 = vpop.f32.mrf.mxu0
        %v2164 = vadd.f32 0.0, %v2163
        %v2165 = vpop.f32.mrf.mxu0
        %v2166 = vadd.f32 0.0, %v2165
        %2167 = vmatmul.bf16.gmra.mxu0 %v1651
        %v2168 = vpop.f32.mrf.mxu0
        %v2169 = vadd.f32 0.0, %v2168
        %v2170 = vpop.f32.mrf.mxu0
        %v2171 = vadd.f32 0.0, %v2170
        %2172 = vmatmul.bf16.gmra.mxu0 %v1652
        %v2173 = vpop.f32.mrf.mxu0
        %v2174 = vadd.f32 0.0, %v2173
        %v2175 = vpop.f32.mrf.mxu0
        %v2176 = vadd.f32 0.0, %v2175
        %2177 = vmatmul.bf16.gmra.mxu0 %v1653
        %v2178 = vpop.f32.mrf.mxu0
        %v2179 = vadd.f32 0.0, %v2178
        %v2180 = vpop.f32.mrf.mxu0
        %v2181 = vadd.f32 0.0, %v2180
        %2182 = vmatmul.bf16.gmra.mxu0 %v1654
        %v2183 = vpop.f32.mrf.mxu0
        %v2184 = vadd.f32 0.0, %v2183
        %v2185 = vpop.f32.mrf.mxu0
        %v2186 = vadd.f32 0.0, %v2185
        %2187 = vmatmul.bf16.gmra.mxu0 %v1655
        %v2188 = vpop.f32.mrf.mxu0
        %v2189 = vadd.f32 0.0, %v2188
        %v2190 = vpop.f32.mrf.mxu0
        %v2191 = vadd.f32 0.0, %v2190
        %2192 = vmatmul.bf16.gmra.mxu0 %v1656
        %v2193 = vpop.f32.mrf.mxu0
        %v2194 = vadd.f32 0.0, %v2193
        %v2195 = vpop.f32.mrf.mxu0
        %v2196 = vadd.f32 0.0, %v2195
        %2197 = vdwg.mxu0
        %2198 = vmatpush.bf16.msra.mxu0 %v2148
        %2199 = vmatpush.bf16.msra.mxu0 %v2146
        %2200 = vmatpush.bf16.msra.mxu0 %v2144
        %2201 = vmatpush.bf16.msra.mxu0 %v2142
        %2202 = vmatpush.bf16.msra.mxu0 %v2140
        %2203 = vmatpush.bf16.msra.mxu0 %v2138
        %2204 = vmatpush.bf16.msra.mxu0 %v2136
        %2205 = vmatpush.bf16.msra.mxu0 %v2134
        %2206 = vmatmul.bf16.gmra.mxu0 %v1649
        %v2207 = vpop.f32.mrf.mxu0
        %v2208 = vadd.f32 0.0, %v2207
        %v2209 = vpop.f32.mrf.mxu0
        %v2210 = vadd.f32 0.0, %v2209
        %2211 = vmatmul.bf16.gmra.mxu0 %v1650
        %v2212 = vpop.f32.mrf.mxu0
        %v2213 = vadd.f32 0.0, %v2212
        %v2214 = vpop.f32.mrf.mxu0
        %v2215 = vadd.f32 0.0, %v2214
        %2216 = vmatmul.bf16.gmra.mxu0 %v1651
        %v2217 = vpop.f32.mrf.mxu0
        %v2218 = vadd.f32 0.0, %v2217
        %v2219 = vpop.f32.mrf.mxu0
        %v2220 = vadd.f32 0.0, %v2219
        %2221 = vmatmul.bf16.gmra.mxu0 %v1652
        %v2222 = vpop.f32.mrf.mxu0
        %v2223 = vadd.f32 0.0, %v2222
        %v2224 = vpop.f32.mrf.mxu0
        %v2225 = vadd.f32 0.0, %v2224
        %2226 = vmatmul.bf16.gmra.mxu0 %v1653
        %v2227 = vpop.f32.mrf.mxu0
        %v2228 = vadd.f32 0.0, %v2227
        %v2229 = vpop.f32.mrf.mxu0
        %v2230 = vadd.f32 0.0, %v2229
        %2231 = vmatmul.bf16.gmra.mxu0 %v1654
        %v2232 = vpop.f32.mrf.mxu0
        %v2233 = vadd.f32 0.0, %v2232
        %v2234 = vpop.f32.mrf.mxu0
        %v2235 = vadd.f32 0.0, %v2234
        %2236 = vmatmul.bf16.gmra.mxu0 %v1655
        %v2237 = vpop.f32.mrf.mxu0
        %v2238 = vadd.f32 0.0, %v2237
        %v2239 = vpop.f32.mrf.mxu0
        %v2240 = vadd.f32 0.0, %v2239
        %2241 = vmatmul.bf16.gmra.mxu0 %v1656
        %v2242 = vpop.f32.mrf.mxu0
        %v2243 = vadd.f32 0.0, %v2242
        %v2244 = vpop.f32.mrf.mxu0
        %v2245 = vadd.f32 0.0, %v2244
        %2246 = vdwg.mxu0
        %v2247 = vadd.f32 %v1318, %v2159
        %v2248 = vadd.f32 %v1514, %v2208
        %v2249 = vadd.f32 %v1320, %v2161
        %v2250 = vadd.f32 %v1516, %v2210
        %v2251 = vadd.f32 %v1323, %v2164
        %v2252 = vadd.f32 %v1519, %v2213
        %v2253 = vadd.f32 %v1325, %v2166
        %v2254 = vadd.f32 %v1521, %v2215
        %v2255 = vadd.f32 %v1328, %v2169
        %v2256 = vadd.f32 %v1524, %v2218
        %v2257 = vadd.f32 %v1330, %v2171
        %v2258 = vadd.f32 %v1526, %v2220
        %v2259 = vadd.f32 %v1333, %v2174
        %v2260 = vadd.f32 %v1529, %v2223
        %v2261 = vadd.f32 %v1335, %v2176
        %v2262 = vadd.f32 %v1531, %v2225
        %v2263 = vadd.f32 %v1338, %v2179
        %v2264 = vadd.f32 %v1534, %v2228
        %v2265 = vadd.f32 %v1340, %v2181
        %v2266 = vadd.f32 %v1536, %v2230
        %v2267 = vadd.f32 %v1343, %v2184
        %v2268 = vadd.f32 %v1539, %v2233
        %v2269 = vadd.f32 %v1345, %v2186
        %v2270 = vadd.f32 %v1541, %v2235
        %v2271 = vadd.f32 %v1348, %v2189
        %v2272 = vadd.f32 %v1544, %v2238
        %v2273 = vadd.f32 %v1350, %v2191
        %v2274 = vadd.f32 %v1546, %v2240
        %v2275 = vadd.f32 %v1353, %v2194
        %v2276 = vadd.f32 %v1549, %v2243
        %v2277 = vadd.f32 %v1355, %v2196
        %v2278 = vadd.f32 %v1551, %v2245
        %v2279 = vtanh.pop %v2247
        %v2280 = vtanh.pop %v2248
        %v2281 = vtanh.pop %v2249
        %v2282 = vtanh.pop %v2250
        %v2283 = vtanh.pop %v2251
        %v2284 = vtanh.pop %v2252
        %v2285 = vtanh.pop %v2253
        %v2286 = vtanh.pop %v2254
        %v2287 = vtanh.pop %v2255
        %v2288 = vtanh.pop %v2256
        %v2289 = vtanh.pop %v2257
        %v2290 = vtanh.pop %v2258
        %v2291 = vtanh.pop %v2259
        %v2292 = vtanh.pop %v2260
        %v2293 = vtanh.pop %v2261
        %v2294 = vtanh.pop %v2262
        %v2295 = vtanh.pop %v2263
        %v2296 = vtanh.pop %v2264
        %v2297 = vtanh.pop %v2265
        %v2298 = vtanh.pop %v2266
        %v2299 = vtanh.pop %v2267
        %v2300 = vtanh.pop %v2268
        %v2301 = vtanh.pop %v2269
        %v2302 = vtanh.pop %v2270
        %v2303 = vtanh.pop %v2271
        %v2304 = vtanh.pop %v2272
        %v2305 = vtanh.pop %v2273
        %v2306 = vtanh.pop %v2274
        %v2307 = vtanh.pop %v2275
        %v2308 = vtanh.pop %v2276
        %v2309 = vtanh.pop %v2277
        %v2310 = vtanh.pop %v2278
        %v2311 = vmul.f32 %v2279, 0.125
        %v2312 = vmul.f32 %v2280, 0.125
        %v2313 = vmul.f32 %v2281, 0.125
        %v2314 = vmul.f32 %v2282, 0.125
        %v2315 = vmul.f32 %v2283, 0.125
        %v2316 = vmul.f32 %v2284, 0.125
        %v2317 = vmul.f32 %v2285, 0.125
        %v2318 = vmul.f32 %v2286, 0.125
        %v2319 = vmul.f32 %v2287, 0.125
        %v2320 = vmul.f32 %v2288, 0.125
        %v2321 = vmul.f32 %v2289, 0.125
        %v2322 = vmul.f32 %v2290, 0.125
        %v2323 = vmul.f32 %v2291, 0.125
        %v2324 = vmul.f32 %v2292, 0.125
        %v2325 = vmul.f32 %v2293, 0.125
        %v2326 = vmul.f32 %v2294, 0.125
        %v2327 = vmul.f32 %v2295, 0.125
        %v2328 = vmul.f32 %v2296, 0.125
        %v2329 = vmul.f32 %v2297, 0.125
        %v2330 = vmul.f32 %v2298, 0.125
        %v2331 = vmul.f32 %v2299, 0.125
        %v2332 = vmul.f32 %v2300, 0.125
        %v2333 = vmul.f32 %v2301, 0.125
        %v2334 = vmul.f32 %v2302, 0.125
        %v2335 = vmul.f32 %v2303, 0.125
        %v2336 = vmul.f32 %v2304, 0.125
        %v2337 = vmul.f32 %v2305, 0.125
        %v2338 = vmul.f32 %v2306, 0.125
        %v2339 = vmul.f32 %v2307, 0.125
        %v2340 = vmul.f32 %v2308, 0.125
        %v2341 = vmul.f32 %v2309, 0.125
        %v2342 = vmul.f32 %v2310, 0.125
        %v2343 = vadd.f32 %v2101, %v2311
        %v2344 = vadd.f32 %v2102, %v2312
        %v2345 = vadd.f32 %v2103, %v2313
        %v2346 = vadd.f32 %v2104, %v2314
        %v2347 = vadd.f32 %v2105, %v2315
        %v2348 = vadd.f32 %v2106, %v2316
        %v2349 = vadd.f32 %v2107, %v2317
        %v2350 = vadd.f32 %v2108, %v2318
        %v2351 = vadd.f32 %v2109, %v2319
        %v2352 = vadd.f32 %v2110, %v2320
        %v2353 = vadd.f32 %v2111, %v2321
        %v2354 = vadd.f32 %v2112, %v2322
        %v2355 = vadd.f32 %v2113, %v2323
        %v2356 = vadd.f32 %v2114, %v2324
        %v2357 = vadd.f32 %v2115, %v2325
        %v2358 = vadd.f32 %v2116, %v2326
        %v2359 = vadd.f32 %v2117, %v2327
        %v2360 = vadd.f32 %v2118, %v2328
        %v2361 = vadd.f32 %v2119, %v2329
        %v2362 = vadd.f32 %v2120, %v2330
        %v2363 = vadd.f32 %v2121, %v2331
        %v2364 = vadd.f32 %v2122, %v2332
        %v2365 = vadd.f32 %v2123, %v2333
        %v2366 = vadd.f32 %v2124, %v2334
        %v2367 = vadd.f32 %v2125, %v2335
        %v2368 = vadd.f32 %v2126, %v2336
        %v2369 = vadd.f32 %v2127, %v2337
        %v2370 = vadd.f32 %v2128, %v2338
        %v2371 = vadd.f32 %v2129, %v2339
        %v2372 = vadd.f32 %v2130, %v2340
        %v2373 = vadd.f32 %v2131, %v2341
        %v2374 = vadd.f32 %v2132, %v2342
        %v2375 = vpack.c.bf16 %v2345, %v2343
        %v2376 = vpack.c.bf16 %v2346, %v2344
        %v2377 = vpack.c.bf16 %v2349, %v2347
        %v2378 = vpack.c.bf16 %v2350, %v2348
        %v2379 = vpack.c.bf16 %v2353, %v2351
        %v2380 = vpack.c.bf16 %v2354, %v2352
        %v2381 = vpack.c.bf16 %v2357, %v2355
        %v2382 = vpack.c.bf16 %v2358, %v2356
        %v2383 = vpack.c.bf16 %v2361, %v2359
        %v2384 = vpack.c.bf16 %v2362, %v2360
        %v2385 = vpack.c.bf16 %v2365, %v2363
        %v2386 = vpack.c.bf16 %v2366, %v2364
        %v2387 = vpack.c.bf16 %v2369, %v2367
        %v2388 = vpack.c.bf16 %v2370, %v2368
        %v2389 = vpack.c.bf16 %v2373, %v2371
        %v2390 = vpack.c.bf16 %v2374, %v2372
        %2391 = vmatpush.bf16.msra.mxu0 %v2389
        %2392 = vmatpush.bf16.msra.mxu0 %v2387
        %2393 = vmatpush.bf16.msra.mxu0 %v2385
        %2394 = vmatpush.bf16.msra.mxu0 %v2383
        %2395 = vmatpush.bf16.msra.mxu0 %v2381
        %2396 = vmatpush.bf16.msra.mxu0 %v2379
        %2397 = vmatpush.bf16.msra.mxu0 %v2377
        %2398 = vmatpush.bf16.msra.mxu0 %v2375
        %2399 = vmatmul.bf16.gmra.mxu0 %v1649
        %v2400 = vpop.f32.mrf.mxu0
        %v2401 = vadd.f32 0.0, %v2400
        %v2402 = vpop.f32.mrf.mxu0
        %v2403 = vadd.f32 0.0, %v2402
        %2404 = vmatmul.bf16.gmra.mxu0 %v1650
        %v2405 = vpop.f32.mrf.mxu0
        %v2406 = vadd.f32 0.0, %v2405
        %v2407 = vpop.f32.mrf.mxu0
        %v2408 = vadd.f32 0.0, %v2407
        %2409 = vmatmul.bf16.gmra.mxu0 %v1651
        %v2410 = vpop.f32.mrf.mxu0
        %v2411 = vadd.f32 0.0, %v2410
        %v2412 = vpop.f32.mrf.mxu0
        %v2413 = vadd.f32 0.0, %v2412
        %2414 = vmatmul.bf16.gmra.mxu0 %v1652
        %v2415 = vpop.f32.mrf.mxu0
        %v2416 = vadd.f32 0.0, %v2415
        %v2417 = vpop.f32.mrf.mxu0
        %v2418 = vadd.f32 0.0, %v2417
        %2419 = vmatmul.bf16.gmra.mxu0 %v1653
        %v2420 = vpop.f32.mrf.mxu0
        %v2421 = vadd.f32 0.0, %v2420
        %v2422 = vpop.f32.mrf.mxu0
        %v2423 = vadd.f32 0.0, %v2422
        %2424 = vmatmul.bf16.gmra.mxu0 %v1654
        %v2425 = vpop.f32.mrf.mxu0
        %v2426 = vadd.f32 0.0, %v2425
        %v2427 = vpop.f32.mrf.mxu0
        %v2428 = vadd.f32 0.0, %v2427
        %2429 = vmatmul.bf16.gmra.mxu0 %v1655
        %v2430 = vpop.f32.mrf.mxu0
        %v2431 = vadd.f32 0.0, %v2430
        %v2432 = vpop.f32.mrf.mxu0
        %v2433 = vadd.f32 0.0, %v2432
        %2434 = vmatmul.bf16.gmra.mxu0 %v1656
        %v2435 = vpop.f32.mrf.mxu0
        %v2436 = vadd.f32 0.0, %v2435
        %v2437 = vpop.f32.mrf.mxu0
        %v2438 = vadd.f32 0.0, %v2437
        %2439 = vdwg.mxu0
        %2440 = vmatpush.bf16.msra.mxu0 %v2390
        %2441 = vmatpush.bf16.msra.mxu0 %v2388
        %2442 = vmatpush.bf16.msra.mxu0 %v2386
        %2443 = vmatpush.bf16.msra.mxu0 %v2384
        %2444 = vmatpush.bf16.msra.mxu0 %v2382
        %2445 = vmatpush.bf16.msra.mxu0 %v2380
        %2446 = vmatpush.bf16.msra.mxu0 %v2378
        %2447 = vmatpush.bf16.msra.mxu0 %v2376
        %2448 = vmatmul.bf16.gmra.mxu0 %v1649
        %v2449 = vpop.f32.mrf.mxu0
        %v2450 = vadd.f32 0.0, %v2449
        %v2451 = vpop.f32.mrf.mxu0
        %v2452 = vadd.f32 0.0, %v2451
        %2453 = vmatmul.bf16.gmra.mxu0 %v1650
        %v2454 = vpop.f32.mrf.mxu0
        %v2455 = vadd.f32 0.0, %v2454
        %v2456 = vpop.f32.mrf.mxu0
        %v2457 = vadd.f32 0.0, %v2456
        %2458 = vmatmul.bf16.gmra.mxu0 %v1651
        %v2459 = vpop.f32.mrf.mxu0
        %v2460 = vadd.f32 0.0, %v2459
        %v2461 = vpop.f32.mrf.mxu0
        %v2462 = vadd.f32 0.0, %v2461
        %2463 = vmatmul.bf16.gmra.mxu0 %v1652
        %v2464 = vpop.f32.mrf.mxu0
        %v2465 = vadd.f32 0.0, %v2464
        %v2466 = vpop.f32.mrf.mxu0
        %v2467 = vadd.f32 0.0, %v2466
        %2468 = vmatmul.bf16.gmra.mxu0 %v1653
        %v2469 = vpop.f32.mrf.mxu0
        %v2470 = vadd.f32 0.0, %v2469
        %v2471 = vpop.f32.mrf.mxu0
        %v2472 = vadd.f32 0.0, %v2471
        %2473 = vmatmul.bf16.gmra.mxu0 %v1654
        %v2474 = vpop.f32.mrf.mxu0
        %v2475 = vadd.f32 0.0, %v2474
        %v2476 = vpop.f32.mrf.mxu0
        %v2477 = vadd.f32 0.0, %v2476
        %2478 = vmatmul.bf16.gmra.mxu0 %v1655
        %v2479 = vpop.f32.mrf.mxu0
        %v2480 = vadd.f32 0.0, %v2479
        %v2481 = vpop.f32.mrf.mxu0
        %v2482 = vadd.f32 0.0, %v2481
        %2483 = vmatmul.bf16.gmra.mxu0 %v1656
        %v2484 = vpop.f32.mrf.mxu0
        %v2485 = vadd.f32 0.0, %v2484
        %v2486 = vpop.f32.mrf.mxu0
        %v2487 = vadd.f32 0.0, %v2486
        %2488 = vdwg.mxu0
        %v2489 = vadd.f32 %v1318, %v2401
        %v2490 = vadd.f32 %v1514, %v2450
        %v2491 = vadd.f32 %v1320, %v2403
        %v2492 = vadd.f32 %v1516, %v2452
        %v2493 = vadd.f32 %v1323, %v2406
        %v2494 = vadd.f32 %v1519, %v2455
        %v2495 = vadd.f32 %v1325, %v2408
        %v2496 = vadd.f32 %v1521, %v2457
        %v2497 = vadd.f32 %v1328, %v2411
        %v2498 = vadd.f32 %v1524, %v2460
        %v2499 = vadd.f32 %v1330, %v2413
        %v2500 = vadd.f32 %v1526, %v2462
        %v2501 = vadd.f32 %v1333, %v2416
        %v2502 = vadd.f32 %v1529, %v2465
        %v2503 = vadd.f32 %v1335, %v2418
        %v2504 = vadd.f32 %v1531, %v2467
        %v2505 = vadd.f32 %v1338, %v2421
        %v2506 = vadd.f32 %v1534, %v2470
        %v2507 = vadd.f32 %v1340, %v2423
        %v2508 = vadd.f32 %v1536, %v2472
        %v2509 = vadd.f32 %v1343, %v2426
        %v2510 = vadd.f32 %v1539, %v2475
        %v2511 = vadd.f32 %v1345, %v2428
        %v2512 = vadd.f32 %v1541, %v2477
        %v2513 = vadd.f32 %v1348, %v2431
        %v2514 = vadd.f32 %v1544, %v2480
        %v2515 = vadd.f32 %v1350, %v2433
        %v2516 = vadd.f32 %v1546, %v2482
        %v2517 = vadd.f32 %v1353, %v2436
        %v2518 = vadd.f32 %v1549, %v2485
        %v2519 = vadd.f32 %v1355, %v2438
        %v2520 = vadd.f32 %v1551, %v2487
        %v2521 = vtanh.pop %v2489
        %v2522 = vtanh.pop %v2490
        %v2523 = vtanh.pop %v2491
        %v2524 = vtanh.pop %v2492
        %v2525 = vtanh.pop %v2493
        %v2526 = vtanh.pop %v2494
        %v2527 = vtanh.pop %v2495
        %v2528 = vtanh.pop %v2496
        %v2529 = vtanh.pop %v2497
        %v2530 = vtanh.pop %v2498
        %v2531 = vtanh.pop %v2499
        %v2532 = vtanh.pop %v2500
        %v2533 = vtanh.pop %v2501
        %v2534 = vtanh.pop %v2502
        %v2535 = vtanh.pop %v2503
        %v2536 = vtanh.pop %v2504
        %v2537 = vtanh.pop %v2505
        %v2538 = vtanh.pop %v2506
        %v2539 = vtanh.pop %v2507
        %v2540 = vtanh.pop %v2508
        %v2541 = vtanh.pop %v2509
        %v2542 = vtanh.pop %v2510
        %v2543 = vtanh.pop %v2511
        %v2544 = vtanh.pop %v2512
        %v2545 = vtanh.pop %v2513
        %v2546 = vtanh.pop %v2514
        %v2547 = vtanh.pop %v2515
        %v2548 = vtanh.pop %v2516
        %v2549 = vtanh.pop %v2517
        %v2550 = vtanh.pop %v2518
        %v2551 = vtanh.pop %v2519
        %v2552 = vtanh.pop %v2520
        %v2553 = vmul.f32 %v2521, 0.125
        %v2554 = vmul.f32 %v2522, 0.125
        %v2555 = vmul.f32 %v2523, 0.125
        %v2556 = vmul.f32 %v2524, 0.125
        %v2557 = vmul.f32 %v2525, 0.125
        %v2558 = vmul.f32 %v2526, 0.125
        %v2559 = vmul.f32 %v2527, 0.125
        %v2560 = vmul.f32 %v2528, 0.125
        %v2561 = vmul.f32 %v2529, 0.125
        %v2562 = vmul.f32 %v2530, 0.125
        %v2563 = vmul.f32 %v2531, 0.125
        %v2564 = vmul.f32 %v2532, 0.125
        %v2565 = vmul.f32 %v2533, 0.125
        %v2566 = vmul.f32 %v2534, 0.125
        %v2567 = vmul.f32 %v2535, 0.125
        %v2568 = vmul.f32 %v2536, 0.125
        %v2569 = vmul.f32 %v2537, 0.125
        %v2570 = vmul.f32 %v2538, 0.125
        %v2571 = vmul.f32 %v2539, 0.125
        %v2572 = vmul.f32 %v2540, 0.125
        %v2573 = vmul.f32 %v2541, 0.125
        %v2574 = vmul.f32 %v2542, 0.125
        %v2575 = vmul.f32 %v2543, 0.125
        %v2576 = vmul.f32 %v2544, 0.125
        %v2577 = vmul.f32 %v2545, 0.125
        %v2578 = vmul.f32 %v2546, 0.125
        %v2579 = vmul.f32 %v2547, 0.125
        %v2580 = vmul.f32 %v2548, 0.125
        %v2581 = vmul.f32 %v2549, 0.125
        %v2582 = vmul.f32 %v2550, 0.125
        %v2583 = vmul.f32 %v2551, 0.125
        %v2584 = vmul.f32 %v2552, 0.125
        %v2585 = vadd.f32 %v2343, %v2553
        %v2586 = vadd.f32 %v2344, %v2554
        %v2587 = vadd.f32 %v2345, %v2555
        %v2588 = vadd.f32 %v2346, %v2556
        %v2589 = vadd.f32 %v2347, %v2557
        %v2590 = vadd.f32 %v2348, %v2558
        %v2591 = vadd.f32 %v2349, %v2559
        %v2592 = vadd.f32 %v2350, %v2560
        %v2593 = vadd.f32 %v2351, %v2561
        %v2594 = vadd.f32 %v2352, %v2562
        %v2595 = vadd.f32 %v2353, %v2563
        %v2596 = vadd.f32 %v2354, %v2564
        %v2597 = vadd.f32 %v2355, %v2565
        %v2598 = vadd.f32 %v2356, %v2566
        %v2599 = vadd.f32 %v2357, %v2567
        %v2600 = vadd.f32 %v2358, %v2568
        %v2601 = vadd.f32 %v2359, %v2569
        %v2602 = vadd.f32 %v2360, %v2570
        %v2603 = vadd.f32 %v2361, %v2571
        %v2604 = vadd.f32 %v2362, %v2572
        %v2605 = vadd.f32 %v2363, %v2573
        %v2606 = vadd.f32 %v2364, %v2574
        %v2607 = vadd.f32 %v2365, %v2575
        %v2608 = vadd.f32 %v2366, %v2576
        %v2609 = vadd.f32 %v2367, %v2577
        %v2610 = vadd.f32 %v2368, %v2578
        %v2611 = vadd.f32 %v2369, %v2579
        %v2612 = vadd.f32 %v2370, %v2580
        %v2613 = vadd.f32 %v2371, %v2581
        %v2614 = vadd.f32 %v2372, %v2582
        %v2615 = vadd.f32 %v2373, %v2583
        %v2616 = vadd.f32 %v2374, %v2584
        %v2617 = vpack.c.bf16 %v2587, %v2585
        %v2618 = vpack.c.bf16 %v2588, %v2586
        %v2619 = vpack.c.bf16 %v2591, %v2589
        %v2620 = vpack.c.bf16 %v2592, %v2590
        %v2621 = vpack.c.bf16 %v2595, %v2593
        %v2622 = vpack.c.bf16 %v2596, %v2594
        %v2623 = vpack.c.bf16 %v2599, %v2597
        %v2624 = vpack.c.bf16 %v2600, %v2598
        %v2625 = vpack.c.bf16 %v2603, %v2601
        %v2626 = vpack.c.bf16 %v2604, %v2602
        %v2627 = vpack.c.bf16 %v2607, %v2605
        %v2628 = vpack.c.bf16 %v2608, %v2606
        %v2629 = vpack.c.bf16 %v2611, %v2609
        %v2630 = vpack.c.bf16 %v2612, %v2610
        %v2631 = vpack.c.bf16 %v2615, %v2613
        %v2632 = vpack.c.bf16 %v2616, %v2614
        %2633 = vmatpush.bf16.msra.mxu0 %v2631
        %2634 = vmatpush.bf16.msra.mxu0 %v2629
        %2635 = vmatpush.bf16.msra.mxu0 %v2627
        %2636 = vmatpush.bf16.msra.mxu0 %v2625
        %2637 = vmatpush.bf16.msra.mxu0 %v2623
        %2638 = vmatpush.bf16.msra.mxu0 %v2621
        %2639 = vmatpush.bf16.msra.mxu0 %v2619
        %2640 = vmatpush.bf16.msra.mxu0 %v2617
        %2641 = vmatmul.bf16.gmra.mxu0 %v1649
        %v2642 = vpop.f32.mrf.mxu0
        %v2643 = vadd.f32 0.0, %v2642
        %v2644 = vpop.f32.mrf.mxu0
        %v2645 = vadd.f32 0.0, %v2644
        %2646 = vmatmul.bf16.gmra.mxu0 %v1650
        %v2647 = vpop.f32.mrf.mxu0
        %v2648 = vadd.f32 0.0, %v2647
        %v2649 = vpop.f32.mrf.mxu0
        %v2650 = vadd.f32 0.0, %v2649
        %2651 = vmatmul.bf16.gmra.mxu0 %v1651
        %v2652 = vpop.f32.mrf.mxu0
        %v2653 = vadd.f32 0.0, %v2652
        %v2654 = vpop.f32.mrf.mxu0
        %v2655 = vadd.f32 0.0, %v2654
        %2656 = vmatmul.bf16.gmra.mxu0 %v1652
        %v2657 = vpop.f32.mrf.mxu0
        %v2658 = vadd.f32 0.0, %v2657
        %v2659 = vpop.f32.mrf.mxu0
        %v2660 = vadd.f32 0.0, %v2659
        %2661 = vmatmul.bf16.gmra.mxu0 %v1653
        %v2662 = vpop.f32.mrf.mxu0
        %v2663 = vadd.f32 0.0, %v2662
        %v2664 = vpop.f32.mrf.mxu0
        %v2665 = vadd.f32 0.0, %v2664
        %2666 = vmatmul.bf16.gmra.mxu0 %v1654
        %v2667 = vpop.f32.mrf.mxu0
        %v2668 = vadd.f32 0.0, %v2667
        %v2669 = vpop.f32.mrf.mxu0
        %v2670 = vadd.f32 0.0, %v2669
        %2671 = vmatmul.bf16.gmra.mxu0 %v1655
        %v2672 = vpop.f32.mrf.mxu0
        %v2673 = vadd.f32 0.0, %v2672
        %v2674 = vpop.f32.mrf.mxu0
        %v2675 = vadd.f32 0.0, %v2674
        %2676 = vmatmul.bf16.gmra.mxu0 %v1656
        %v2677 = vpop.f32.mrf.mxu0
        %v2678 = vadd.f32 0.0, %v2677
        %v2679 = vpop.f32.mrf.mxu0
        %v2680 = vadd.f32 0.0, %v2679
        %2681 = vdwg.mxu0
        %2682 = vmatpush.bf16.msra.mxu0 %v2632
        %2683 = vmatpush.bf16.msra.mxu0 %v2630
        %2684 = vmatpush.bf16.msra.mxu0 %v2628
        %2685 = vmatpush.bf16.msra.mxu0 %v2626
        %2686 = vmatpush.bf16.msra.mxu0 %v2624
        %2687 = vmatpush.bf16.msra.mxu0 %v2622
        %2688 = vmatpush.bf16.msra.mxu0 %v2620
        %2689 = vmatpush.bf16.msra.mxu0 %v2618
        %2690 = vmatmul.bf16.gmra.mxu0 %v1649
        %v2691 = vpop.f32.mrf.mxu0
        %v2692 = vadd.f32 0.0, %v2691
        %v2693 = vpop.f32.mrf.mxu0
        %v2694 = vadd.f32 0.0, %v2693
        %2695 = vmatmul.bf16.gmra.mxu0 %v1650
        %v2696 = vpop.f32.mrf.mxu0
        %v2697 = vadd.f32 0.0, %v2696
        %v2698 = vpop.f32.mrf.mxu0
        %v2699 = vadd.f32 0.0, %v2698
        %2700 = vmatmul.bf16.gmra.mxu0 %v1651
        %v2701 = vpop.f32.mrf.mxu0
        %v2702 = vadd.f32 0.0, %v2701
        %v2703 = vpop.f32.mrf.mxu0
        %v2704 = vadd.f32 0.0, %v2703
        %2705 = vmatmul.bf16.gmra.mxu0 %v1652
        %v2706 = vpop.f32.mrf.mxu0
        %v2707 = vadd.f32 0.0, %v2706
        %v2708 = vpop.f32.mrf.mxu0
        %v2709 = vadd.f32 0.0, %v2708
        %2710 = vmatmul.bf16.gmra.mxu0 %v1653
        %v2711 = vpop.f32.mrf.mxu0
        %v2712 = vadd.f32 0.0, %v2711
        %v2713 = vpop.f32.mrf.mxu0
        %v2714 = vadd.f32 0.0, %v2713
        %2715 = vmatmul.bf16.gmra.mxu0 %v1654
        %v2716 = vpop.f32.mrf.mxu0
        %v2717 = vadd.f32 0.0, %v2716
        %v2718 = vpop.f32.mrf.mxu0
        %v2719 = vadd.f32 0.0, %v2718
        %2720 = vmatmul.bf16.gmra.mxu0 %v1655
        %v2721 = vpop.f32.mrf.mxu0
        %v2722 = vadd.f32 0.0, %v2721
        %v2723 = vpop.f32.mrf.mxu0
        %v2724 = vadd.f32 0.0, %v2723
        %2725 = vmatmul.bf16.gmra.mxu0 %v1656
        %v2726 = vpop.f32.mrf.mxu0
        %v2727 = vadd.f32 0.0, %v2726
        %v2728 = vpop.f32.mrf.mxu0
        %v2729 = vadd.f32 0.0, %v2728
        %2730 = vdwg.mxu0
        %v2731 = vadd.f32 %v1318, %v2643
        %v2732 = vadd.f32 %v1514, %v2692
        %v2733 = vadd.f32 %v1320, %v2645
        %v2734 = vadd.f32 %v1516, %v2694
        %v2735 = vadd.f32 %v1323, %v2648
        %v2736 = vadd.f32 %v1519, %v2697
        %v2737 = vadd.f32 %v1325, %v2650
        %v2738 = vadd.f32 %v1521, %v2699
        %v2739 = vadd.f32 %v1328, %v2653
        %v2740 = vadd.f32 %v1524, %v2702
        %v2741 = vadd.f32 %v1330, %v2655
        %v2742 = vadd.f32 %v1526, %v2704
        %v2743 = vadd.f32 %v1333, %v2658
        %v2744 = vadd.f32 %v1529, %v2707
        %v2745 = vadd.f32 %v1335, %v2660
        %v2746 = vadd.f32 %v1531, %v2709
        %v2747 = vadd.f32 %v1338, %v2663
        %v2748 = vadd.f32 %v1534, %v2712
        %v2749 = vadd.f32 %v1340, %v2665
        %v2750 = vadd.f32 %v1536, %v2714
        %v2751 = vadd.f32 %v1343, %v2668
        %v2752 = vadd.f32 %v1539, %v2717
        %v2753 = vadd.f32 %v1345, %v2670
        %v2754 = vadd.f32 %v1541, %v2719
        %v2755 = vadd.f32 %v1348, %v2673
        %v2756 = vadd.f32 %v1544, %v2722
        %v2757 = vadd.f32 %v1350, %v2675
        %v2758 = vadd.f32 %v1546, %v2724
        %v2759 = vadd.f32 %v1353, %v2678
        %v2760 = vadd.f32 %v1549, %v2727
        %v2761 = vadd.f32 %v1355, %v2680
        %v2762 = vadd.f32 %v1551, %v2729
        %v2763 = vtanh.pop %v2731
        %v2764 = vtanh.pop %v2732
        %v2765 = vtanh.pop %v2733
        %v2766 = vtanh.pop %v2734
        %v2767 = vtanh.pop %v2735
        %v2768 = vtanh.pop %v2736
        %v2769 = vtanh.pop %v2737
        %v2770 = vtanh.pop %v2738
        %v2771 = vtanh.pop %v2739
        %v2772 = vtanh.pop %v2740
        %v2773 = vtanh.pop %v2741
        %v2774 = vtanh.pop %v2742
        %v2775 = vtanh.pop %v2743
        %v2776 = vtanh.pop %v2744
        %v2777 = vtanh.pop %v2745
        %v2778 = vtanh.pop %v2746
        %v2779 = vtanh.pop %v2747
        %v2780 = vtanh.pop %v2748
        %v2781 = vtanh.pop %v2749
        %v2782 = vtanh.pop %v2750
        %v2783 = vtanh.pop %v2751
        %v2784 = vtanh.pop %v2752
        %v2785 = vtanh.pop %v2753
        %v2786 = vtanh.pop %v2754
        %v2787 = vtanh.pop %v2755
        %v2788 = vtanh.pop %v2756
        %v2789 = vtanh.pop %v2757
        %v2790 = vtanh.pop %v2758
        %v2791 = vtanh.pop %v2759
        %v2792 = vtanh.pop %v2760
        %v2793 = vtanh.pop %v2761
        %v2794 = vtanh.pop %v2762
        %v2795 = vmul.f32 %v2763, 0.125
        %v2796 = vmul.f32 %v2764, 0.125
        %v2797 = vmul.f32 %v2765, 0.125
        %v2798 = vmul.f32 %v2766, 0.125
        %v2799 = vmul.f32 %v2767, 0.125
        %v2800 = vmul.f32 %v2768, 0.125
        %v2801 = vmul.f32 %v2769, 0.125
        %v2802 = vmul.f32 %v2770, 0.125
        %v2803 = vmul.f32 %v2771, 0.125
        %v2804 = vmul.f32 %v2772, 0.125
        %v2805 = vmul.f32 %v2773, 0.125
        %v2806 = vmul.f32 %v2774, 0.125
        %v2807 = vmul.f32 %v2775, 0.125
        %v2808 = vmul.f32 %v2776, 0.125
        %v2809 = vmul.f32 %v2777, 0.125
        %v2810 = vmul.f32 %v2778, 0.125
        %v2811 = vmul.f32 %v2779, 0.125
        %v2812 = vmul.f32 %v2780, 0.125
        %v2813 = vmul.f32 %v2781, 0.125
        %v2814 = vmul.f32 %v2782, 0.125
        %v2815 = vmul.f32 %v2783, 0.125
        %v2816 = vmul.f32 %v2784, 0.125
        %v2817 = vmul.f32 %v2785, 0.125
        %v2818 = vmul.f32 %v2786, 0.125
        %v2819 = vmul.f32 %v2787, 0.125
        %v2820 = vmul.f32 %v2788, 0.125
        %v2821 = vmul.f32 %v2789, 0.125
        %v2822 = vmul.f32 %v2790, 0.125
        %v2823 = vmul.f32 %v2791, 0.125
        %v2824 = vmul.f32 %v2792, 0.125
        %v2825 = vmul.f32 %v2793, 0.125
        %v2826 = vmul.f32 %v2794, 0.125
        %v2827 = vadd.f32 %v2585, %v2795
        %v2828 = vadd.f32 %v2586, %v2796
        %v2829 = vadd.f32 %v2587, %v2797
        %v2830 = vadd.f32 %v2588, %v2798
        %v2831 = vadd.f32 %v2589, %v2799
        %v2832 = vadd.f32 %v2590, %v2800
        %v2833 = vadd.f32 %v2591, %v2801
        %v2834 = vadd.f32 %v2592, %v2802
        %v2835 = vadd.f32 %v2593, %v2803
        %v2836 = vadd.f32 %v2594, %v2804
        %v2837 = vadd.f32 %v2595, %v2805
        %v2838 = vadd.f32 %v2596, %v2806
        %v2839 = vadd.f32 %v2597, %v2807
        %v2840 = vadd.f32 %v2598, %v2808
        %v2841 = vadd.f32 %v2599, %v2809
        %v2842 = vadd.f32 %v2600, %v2810
        %v2843 = vadd.f32 %v2601, %v2811
        %v2844 = vadd.f32 %v2602, %v2812
        %v2845 = vadd.f32 %v2603, %v2813
        %v2846 = vadd.f32 %v2604, %v2814
        %v2847 = vadd.f32 %v2605, %v2815
        %v2848 = vadd.f32 %v2606, %v2816
        %v2849 = vadd.f32 %v2607, %v2817
        %v2850 = vadd.f32 %v2608, %v2818
        %v2851 = vadd.f32 %v2609, %v2819
        %v2852 = vadd.f32 %v2610, %v2820
        %v2853 = vadd.f32 %v2611, %v2821
        %v2854 = vadd.f32 %v2612, %v2822
        %v2855 = vadd.f32 %v2613, %v2823
        %v2856 = vadd.f32 %v2614, %v2824
        %v2857 = vadd.f32 %v2615, %v2825
        %v2858 = vadd.f32 %v2616, %v2826
        %v2859 = vpack.c.bf16 %v2829, %v2827
        %v2860 = vpack.c.bf16 %v2830, %v2828
        %v2861 = vpack.c.bf16 %v2833, %v2831
        %v2862 = vpack.c.bf16 %v2834, %v2832
        %v2863 = vpack.c.bf16 %v2837, %v2835
        %v2864 = vpack.c.bf16 %v2838, %v2836
        %v2865 = vpack.c.bf16 %v2841, %v2839
        %v2866 = vpack.c.bf16 %v2842, %v2840
        %v2867 = vpack.c.bf16 %v2845, %v2843
        %v2868 = vpack.c.bf16 %v2846, %v2844
        %v2869 = vpack.c.bf16 %v2849, %v2847
        %v2870 = vpack.c.bf16 %v2850, %v2848
        %v2871 = vpack.c.bf16 %v2853, %v2851
        %v2872 = vpack.c.bf16 %v2854, %v2852
        %v2873 = vpack.c.bf16 %v2857, %v2855
        %v2874 = vpack.c.bf16 %v2858, %v2856
        %2875 = vmatpush.bf16.msra.mxu0 %v2873
        %2876 = vmatpush.bf16.msra.mxu0 %v2871
        %2877 = vmatpush.bf16.msra.mxu0 %v2869
        %2878 = vmatpush.bf16.msra.mxu0 %v2867
        %2879 = vmatpush.bf16.msra.mxu0 %v2865
        %2880 = vmatpush.bf16.msra.mxu0 %v2863
        %2881 = vmatpush.bf16.msra.mxu0 %v2861
        %2882 = vmatpush.bf16.msra.mxu0 %v2859
        %2883 = vmatmul.bf16.gmra.mxu0 %v1649
        %v2884 = vpop.f32.mrf.mxu0
        %v2885 = vadd.f32 0.0, %v2884
        %v2886 = vpop.f32.mrf.mxu0
        %v2887 = vadd.f32 0.0, %v2886
        %2888 = vmatmul.bf16.gmra.mxu0 %v1650
        %v2889 = vpop.f32.mrf.mxu0
        %v2890 = vadd.f32 0.0, %v2889
        %v2891 = vpop.f32.mrf.mxu0
        %v2892 = vadd.f32 0.0, %v2891
        %2893 = vmatmul.bf16.gmra.mxu0 %v1651
        %v2894 = vpop.f32.mrf.mxu0
        %v2895 = vadd.f32 0.0, %v2894
        %v2896 = vpop.f32.mrf.mxu0
        %v2897 = vadd.f32 0.0, %v2896
        %2898 = vmatmul.bf16.gmra.mxu0 %v1652
        %v2899 = vpop.f32.mrf.mxu0
        %v2900 = vadd.f32 0.0, %v2899
        %v2901 = vpop.f32.mrf.mxu0
        %v2902 = vadd.f32 0.0, %v2901
        %2903 = vmatmul.bf16.gmra.mxu0 %v1653
        %v2904 = vpop.f32.mrf.mxu0
        %v2905 = vadd.f32 0.0, %v2904
        %v2906 = vpop.f32.mrf.mxu0
        %v2907 = vadd.f32 0.0, %v2906
        %2908 = vmatmul.bf16.gmra.mxu0 %v1654
        %v2909 = vpop.f32.mrf.mxu0
        %v2910 = vadd.f32 0.0, %v2909
        %v2911 = vpop.f32.mrf.mxu0
        %v2912 = vadd.f32 0.0, %v2911
        %2913 = vmatmul.bf16.gmra.mxu0 %v1655
        %v2914 = vpop.f32.mrf.mxu0
        %v2915 = vadd.f32 0.0, %v2914
        %v2916 = vpop.f32.mrf.mxu0
        %v2917 = vadd.f32 0.0, %v2916
        %2918 = vmatmul.bf16.gmra.mxu0 %v1656
        %v2919 = vpop.f32.mrf.mxu0
        %v2920 = vadd.f32 0.0, %v2919
        %v2921 = vpop.f32.mrf.mxu0
        %v2922 = vadd.f32 0.0, %v2921
        %2923 = vdwg.mxu0
        %2924 = vmatpush.bf16.msra.mxu0 %v2874
        %2925 = vmatpush.bf16.msra.mxu0 %v2872
        %2926 = vmatpush.bf16.msra.mxu0 %v2870
        %2927 = vmatpush.bf16.msra.mxu0 %v2868
        %2928 = vmatpush.bf16.msra.mxu0 %v2866
        %2929 = vmatpush.bf16.msra.mxu0 %v2864
        %2930 = vmatpush.bf16.msra.mxu0 %v2862
        %2931 = vmatpush.bf16.msra.mxu0 %v2860
        %2932 = vmatmul.bf16.gmra.mxu0 %v1649
        %v2933 = vpop.f32.mrf.mxu0
        %v2934 = vadd.f32 0.0, %v2933
        %v2935 = vpop.f32.mrf.mxu0
        %v2936 = vadd.f32 0.0, %v2935
        %2937 = vmatmul.bf16.gmra.mxu0 %v1650
        %v2938 = vpop.f32.mrf.mxu0
        %v2939 = vadd.f32 0.0, %v2938
        %v2940 = vpop.f32.mrf.mxu0
        %v2941 = vadd.f32 0.0, %v2940
        %2942 = vmatmul.bf16.gmra.mxu0 %v1651
        %v2943 = vpop.f32.mrf.mxu0
        %v2944 = vadd.f32 0.0, %v2943
        %v2945 = vpop.f32.mrf.mxu0
        %v2946 = vadd.f32 0.0, %v2945
        %2947 = vmatmul.bf16.gmra.mxu0 %v1652
        %v2948 = vpop.f32.mrf.mxu0
        %v2949 = vadd.f32 0.0, %v2948
        %v2950 = vpop.f32.mrf.mxu0
        %v2951 = vadd.f32 0.0, %v2950
        %2952 = vmatmul.bf16.gmra.mxu0 %v1653
        %v2953 = vpop.f32.mrf.mxu0
        %v2954 = vadd.f32 0.0, %v2953
        %v2955 = vpop.f32.mrf.mxu0
        %v2956 = vadd.f32 0.0, %v2955
        %2957 = vmatmul.bf16.gmra.mxu0 %v1654
        %v2958 = vpop.f32.mrf.mxu0
        %v2959 = vadd.f32 0.0, %v2958
        %v2960 = vpop.f32.mrf.mxu0
        %v2961 = vadd.f32 0.0, %v2960
        %2962 = vmatmul.bf16.gmra.mxu0 %v1655
        %v2963 = vpop.f32.mrf.mxu0
        %v2964 = vadd.f32 0.0, %v2963
        %v2965 = vpop.f32.mrf.mxu0
        %v2966 = vadd.f32 0.0, %v2965
        %2967 = vmatmul.bf16.gmra.mxu0 %v1656
        %v2968 = vpop.f32.mrf.mxu0
        %v2969 = vadd.f32 0.0, %v2968
        %v2970 = vpop.f32.mrf.mxu0
        %v2971 = vadd.f32 0.0, %v2970
        %2972 = vdwg.mxu0
        %v2973 = vadd.f32 %v1318, %v2885
        %v2974 = vadd.f32 %v1514, %v2934
        %v2975 = vadd.f32 %v1320, %v2887
        %v2976 = vadd.f32 %v1516, %v2936
        %v2977 = vadd.f32 %v1323, %v2890
        %v2978 = vadd.f32 %v1519, %v2939
        %v2979 = vadd.f32 %v1325, %v2892
        %v2980 = vadd.f32 %v1521, %v2941
        %v2981 = vadd.f32 %v1328, %v2895
        %v2982 = vadd.f32 %v1524, %v2944
        %v2983 = vadd.f32 %v1330, %v2897
        %v2984 = vadd.f32 %v1526, %v2946
        %v2985 = vadd.f32 %v1333, %v2900
        %v2986 = vadd.f32 %v1529, %v2949
        %v2987 = vadd.f32 %v1335, %v2902
        %v2988 = vadd.f32 %v1531, %v2951
        %v2989 = vadd.f32 %v1338, %v2905
        %v2990 = vadd.f32 %v1534, %v2954
        %v2991 = vadd.f32 %v1340, %v2907
        %v2992 = vadd.f32 %v1536, %v2956
        %v2993 = vadd.f32 %v1343, %v2910
        %v2994 = vadd.f32 %v1539, %v2959
        %v2995 = vadd.f32 %v1345, %v2912
        %v2996 = vadd.f32 %v1541, %v2961
        %v2997 = vadd.f32 %v1348, %v2915
        %v2998 = vadd.f32 %v1544, %v2964
        %v2999 = vadd.f32 %v1350, %v2917
        %v3000 = vadd.f32 %v1546, %v2966
        %v3001 = vadd.f32 %v1353, %v2920
        %v3002 = vadd.f32 %v1549, %v2969
        %v3003 = vadd.f32 %v1355, %v2922
        %v3004 = vadd.f32 %v1551, %v2971
        %v3005 = vtanh.pop %v2973
        %v3006 = vtanh.pop %v2974
        %v3007 = vtanh.pop %v2975
        %v3008 = vtanh.pop %v2976
        %v3009 = vtanh.pop %v2977
        %v3010 = vtanh.pop %v2978
        %v3011 = vtanh.pop %v2979
        %v3012 = vtanh.pop %v2980
        %v3013 = vtanh.pop %v2981
        %v3014 = vtanh.pop %v2982
        %v3015 = vtanh.pop %v2983
        %v3016 = vtanh.pop %v2984
        %v3017 = vtanh.pop %v2985
        %v3018 = vtanh.pop %v2986
        %v3019 = vtanh.pop %v2987
        %v3020 = vtanh.pop %v2988
        %v3021 = vtanh.pop %v2989
        %v3022 = vtanh.pop %v2990
        %v3023 = vtanh.pop %v2991
        %v3024 = vtanh.pop %v2992
        %v3025 = vtanh.pop %v2993
        %v3026 = vtanh.pop %v2994
        %v3027 = vtanh.pop %v2995
        %v3028 = vtanh.pop %v2996
        %v3029 = vtanh.pop %v2997
        %v3030 = vtanh.pop %v2998
        %v3031 = vtanh.pop %v2999
        %v3032 = vtanh.pop %v3000
        %v3033 = vtanh.pop %v3001
        %v3034 = vtanh.pop %v3002
        %v3035 = vtanh.pop %v3003
        %v3036 = vtanh.pop %v3004
        %v3037 = vmul.f32 %v3005, 0.125
        %v3038 = vmul.f32 %v3006, 0.125
        %v3039 = vmul.f32 %v3007, 0.125
        %v3040 = vmul.f32 %v3008, 0.125
        %v3041 = vmul.f32 %v3009, 0.125
        %v3042 = vmul.f32 %v3010, 0.125
        %v3043 = vmul.f32 %v3011, 0.125
        %v3044 = vmul.f32 %v3012, 0.125
        %v3045 = vmul.f32 %v3013, 0.125
        %v3046 = vmul.f32 %v3014, 0.125
        %v3047 = vmul.f32 %v3015, 0.125
        %v3048 = vmul.f32 %v3016, 0.125
        %v3049 = vmul.f32 %v3017, 0.125
        %v3050 = vmul.f32 %v3018, 0.125
        %v3051 = vmul.f32 %v3019, 0.125
        %v3052 = vmul.f32 %v3020, 0.125
        %v3053 = vmul.f32 %v3021, 0.125
        %v3054 = vmul.f32 %v3022, 0.125
        %v3055 = vmul.f32 %v3023, 0.125
        %v3056 = vmul.f32 %v3024, 0.125
        %v3057 = vmul.f32 %v3025, 0.125
        %v3058 = vmul.f32 %v3026, 0.125
        %v3059 = vmul.f32 %v3027, 0.125
        %v3060 = vmul.f32 %v3028, 0.125
        %v3061 = vmul.f32 %v3029, 0.125
        %v3062 = vmul.f32 %v3030, 0.125
        %v3063 = vmul.f32 %v3031, 0.125
        %v3064 = vmul.f32 %v3032, 0.125
        %v3065 = vmul.f32 %v3033, 0.125
        %v3066 = vmul.f32 %v3034, 0.125
        %v3067 = vmul.f32 %v3035, 0.125
        %v3068 = vmul.f32 %v3036, 0.125
        %v3069 = vadd.f32 %v2827, %v3037
        %v3070 = vadd.f32 %v2828, %v3038
        %v3071 = vadd.f32 %v2829, %v3039
        %v3072 = vadd.f32 %v2830, %v3040
        %v3073 = vadd.f32 %v2831, %v3041
        %v3074 = vadd.f32 %v2832, %v3042
        %v3075 = vadd.f32 %v2833, %v3043
        %v3076 = vadd.f32 %v2834, %v3044
        %v3077 = vadd.f32 %v2835, %v3045
        %v3078 = vadd.f32 %v2836, %v3046
        %v3079 = vadd.f32 %v2837, %v3047
        %v3080 = vadd.f32 %v2838, %v3048
        %v3081 = vadd.f32 %v2839, %v3049
        %v3082 = vadd.f32 %v2840, %v3050
        %v3083 = vadd.f32 %v2841, %v3051
        %v3084 = vadd.f32 %v2842, %v3052
        %v3085 = vadd.f32 %v2843, %v3053
        %v3086 = vadd.f32 %v2844, %v3054
        %v3087 = vadd.f32 %v2845, %v3055
        %v3088 = vadd.f32 %v2846, %v3056
        %v3089 = vadd.f32 %v2847, %v3057
        %v3090 = vadd.f32 %v2848, %v3058
        %v3091 = vadd.f32 %v2849, %v3059
        %v3092 = vadd.f32 %v2850, %v3060
        %v3093 = vadd.f32 %v2851, %v3061
        %v3094 = vadd.f32 %v2852, %v3062
        %v3095 = vadd.f32 %v2853, %v3063
        %v3096 = vadd.f32 %v2854, %v3064
        %v3097 = vadd.f32 %v2855, %v3065
        %v3098 = vadd.f32 %v2856, %v3066
        %v3099 = vadd.f32 %v2857, %v3067
        %v3100 = vadd.f32 %v2858, %v3068
        %v3101 = vpack.c.bf16 %v3071, %v3069
        %v3102 = vpack.c.bf16 %v3072, %v3070
        %v3103 = vpack.c.bf16 %v3075, %v3073
        %v3104 = vpack.c.bf16 %v3076, %v3074
        %v3105 = vpack.c.bf16 %v3079, %v3077
        %v3106 = vpack.c.bf16 %v3080, %v3078
        %v3107 = vpack.c.bf16 %v3083, %v3081
        %v3108 = vpack.c.bf16 %v3084, %v3082
        %v3109 = vpack.c.bf16 %v3087, %v3085
        %v3110 = vpack.c.bf16 %v3088, %v3086
        %v3111 = vpack.c.bf16 %v3091, %v3089
        %v3112 = vpack.c.bf16 %v3092, %v3090
        %v3113 = vpack.c.bf16 %v3095, %v3093
        %v3114 = vpack.c.bf16 %v3096, %v3094
        %v3115 = vpack.c.bf16 %v3099, %v3097
        %v3116 = vpack.c.bf16 %v3100, %v3098
        %3117 = vmatpush.bf16.msra.mxu0 %v3115
        %3118 = vmatpush.bf16.msra.mxu0 %v3113
        %3119 = vmatpush.bf16.msra.mxu0 %v3111
        %3120 = vmatpush.bf16.msra.mxu0 %v3109
        %3121 = vmatpush.bf16.msra.mxu0 %v3107
        %3122 = vmatpush.bf16.msra.mxu0 %v3105
        %3123 = vmatpush.bf16.msra.mxu0 %v3103
        %3124 = vmatpush.bf16.msra.mxu0 %v3101
        %3125 = vmatmul.bf16.gmra.mxu0 %v1649
        %v3126 = vpop.f32.mrf.mxu0
        %v3127 = vadd.f32 0.0, %v3126
        %v3128 = vpop.f32.mrf.mxu0
        %v3129 = vadd.f32 0.0, %v3128
        %3130 = vmatmul.bf16.gmra.mxu0 %v1650
        %v3131 = vpop.f32.mrf.mxu0
        %v3132 = vadd.f32 0.0, %v3131
        %v3133 = vpop.f32.mrf.mxu0
        %v3134 = vadd.f32 0.0, %v3133
        %3135 = vmatmul.bf16.gmra.mxu0 %v1651
        %v3136 = vpop.f32.mrf.mxu0
        %v3137 = vadd.f32 0.0, %v3136
        %v3138 = vpop.f32.mrf.mxu0
        %v3139 = vadd.f32 0.0, %v3138
        %3140 = vmatmul.bf16.gmra.mxu0 %v1652
        %v3141 = vpop.f32.mrf.mxu0
        %v3142 = vadd.f32 0.0, %v3141
        %v3143 = vpop.f32.mrf.mxu0
        %v3144 = vadd.f32 0.0, %v3143
        %3145 = vmatmul.bf16.gmra.mxu0 %v1653
        %v3146 = vpop.f32.mrf.mxu0
        %v3147 = vadd.f32 0.0, %v3146
        %v3148 = vpop.f32.mrf.mxu0
        %v3149 = vadd.f32 0.0, %v3148
        %3150 = vmatmul.bf16.gmra.mxu0 %v1654
        %v3151 = vpop.f32.mrf.mxu0
        %v3152 = vadd.f32 0.0, %v3151
        %v3153 = vpop.f32.mrf.mxu0
        %v3154 = vadd.f32 0.0, %v3153
        %3155 = vmatmul.bf16.gmra.mxu0 %v1655
        %v3156 = vpop.f32.mrf.mxu0
        %v3157 = vadd.f32 0.0, %v3156
        %v3158 = vpop.f32.mrf.mxu0
        %v3159 = vadd.f32 0.0, %v3158
        %3160 = vmatmul.bf16.gmra.mxu0 %v1656
        %v3161 = vpop.f32.mrf.mxu0
        %v3162 = vadd.f32 0.0, %v3161
        %v3163 = vpop.f32.mrf.mxu0
        %v3164 = vadd.f32 0.0, %v3163
        %3165 = vdwg.mxu0
        %3166 = vmatpush.bf16.msra.mxu0 %v3116
        %3167 = vmatpush.bf16.msra.mxu0 %v3114
        %3168 = vmatpush.bf16.msra.mxu0 %v3112
        %3169 = vmatpush.bf16.msra.mxu0 %v3110
        %3170 = vmatpush.bf16.msra.mxu0 %v3108
        %3171 = vmatpush.bf16.msra.mxu0 %v3106
        %3172 = vmatpush.bf16.msra.mxu0 %v3104
        %3173 = vmatpush.bf16.msra.mxu0 %v3102
        %3174 = vmatmul.bf16.gmra.mxu0 %v1649
        %v3175 = vpop.f32.mrf.mxu0
        %v3176 = vadd.f32 0.0, %v3175
        %v3177 = vpop.f32.mrf.mxu0
        %v3178 = vadd.f32 0.0, %v3177
        %3179 = vmatmul.bf16.gmra.mxu0 %v1650
        %v3180 = vpop.f32.mrf.mxu0
        %v3181 = vadd.f32 0.0, %v3180
        %v3182 = vpop.f32.mrf.mxu0
        %v3183 = vadd.f32 0.0, %v3182
        %3184 = vmatmul.bf16.gmra.mxu0 %v1651
        %v3185 = vpop.f32.mrf.mxu0
        %v3186 = vadd.f32 0.0, %v3185
        %v3187 = vpop.f32.mrf.mxu0
        %v3188 = vadd.f32 0.0, %v3187
        %3189 = vmatmul.bf16.gmra.mxu0 %v1652
        %v3190 = vpop.f32.mrf.mxu0
        %v3191 = vadd.f32 0.0, %v3190
        %v3192 = vpop.f32.mrf.mxu0
        %v3193 = vadd.f32 0.0, %v3192
        %3194 = vmatmul.bf16.gmra.mxu0 %v1653
        %v3195 = vpop.f32.mrf.mxu0
        %v3196 = vadd.f32 0.0, %v3195
        %v3197 = vpop.f32.mrf.mxu0
        %v3198 = vadd.f32 0.0, %v3197
        %3199 = vmatmul.bf16.gmra.mxu0 %v1654
        %v3200 = vpop.f32.mrf.mxu0
        %v3201 = vadd.f32 0.0, %v3200
        %v3202 = vpop.f32.mrf.mxu0
        %v3203 = vadd.f32 0.0, %v3202
        %3204 = vmatmul.bf16.gmra.mxu0 %v1655
        %v3205 = vpop.f32.mrf.mxu0
        %v3206 = vadd.f32 0.0, %v3205
        %v3207 = vpop.f32.mrf.mxu0
        %v3208 = vadd.f32 0.0, %v3207
        %3209 = vmatmul.bf16.gmra.mxu0 %v1656
        %v3210 = vpop.f32.mrf.mxu0
        %v3211 = vadd.f32 0.0, %v3210
        %v3212 = vpop.f32.mrf.mxu0
        %v3213 = vadd.f32 0.0, %v3212
        %3214 = vdwg.mxu0
        %v3215 = vadd.f32 %v1318, %v3127
        %v3216 = vadd.f32 %v1514, %v3176
        %v3217 = vadd.f32 %v1320, %v3129
        %v3218 = vadd.f32 %v1516, %v3178
        %v3219 = vadd.f32 %v1323, %v3132
        %v3220 = vadd.f32 %v1519, %v3181
        %v3221 = vadd.f32 %v1325, %v3134
        %v3222 = vadd.f32 %v1521, %v3183
        %v3223 = vadd.f32 %v1328, %v3137
        %v3224 = vadd.f32 %v1524, %v3186
        %v3225 = vadd.f32 %v1330, %v3139
        %v3226 = vadd.f32 %v1526, %v3188
        %v3227 = vadd.f32 %v1333, %v3142
        %v3228 = vadd.f32 %v1529, %v3191
        %v3229 = vadd.f32 %v1335, %v3144
        %v3230 = vadd.f32 %v1531, %v3193
        %v3231 = vadd.f32 %v1338, %v3147
        %v3232 = vadd.f32 %v1534, %v3196
        %v3233 = vadd.f32 %v1340, %v3149
        %v3234 = vadd.f32 %v1536, %v3198
        %v3235 = vadd.f32 %v1343, %v3152
        %v3236 = vadd.f32 %v1539, %v3201
        %v3237 = vadd.f32 %v1345, %v3154
        %v3238 = vadd.f32 %v1541, %v3203
        %v3239 = vadd.f32 %v1348, %v3157
        %v3240 = vadd.f32 %v1544, %v3206
        %v3241 = vadd.f32 %v1350, %v3159
        %v3242 = vadd.f32 %v1546, %v3208
        %v3243 = vadd.f32 %v1353, %v3162
        %v3244 = vadd.f32 %v1549, %v3211
        %v3245 = vadd.f32 %v1355, %v3164
        %v3246 = vadd.f32 %v1551, %v3213
        %v3247 = vtanh.pop %v3215
        %v3248 = vtanh.pop %v3216
        %v3249 = vtanh.pop %v3217
        %v3250 = vtanh.pop %v3218
        %v3251 = vtanh.pop %v3219
        %v3252 = vtanh.pop %v3220
        %v3253 = vtanh.pop %v3221
        %v3254 = vtanh.pop %v3222
        %v3255 = vtanh.pop %v3223
        %v3256 = vtanh.pop %v3224
        %v3257 = vtanh.pop %v3225
        %v3258 = vtanh.pop %v3226
        %v3259 = vtanh.pop %v3227
        %v3260 = vtanh.pop %v3228
        %v3261 = vtanh.pop %v3229
        %v3262 = vtanh.pop %v3230
        %v3263 = vtanh.pop %v3231
        %v3264 = vtanh.pop %v3232
        %v3265 = vtanh.pop %v3233
        %v3266 = vtanh.pop %v3234
        %v3267 = vtanh.pop %v3235
        %v3268 = vtanh.pop %v3236
        %v3269 = vtanh.pop %v3237
        %v3270 = vtanh.pop %v3238
        %v3271 = vtanh.pop %v3239
        %v3272 = vtanh.pop %v3240
        %v3273 = vtanh.pop %v3241
        %v3274 = vtanh.pop %v3242
        %v3275 = vtanh.pop %v3243
        %v3276 = vtanh.pop %v3244
        %v3277 = vtanh.pop %v3245
        %v3278 = vtanh.pop %v3246
        %v3279 = vmul.f32 %v3247, 0.125
        %v3280 = vmul.f32 %v3248, 0.125
        %v3281 = vmul.f32 %v3249, 0.125
        %v3282 = vmul.f32 %v3250, 0.125
        %v3283 = vmul.f32 %v3251, 0.125
        %v3284 = vmul.f32 %v3252, 0.125
        %v3285 = vmul.f32 %v3253, 0.125
        %v3286 = vmul.f32 %v3254, 0.125
        %v3287 = vmul.f32 %v3255, 0.125
        %v3288 = vmul.f32 %v3256, 0.125
        %v3289 = vmul.f32 %v3257, 0.125
        %v3290 = vmul.f32 %v3258, 0.125
        %v3291 = vmul.f32 %v3259, 0.125
        %v3292 = vmul.f32 %v3260, 0.125
        %v3293 = vmul.f32 %v3261, 0.125
        %v3294 = vmul.f32 %v3262, 0.125
        %v3295 = vmul.f32 %v3263, 0.125
        %v3296 = vmul.f32 %v3264, 0.125
        %v3297 = vmul.f32 %v3265, 0.125
        %v3298 = vmul.f32 %v3266, 0.125
        %v3299 = vmul.f32 %v3267, 0.125
        %v3300 = vmul.f32 %v3268, 0.125
        %v3301 = vmul.f32 %v3269, 0.125
        %v3302 = vmul.f32 %v3270, 0.125
        %v3303 = vmul.f32 %v3271, 0.125
        %v3304 = vmul.f32 %v3272, 0.125
        %v3305 = vmul.f32 %v3273, 0.125
        %v3306 = vmul.f32 %v3274, 0.125
        %v3307 = vmul.f32 %v3275, 0.125
        %v3308 = vmul.f32 %v3276, 0.125
        %v3309 = vmul.f32 %v3277, 0.125
        %v3310 = vmul.f32 %v3278, 0.125
        %v3311 = vadd.f32 %v3069, %v3279
        %v3312 = vadd.f32 %v3070, %v3280
        %v3313 = vadd.f32 %v3071, %v3281
        %v3314 = vadd.f32 %v3072, %v3282
        %v3315 = vadd.f32 %v3073, %v3283
        %v3316 = vadd.f32 %v3074, %v3284
        %v3317 = vadd.f32 %v3075, %v3285
        %v3318 = vadd.f32 %v3076, %v3286
        %v3319 = vadd.f32 %v3077, %v3287
        %v3320 = vadd.f32 %v3078, %v3288
        %v3321 = vadd.f32 %v3079, %v3289
        %v3322 = vadd.f32 %v3080, %v3290
        %v3323 = vadd.f32 %v3081, %v3291
        %v3324 = vadd.f32 %v3082, %v3292
        %v3325 = vadd.f32 %v3083, %v3293
        %v3326 = vadd.f32 %v3084, %v3294
        %v3327 = vadd.f32 %v3085, %v3295
        %v3328 = vadd.f32 %v3086, %v3296
        %v3329 = vadd.f32 %v3087, %v3297
        %v3330 = vadd.f32 %v3088, %v3298
        %v3331 = vadd.f32 %v3089, %v3299
        %v3332 = vadd.f32 %v3090, %v3300
        %v3333 = vadd.f32 %v3091, %v3301
        %v3334 = vadd.f32 %v3092, %v3302
        %v3335 = vadd.f32 %v3093, %v3303
        %v3336 = vadd.f32 %v3094, %v3304
        %v3337 = vadd.f32 %v3095, %v3305
        %v3338 = vadd.f32 %v3096, %v3306
        %v3339 = vadd.f32 %v3097, %v3307
        %v3340 = vadd.f32 %v3098, %v3308
        %v3341 = vadd.f32 %v3099, %v3309
        %v3342 = vadd.f32 %v3100, %v3310
        %v3343 = vpack.c.bf16 %v3313, %v3311
        %v3344 = vpack.c.bf16 %v3314, %v3312
        %v3345 = vpack.c.bf16 %v3317, %v3315
        %v3346 = vpack.c.bf16 %v3318, %v3316
        %v3347 = vpack.c.bf16 %v3321, %v3319
        %v3348 = vpack.c.bf16 %v3322, %v3320
        %v3349 = vpack.c.bf16 %v3325, %v3323
        %v3350 = vpack.c.bf16 %v3326, %v3324
        %v3351 = vpack.c.bf16 %v3329, %v3327
        %v3352 = vpack.c.bf16 %v3330, %v3328
        %v3353 = vpack.c.bf16 %v3333, %v3331
        %v3354 = vpack.c.bf16 %v3334, %v3332
        %v3355 = vpack.c.bf16 %v3337, %v3335
        %v3356 = vpack.c.bf16 %v3338, %v3336
        %v3357 = vpack.c.bf16 %v3341, %v3339
        %v3358 = vpack.c.bf16 %v3342, %v3340
        %3359 = vmatpush.bf16.msra.mxu0 %v3357
        %3360 = vmatpush.bf16.msra.mxu0 %v3355
        %3361 = vmatpush.bf16.msra.mxu0 %v3353
        %3362 = vmatpush.bf16.msra.mxu0 %v3351
        %3363 = vmatpush.bf16.msra.mxu0 %v3349
        %3364 = vmatpush.bf16.msra.mxu0 %v3347
        %3365 = vmatpush.bf16.msra.mxu0 %v3345
        %3366 = vmatpush.bf16.msra.mxu0 %v3343
        %3367 = vmatmul.bf16.gmra.mxu0 %v1649
        %v3368 = vpop.f32.mrf.mxu0
        %v3369 = vadd.f32 0.0, %v3368
        %v3370 = vpop.f32.mrf.mxu0
        %v3371 = vadd.f32 0.0, %v3370
        %3372 = vmatmul.bf16.gmra.mxu0 %v1650
        %v3373 = vpop.f32.mrf.mxu0
        %v3374 = vadd.f32 0.0, %v3373
        %v3375 = vpop.f32.mrf.mxu0
        %v3376 = vadd.f32 0.0, %v3375
        %3377 = vmatmul.bf16.gmra.mxu0 %v1651
        %v3378 = vpop.f32.mrf.mxu0
        %v3379 = vadd.f32 0.0, %v3378
        %v3380 = vpop.f32.mrf.mxu0
        %v3381 = vadd.f32 0.0, %v3380
        %3382 = vmatmul.bf16.gmra.mxu0 %v1652
        %v3383 = vpop.f32.mrf.mxu0
        %v3384 = vadd.f32 0.0, %v3383
        %v3385 = vpop.f32.mrf.mxu0
        %v3386 = vadd.f32 0.0, %v3385
        %3387 = vmatmul.bf16.gmra.mxu0 %v1653
        %v3388 = vpop.f32.mrf.mxu0
        %v3389 = vadd.f32 0.0, %v3388
        %v3390 = vpop.f32.mrf.mxu0
        %v3391 = vadd.f32 0.0, %v3390
        %3392 = vmatmul.bf16.gmra.mxu0 %v1654
        %v3393 = vpop.f32.mrf.mxu0
        %v3394 = vadd.f32 0.0, %v3393
        %v3395 = vpop.f32.mrf.mxu0
        %v3396 = vadd.f32 0.0, %v3395
        %3397 = vmatmul.bf16.gmra.mxu0 %v1655
        %v3398 = vpop.f32.mrf.mxu0
        %v3399 = vadd.f32 0.0, %v3398
        %v3400 = vpop.f32.mrf.mxu0
        %v3401 = vadd.f32 0.0, %v3400
        %3402 = vmatmul.bf16.gmra.mxu0 %v1656
        %v3403 = vpop.f32.mrf.mxu0
        %v3404 = vadd.f32 0.0, %v3403
        %v3405 = vpop.f32.mrf.mxu0
        %v3406 = vadd.f32 0.0, %v3405
        %3407 = vdwg.mxu0
        %3408 = vmatpush.bf16.msra.mxu0 %v3358
        %3409 = vmatpush.bf16.msra.mxu0 %v3356
        %3410 = vmatpush.bf16.msra.mxu0 %v3354
        %3411 = vmatpush.bf16.msra.mxu0 %v3352
        %3412 = vmatpush.bf16.msra.mxu0 %v3350
        %3413 = vmatpush.bf16.msra.mxu0 %v3348
        %3414 = vmatpush.bf16.msra.mxu0 %v3346
        %3415 = vmatpush.bf16.msra.mxu0 %v3344
        %3416 = vmatmul.bf16.gmra.mxu0 %v1649
        %v3417 = vpop.f32.mrf.mxu0
        %v3418 = vadd.f32 0.0, %v3417
        %v3419 = vpop.f32.mrf.mxu0
        %v3420 = vadd.f32 0.0, %v3419
        %3421 = vmatmul.bf16.gmra.mxu0 %v1650
        %v3422 = vpop.f32.mrf.mxu0
        %v3423 = vadd.f32 0.0, %v3422
        %v3424 = vpop.f32.mrf.mxu0
        %v3425 = vadd.f32 0.0, %v3424
        %3426 = vmatmul.bf16.gmra.mxu0 %v1651
        %v3427 = vpop.f32.mrf.mxu0
        %v3428 = vadd.f32 0.0, %v3427
        %v3429 = vpop.f32.mrf.mxu0
        %v3430 = vadd.f32 0.0, %v3429
        %3431 = vmatmul.bf16.gmra.mxu0 %v1652
        %v3432 = vpop.f32.mrf.mxu0
        %v3433 = vadd.f32 0.0, %v3432
        %v3434 = vpop.f32.mrf.mxu0
        %v3435 = vadd.f32 0.0, %v3434
        %3436 = vmatmul.bf16.gmra.mxu0 %v1653
        %v3437 = vpop.f32.mrf.mxu0
        %v3438 = vadd.f32 0.0, %v3437
        %v3439 = vpop.f32.mrf.mxu0
        %v3440 = vadd.f32 0.0, %v3439
        %3441 = vmatmul.bf16.gmra.mxu0 %v1654
        %v3442 = vpop.f32.mrf.mxu0
        %v3443 = vadd.f32 0.0, %v3442
        %v3444 = vpop.f32.mrf.mxu0
        %v3445 = vadd.f32 0.0, %v3444
        %3446 = vmatmul.bf16.gmra.mxu0 %v1655
        %v3447 = vpop.f32.mrf.mxu0
        %v3448 = vadd.f32 0.0, %v3447
        %v3449 = vpop.f32.mrf.mxu0
        %v3450 = vadd.f32 0.0, %v3449
        %3451 = vmatmul.bf16.gmra.mxu0 %v1656
        %v3452 = vpop.f32.mrf.mxu0
        %v3453 = vadd.f32 0.0, %v3452
        %v3454 = vpop.f32.mrf.mxu0
        %v3455 = vadd.f32 0.0, %v3454
        %3456 = vdwg.mxu0
        %v3457 = vadd.f32 %v1318, %v3369
        %v3458 = vadd.f32 %v1514, %v3418
        %v3459 = vadd.f32 %v1320, %v3371
        %v3460 = vadd.f32 %v1516, %v3420
        %v3461 = vadd.f32 %v1323, %v3374
        %v3462 = vadd.f32 %v1519, %v3423
        %v3463 = vadd.f32 %v1325, %v3376
        %v3464 = vadd.f32 %v1521, %v3425
        %v3465 = vadd.f32 %v1328, %v3379
        %v3466 = vadd.f32 %v1524, %v3428
        %v3467 = vadd.f32 %v1330, %v3381
        %v3468 = vadd.f32 %v1526, %v3430
        %v3469 = vadd.f32 %v1333, %v3384
        %v3470 = vadd.f32 %v1529, %v3433
        %v3471 = vadd.f32 %v1335, %v3386
        %v3472 = vadd.f32 %v1531, %v3435
        %v3473 = vadd.f32 %v1338, %v3389
        %v3474 = vadd.f32 %v1534, %v3438
        %v3475 = vadd.f32 %v1340, %v3391
        %v3476 = vadd.f32 %v1536, %v3440
        %v3477 = vadd.f32 %v1343, %v3394
        %v3478 = vadd.f32 %v1539, %v3443
        %v3479 = vadd.f32 %v1345, %v3396
        %v3480 = vadd.f32 %v1541, %v3445
        %v3481 = vadd.f32 %v1348, %v3399
        %v3482 = vadd.f32 %v1544, %v3448
        %v3483 = vadd.f32 %v1350, %v3401
        %v3484 = vadd.f32 %v1546, %v3450
        %v3485 = vadd.f32 %v1353, %v3404
        %v3486 = vadd.f32 %v1549, %v3453
        %v3487 = vadd.f32 %v1355, %v3406
        %v3488 = vadd.f32 %v1551, %v3455
        %v3489 = vtanh.pop %v3457
        %v3490 = vtanh.pop %v3458
        %v3491 = vtanh.pop %v3459
        %v3492 = vtanh.pop %v3460
        %v3493 = vtanh.pop %v3461
        %v3494 = vtanh.pop %v3462
        %v3495 = vtanh.pop %v3463
        %v3496 = vtanh.pop %v3464
        %v3497 = vtanh.pop %v3465
        %v3498 = vtanh.pop %v3466
        %v3499 = vtanh.pop %v3467
        %v3500 = vtanh.pop %v3468
        %v3501 = vtanh.pop %v3469
        %v3502 = vtanh.pop %v3470
        %v3503 = vtanh.pop %v3471
        %v3504 = vtanh.pop %v3472
        %v3505 = vtanh.pop %v3473
        %v3506 = vtanh.pop %v3474
        %v3507 = vtanh.pop %v3475
        %v3508 = vtanh.pop %v3476
        %v3509 = vtanh.pop %v3477
        %v3510 = vtanh.pop %v3478
        %v3511 = vtanh.pop %v3479
        %v3512 = vtanh.pop %v3480
        %v3513 = vtanh.pop %v3481
        %v3514 = vtanh.pop %v3482
        %v3515 = vtanh.pop %v3483
        %v3516 = vtanh.pop %v3484
        %v3517 = vtanh.pop %v3485
        %v3518 = vtanh.pop %v3486
        %v3519 = vtanh.pop %v3487
        %v3520 = vtanh.pop %v3488
        %v3521 = vmul.f32 %v3489, 0.125
        %v3522 = vmul.f32 %v3490, 0.125
        %v3523 = vmul.f32 %v3491, 0.125
        %v3524 = vmul.f32 %v3492, 0.125
        %v3525 = vmul.f32 %v3493, 0.125
        %v3526 = vmul.f32 %v3494, 0.125
        %v3527 = vmul.f32 %v3495, 0.125
        %v3528 = vmul.f32 %v3496, 0.125
        %v3529 = vmul.f32 %v3497, 0.125
        %v3530 = vmul.f32 %v3498, 0.125
        %v3531 = vmul.f32 %v3499, 0.125
        %v3532 = vmul.f32 %v3500, 0.125
        %v3533 = vmul.f32 %v3501, 0.125
        %v3534 = vmul.f32 %v3502, 0.125
        %v3535 = vmul.f32 %v3503, 0.125
        %v3536 = vmul.f32 %v3504, 0.125
        %v3537 = vmul.f32 %v3505, 0.125
        %v3538 = vmul.f32 %v3506, 0.125
        %v3539 = vmul.f32 %v3507, 0.125
        %v3540 = vmul.f32 %v3508, 0.125
        %v3541 = vmul.f32 %v3509, 0.125
        %v3542 = vmul.f32 %v3510, 0.125
        %v3543 = vmul.f32 %v3511, 0.125
        %v3544 = vmul.f32 %v3512, 0.125
        %v3545 = vmul.f32 %v3513, 0.125
        %v3546 = vmul.f32 %v3514, 0.125
        %v3547 = vmul.f32 %v3515, 0.125
        %v3548 = vmul.f32 %v3516, 0.125
        %v3549 = vmul.f32 %v3517, 0.125
        %v3550 = vmul.f32 %v3518, 0.125
        %v3551 = vmul.f32 %v3519, 0.125
        %v3552 = vmul.f32 %v3520, 0.125
        %v3553 = vadd.f32 %v3311, %v3521
        %v3554 = vadd.f32 %v3312, %v3522
        %v3555 = vadd.f32 %v3313, %v3523
        %v3556 = vadd.f32 %v3314, %v3524
        %v3557 = vadd.f32 %v3315, %v3525
        %v3558 = vadd.f32 %v3316, %v3526
        %v3559 = vadd.f32 %v3317, %v3527
        %v3560 = vadd.f32 %v3318, %v3528
        %v3561 = vadd.f32 %v3319, %v3529
        %v3562 = vadd.f32 %v3320, %v3530
        %v3563 = vadd.f32 %v3321, %v3531
        %v3564 = vadd.f32 %v3322, %v3532
        %v3565 = vadd.f32 %v3323, %v3533
        %v3566 = vadd.f32 %v3324, %v3534
        %v3567 = vadd.f32 %v3325, %v3535
        %v3568 = vadd.f32 %v3326, %v3536
        %v3569 = vadd.f32 %v3327, %v3537
        %v3570 = vadd.f32 %v3328, %v3538
        %v3571 = vadd.f32 %v3329, %v3539
        %v3572 = vadd.f32 %v3330, %v3540
        %v3573 = vadd.f32 %v3331, %v3541
        %v3574 = vadd.f32 %v3332, %v3542
        %v3575 = vadd.f32 %v3333, %v3543
        %v3576 = vadd.f32 %v3334, %v3544
        %v3577 = vadd.f32 %v3335, %v3545
        %v3578 = vadd.f32 %v3336, %v3546
        %v3579 = vadd.f32 %v3337, %v3547
        %v3580 = vadd.f32 %v3338, %v3548
        %v3581 = vadd.f32 %v3339, %v3549
        %v3582 = vadd.f32 %v3340, %v3550
        %v3583 = vadd.f32 %v3341, %v3551
        %v3584 = vadd.f32 %v3342, %v3552
        %3585 = vst [vmem:[%s581] sm:$0xff] %v3553
        %3586 = vst [vmem:[%s581 + $0x8] sm:$0xff] %v3554
        %3587 = vst [vmem:[%s581 + $0x10] sm:$0xff] %v3555
        %3588 = vst [vmem:[%s581 + $0x18] sm:$0xff] %v3556
        %3589 = vst [vmem:[%s581 + $0x20] sm:$0xff] %v3557
        %3590 = vst [vmem:[%s581 + $0x28] sm:$0xff] %v3558
        %3591 = vst [vmem:[%s581 + $0x30] sm:$0xff] %v3559
        %3592 = vst [vmem:[%s581 + $0x38] sm:$0xff] %v3560
        %3593 = vst [vmem:[%s581 + $0x40] sm:$0xff] %v3561
        %3594 = vst [vmem:[%s581 + $0x48] sm:$0xff] %v3562
        %3595 = vst [vmem:[%s581 + $0x50] sm:$0xff] %v3563
        %3596 = vst [vmem:[%s581 + $0x58] sm:$0xff] %v3564
        %3597 = vst [vmem:[%s581 + $0x60] sm:$0xff] %v3565
        %3598 = vst [vmem:[%s581 + $0x68] sm:$0xff] %v3566
        %3599 = vst [vmem:[%s581 + $0x70] sm:$0xff] %v3567
        %3600 = vst [vmem:[%s581 + $0x78] sm:$0xff] %v3568
        %3601 = vst [vmem:[%s581 + $0x80] sm:$0xff] %v3569
        %3602 = vst [vmem:[%s581 + $0x88] sm:$0xff] %v3570
        %3603 = vst [vmem:[%s581 + $0x90] sm:$0xff] %v3571
        %3604 = vst [vmem:[%s581 + $0x98] sm:$0xff] %v3572
        %3605 = vst [vmem:[%s581 + $0xa0] sm:$0xff] %v3573
        %3606 = vst [vmem:[%s581 + $0xa8] sm:$0xff] %v3574
        %3607 = vst [vmem:[%s581 + $0xb0] sm:$0xff] %v3575
        %3608 = vst [vmem:[%s581 + $0xb8] sm:$0xff] %v3576
        %3609 = vst [vmem:[%s581 + $0xc0] sm:$0xff] %v3577
        %3610 = vst [vmem:[%s581 + $0xc8] sm:$0xff] %v3578
        %3611 = vst [vmem:[%s581 + $0xd0] sm:$0xff] %v3579
        %3612 = vst [vmem:[%s581 + $0xd8] sm:$0xff] %v3580
        %3613 = vst [vmem:[%s581 + $0xe0] sm:$0xff] %v3581
        %3614 = vst [vmem:[%s581 + $0xe8] sm:$0xff] %v3582
        %3615 = vst [vmem:[%s581 + $0xf0] sm:$0xff] %v3583
        %3616 = vst [vmem:[%s581 + $0xf8] sm:$0xff] %v3584
        %s3617 = sand.u32 %s117, 1
        %s3618 = sand.u32 %s117, 1
        %s3619 = smul.addr %s3618, 256
        %s3620 = scalar_lea.vmem [#allocation4], %s3619
        // Predicated region
        $region98: #{_export_cfm_impl.1} parent=88 // pred_check
          %p3621 = pneg %p127
        $region99: #{_export_cfm_impl.1} parent=88 // pred_check_branch
          %3623 = sbr.rel (%p3621) target = $region101
        $region100: #{_export_cfm_impl.1} parent=88 // pred_region
          %s3624 = smul.u32 2, %s15
          %s3625 = smul.addr %s3624, 8
          %s3626 = scalar_lea.vmem %s4, %s3625
          // Predicated region
          $region102: #{_export_cfm_impl.1} parent=100 // pred_check
            _
          $region103: #{_export_cfm_impl.1} parent=100 // pred_check_branch
            %3628 = sbr.rel (0) target = $region105
          $region104: #{_export_cfm_impl.1} parent=100 // pred_region
            // Predicated region
            $region106: #{_export_cfm_impl.1} parent=104 // pred_check
              _
            $region107: #{_export_cfm_impl.1} parent=104 // pred_check_branch
              %3630 = sbr.rel (0) target = $region109
            $region108: #{_export_cfm_impl.1} parent=104 // pred_region
              loop: start=0, step=1, limit=1
              $region110: #{_export_cfm_impl.1} parent=108 // loop_pre_header
                _
              $region111: #{_export_cfm_impl.1} parent=108 // loop_header
                %s3632 = sphi 0, %s3636
                %p3633 = scmp.ge.s32.totalorder %s3632, 1
                %s3637 = sphi %s3620, %s3620
                %s3638 = sphi %s3626, %s3626
              $region112: #{_export_cfm_impl.1} parent=108 // loop_header_branch
                %3635 = sbr.rel (%p3633) target = $region116
              $region113: #{_export_cfm_impl.1} parent=108 // loop_body
                %v3639 = vld [vmem:[%s3637] sm:$0xff]
                %3640 = vst [vmem:[%s3638] sm:$0xff] %v3639
                %v3641 = vld [vmem:[%s3637 + $0x8] sm:$0xff]
                %3642 = vst [vmem:[%s3638 + $0x8] sm:$0xff] %v3641
                %v3643 = vld [vmem:[%s3637 + $0x10] sm:$0xff]
                %3644 = vst [vmem:[%s3638 + $0x20] sm:$0xff] %v3643
                %v3645 = vld [vmem:[%s3637 + $0x18] sm:$0xff]
                %3646 = vst [vmem:[%s3638 + $0x28] sm:$0xff] %v3645
                %v3647 = vld [vmem:[%s3637 + $0x20] sm:$0xff]
                %3648 = vst [vmem:[%s3638 + $0x40] sm:$0xff] %v3647
                %v3649 = vld [vmem:[%s3637 + $0x28] sm:$0xff]
                %3650 = vst [vmem:[%s3638 + $0x48] sm:$0xff] %v3649
                %v3651 = vld [vmem:[%s3637 + $0x30] sm:$0xff]
                %3652 = vst [vmem:[%s3638 + $0x60] sm:$0xff] %v3651
                %v3653 = vld [vmem:[%s3637 + $0x38] sm:$0xff]
                %3654 = vst [vmem:[%s3638 + $0x68] sm:$0xff] %v3653
                %v3655 = vld [vmem:[%s3637 + $0x40] sm:$0xff]
                %3656 = vst [vmem:[%s3638 + $0x80] sm:$0xff] %v3655
                %v3657 = vld [vmem:[%s3637 + $0x48] sm:$0xff]
                %3658 = vst [vmem:[%s3638 + $0x88] sm:$0xff] %v3657
                %v3659 = vld [vmem:[%s3637 + $0x50] sm:$0xff]
                %3660 = vst [vmem:[%s3638 + $0xa0] sm:$0xff] %v3659
                %v3661 = vld [vmem:[%s3637 + $0x58] sm:$0xff]
                %3662 = vst [vmem:[%s3638 + $0xa8] sm:$0xff] %v3661
                %v3663 = vld [vmem:[%s3637 + $0x60] sm:$0xff]
                %3664 = vst [vmem:[%s3638 + $0xc0] sm:$0xff] %v3663
                %v3665 = vld [vmem:[%s3637 + $0x68] sm:$0xff]
                %3666 = vst [vmem:[%s3638 + $0xc8] sm:$0xff] %v3665
                %v3667 = vld [vmem:[%s3637 + $0x70] sm:$0xff]
                %3668 = vst [vmem:[%s3638 + $0xe0] sm:$0xff] %v3667
                %v3669 = vld [vmem:[%s3637 + $0x78] sm:$0xff]
                %3670 = vst [vmem:[%s3638 + $0xe8] sm:$0xff] %v3669
                %v3671 = vld [vmem:[%s3637 + $0x80] sm:$0xff]
                %3672 = vst [vmem:[%s3638 + $0x100] sm:$0xff] %v3671
                %v3673 = vld [vmem:[%s3637 + $0x88] sm:$0xff]
                %3674 = vst [vmem:[%s3638 + $0x108] sm:$0xff] %v3673
                %v3675 = vld [vmem:[%s3637 + $0x90] sm:$0xff]
                %3676 = vst [vmem:[%s3638 + $0x120] sm:$0xff] %v3675
                %v3677 = vld [vmem:[%s3637 + $0x98] sm:$0xff]
                %3678 = vst [vmem:[%s3638 + $0x128] sm:$0xff] %v3677
                %v3679 = vld [vmem:[%s3637 + $0xa0] sm:$0xff]
                %3680 = vst [vmem:[%s3638 + $0x140] sm:$0xff] %v3679
                %v3681 = vld [vmem:[%s3637 + $0xa8] sm:$0xff]
                %3682 = vst [vmem:[%s3638 + $0x148] sm:$0xff] %v3681
                %v3683 = vld [vmem:[%s3637 + $0xb0] sm:$0xff]
                %3684 = vst [vmem:[%s3638 + $0x160] sm:$0xff] %v3683
                %v3685 = vld [vmem:[%s3637 + $0xb8] sm:$0xff]
                %3686 = vst [vmem:[%s3638 + $0x168] sm:$0xff] %v3685
                %v3687 = vld [vmem:[%s3637 + $0xc0] sm:$0xff]
                %3688 = vst [vmem:[%s3638 + $0x180] sm:$0xff] %v3687
                %v3689 = vld [vmem:[%s3637 + $0xc8] sm:$0xff]
                %3690 = vst [vmem:[%s3638 + $0x188] sm:$0xff] %v3689
                %v3691 = vld [vmem:[%s3637 + $0xd0] sm:$0xff]
                %3692 = vst [vmem:[%s3638 + $0x1a0] sm:$0xff] %v3691
                %v3693 = vld [vmem:[%s3637 + $0xd8] sm:$0xff]
                %3694 = vst [vmem:[%s3638 + $0x1a8] sm:$0xff] %v3693
                %v3695 = vld [vmem:[%s3637 + $0xe0] sm:$0xff]
                %3696 = vst [vmem:[%s3638 + $0x1c0] sm:$0xff] %v3695
                %v3697 = vld [vmem:[%s3637 + $0xe8] sm:$0xff]
                %3698 = vst [vmem:[%s3638 + $0x1c8] sm:$0xff] %v3697
                %v3699 = vld [vmem:[%s3637 + $0xf0] sm:$0xff]
                %3700 = vst [vmem:[%s3638 + $0x1e0] sm:$0xff] %v3699
                %v3701 = vld [vmem:[%s3637 + $0xf8] sm:$0xff]
                %3702 = vst [vmem:[%s3638 + $0x1e8] sm:$0xff] %v3701
              $region114: #{_export_cfm_impl.1} parent=108 // loop_footer
                %s3636 = sadd.s32 1, %s3632
              $region115: #{_export_cfm_impl.1} parent=108 // loop_footer_branch
                %3631 = sbr.rel target = $region111
              $region116: #{_export_cfm_impl.1} parent=108 // loop_exit
                _
            $region109: #{_export_cfm_impl.1} parent=104 // pred_fallthru
              _
            // Predicated region
            $region117: #{_export_cfm_impl.1} parent=104 // pred_check
              _
            $region118: #{_export_cfm_impl.1} parent=104 // pred_check_branch
              %3704 = sbr.rel target = $region120
            $region119: #{_export_cfm_impl.1} parent=104 // pred_region
              _
            $region120: #{_export_cfm_impl.1} parent=104 // pred_fallthru
              _
          $region105: #{_export_cfm_impl.1} parent=100 // pred_fallthru
            _
          %3705 = vnop
        $region101: #{_export_cfm_impl.1} parent=88 // pred_fallthru
          _
      $region89: #{_export_cfm_impl.1} parent=5 // pred_fallthru
        _
      %p3706 = scmp.le.s32.totalorder 2, %s10
      // Predicated region
      $region121: #{_export_cfm_impl.1} parent=5 // pred_check
        %p3707 = pneg %p3706
      $region122: #{_export_cfm_impl.1} parent=5 // pred_check_branch
        %3709 = sbr.rel (%p3707) target = $region124
      $region123: #{_export_cfm_impl.1} parent=5 // pred_region
        %s3710 = ssub.s32 %s10, 2
        // Predicated region
        $region125: #{_export_cfm_impl.1} parent=123 // pred_check
          %p3711 = pneg %p133
        $region126: #{_export_cfm_impl.1} parent=123 // pred_check_branch
          %3713 = sbr.rel (%p3711) target = $region128
        $region127: #{_export_cfm_impl.1} parent=123 // pred_region
          %s3714 = sand.u32 %s118, 1
          %s3715 = sand.u32 %s118, 1
          %s3716 = smul.addr %s3715, 256
          %s3717 = scalar_lea.vmem [#allocation4], %s3716
        $region128: #{_export_cfm_impl.1} parent=123 // pred_fallthru
          _
      $region124: #{_export_cfm_impl.1} parent=5 // pred_fallthru
        _
    $region6: #{_export_cfm_impl.1} parent=1 // loop_footer
      %s14 = sadd.s32 1, %s10
    $region7: #{_export_cfm_impl.1} parent=1 // loop_footer_branch
      %9 = sbr.rel target = $region3
    $region8: #{_export_cfm_impl.1} parent=1 // loop_exit
      _

</llo_original>
